<compile_context>
chip_gen: v5e
topology: v5e:2x2
jax: 0.10.0
libtpu: 0.0.40
codegen_flags: <defaults>
</compile_context>

<pallas_src>
import functools
import math

import jax
import jax.numpy as jnp
from jax.experimental import pallas as pl
from jax.experimental.pallas import tpu as pltpu


# --------------------------------------------------------------------------------------
# Fused decoder-layer kernel
# --------------------------------------------------------------------------------------
def _layernorm(x, g, b, eps=1e-5):
    mean = jnp.mean(x, axis=-1, keepdims=True)
    var = jnp.mean((x - mean) ** 2, axis=-1, keepdims=True)
    return (x - mean) * jax.lax.rsqrt(var + eps) * g + b


def _decoder_layer_kernel(
    tgt_ref, qp_ref, src_ref, rp_ref, posx_ref, posy_ref,
    w_qk_ref, b_qk_ref, w_v_ref, b_v_ref, w_o_ref, b_o_ref, n2g_ref, n2b_ref,
    ca_wv_ref, ca_bv_ref, ca_wop_ref, ca_bop_ref, ca_wout_ref, ca_bout_ref,
    n1g_ref, n1b_ref,
    f_w1_ref, f_b1_ref, f_w2_ref, f_b2_ref, n3g_ref, n3b_ref,
    o_ref,
    *, B, Q, S, D, n_heads, n_levels, n_points, spatial_shapes, level_starts):
    f32 = jnp.float32
    Dh = D // n_heads
    scale = 1.0 / math.sqrt(Dh)
    LP = n_levels * n_points
    HLP = n_heads * LP

    tgt = tgt_ref[...].astype(f32)       # (B*Q, D)
    qp = qp_ref[...].astype(f32)         # (B*Q, D)
    src = src_ref[...].astype(f32)       # (B*S, D)
    rp = rp_ref[...].astype(f32)         # (B*Q, L*2) -- (x, y) per level
    pos_x = posx_ref[...].astype(f32)    # (1, S) pixel x-coord within level
    pos_y = posy_ref[...].astype(f32)    # (1, S) pixel y-coord within level

    # ---------------- self attention (nn.MultiheadAttention, eval) ----------------
    qk_in = tgt + qp
    qk = jnp.dot(qk_in, w_qk_ref[...], preferred_element_type=f32) + b_qk_ref[...]
    q, k = qk[:, :D], qk[:, D:]
    v = jnp.dot(tgt, w_v_ref[...], preferred_element_type=f32) + b_v_ref[...]

    batch_rows = []
    for b in range(B):
        r0 = b * Q
        head_cols = []
        for h in range(n_heads):
            c0 = h * Dh
            qh = q[r0:r0 + Q, c0:c0 + Dh]
            kh = k[r0:r0 + Q, c0:c0 + Dh]
            vh = v[r0:r0 + Q, c0:c0 + Dh]
            s = jax.lax.dot_general(qh, kh, (((1,), (1,)), ((), ())),
                                    preferred_element_type=f32) * scale
            s = s - jnp.max(s, axis=-1, keepdims=True)
            pmat = jnp.exp(s)
            denom = jnp.sum(pmat, axis=-1, keepdims=True)
            oh = jnp.dot(pmat, vh, preferred_element_type=f32)
            head_cols.append(oh * pl.reciprocal(denom, approx=True))
        batch_rows.append(jnp.concatenate(head_cols, axis=1))
    attn_out = jnp.concatenate(batch_rows, axis=0)            # (B*Q, D)

    x = tgt + jnp.dot(attn_out, w_o_ref[...], preferred_element_type=f32) + b_o_ref[...]
    x = _layernorm(x, n2g_ref[...], n2b_ref[...])

    # ---------------- deformable cross attention (MSDeformAttn) ----------------
    query = x + qp
    value = jnp.dot(src, ca_wv_ref[...], preferred_element_type=f32) + ca_bv_ref[...]    # (B*S, D)
    op = jnp.dot(query, ca_wop_ref[...], preferred_element_type=f32) + ca_bop_ref[...]   # (B*Q, 3*HLP)
    off = op[:, :HLP * 2]            # sampling offsets, layout (h, l, p, xy)
    attn_logits = op[:, HLP * 2:]    # attention logits, layout (h, l, p)

    batch_rows = []
    for b in range(B):
        r0 = b * Q
        head_cols = []
        for h in range(n_heads):
            a = attn_logits[r0:r0 + Q, h * LP:(h + 1) * LP]   # softmax over (L*P) per head
            a = jnp.exp(a - jnp.max(a, axis=-1, keepdims=True))
            a = a * pl.reciprocal(jnp.sum(a, axis=-1, keepdims=True), approx=True)
            out_h = jnp.zeros((Q, Dh), f32)
            for l in range(n_levels):
                Hl, Wl = spatial_shapes[l]
                s0 = level_starts[l]
                HWl = Hl * Wl
                px = pos_x[:, s0:s0 + HWl]                    # (1, HWl)
                py = pos_y[:, s0:s0 + HWl]
                ref_x = rp[r0:r0 + Q, 2 * l:2 * l + 1]        # (Q, 1)
                ref_y = rp[r0:r0 + Q, 2 * l + 1:2 * l + 2]
                A_l = jnp.zeros((Q, HWl), f32)
                for pt in range(n_points):
                    col = ((h * n_levels + l) * n_points + pt) * 2
                    # grid_sample coords (align_corners=False): g = loc * size - 0.5,
                    # loc = ref + off / (W, H)  ->  g = ref*size + off - 0.5
                    gx = ref_x * Wl + off[r0:r0 + Q, col:col + 1] - 0.5
                    gy = ref_y * Hl + off[r0:r0 + Q, col + 1:col + 2] - 0.5
                    # dense separable bilinear weights (== zero-padding grid_sample)
                    wx = jnp.maximum(1.0 - jnp.abs(gx - px), 0.0)     # (Q, HWl)
                    wy = jnp.maximum(1.0 - jnp.abs(gy - py), 0.0)
                    A_l = A_l + wx * wy * a[:, l * n_points + pt:l * n_points + pt + 1]
                v_l = value[b * S + s0:b * S + s0 + HWl, h * Dh:(h + 1) * Dh]   # (HWl, Dh)
                out_h = out_h + jnp.dot(A_l, v_l, preferred_element_type=f32)   # MXU
            head_cols.append(out_h)
        batch_rows.append(jnp.concatenate(head_cols, axis=1))
    sampled = jnp.concatenate(batch_rows, axis=0)             # (B*Q, D)

    x = x + jnp.dot(sampled, ca_wout_ref[...], preferred_element_type=f32) + ca_bout_ref[...]
    x = _layernorm(x, n1g_ref[...], n1b_ref[...])

    # ---------------- FFN ----------------
    hdn = jnp.maximum(
        jnp.dot(x, f_w1_ref[...], preferred_element_type=f32) + f_b1_ref[...], 0.0)
    x = x + jnp.dot(hdn, f_w2_ref[...], preferred_element_type=f32) + f_b2_ref[...]
    x = _layernorm(x, n3g_ref[...], n3b_ref[...])

    o_ref[...] = x.astype(o_ref.dtype)


def fused_decoder_layer(p, tgt, query_pos, rp_xy, src, pos_x, pos_y,
                        spatial_shapes, level_starts, n_heads, n_levels, n_points):
    """One pallas_call for an entire decoder layer; all intermediates stay in VMEM."""
    B, Q, D = tgt.shape
    S = src.shape[1]
    operands = (
        tgt.reshape(B * Q, D),
        query_pos.reshape(B * Q, D),
        src.reshape(B * S, D),
        rp_xy.reshape(B * Q, n_levels * 2),
        pos_x, pos_y,
        p['w_qk'], p['b_qk'], p['w_v'], p['b_v'], p['w_o'], p['b_o'],
        p['n2_g'], p['n2_b'],
        p['ca_wv'], p['ca_bv'], p['ca_wop'], p['ca_bop'],
        p['ca_wout'], p['ca_bout'],
        p['n1_g'], p['n1_b'],
        p['f_w1'], p['f_b1'], p['f_w2'], p['f_b2'],
        p['n3_g'], p['n3_b'],
    )
    kernel = functools.partial(
        _decoder_layer_kernel, B=B, Q=Q, S=S, D=D,
        n_heads=n_heads, n_levels=n_levels, n_points=n_points,
        spatial_shapes=tuple(tuple(s) for s in spatial_shapes),
        level_starts=tuple(level_starts))
    vmem = pl.BlockSpec(memory_space=pltpu.MemorySpace.VMEM)   # whole array in VMEM
    out = pl.pallas_call(
        kernel,
        out_shape=jax.ShapeDtypeStruct((B * Q, D), tgt.dtype),
        in_specs=[vmem] * len(operands),
        out_specs=vmem,
    )(*operands)
    return out.reshape(B, Q, D)


# --------------------------------------------------------------------------------------
# Decoder forward (matches DeformableTransformerDecoder.forward with bbox embeds = None)
# --------------------------------------------------------------------------------------
def build_level_coords(spatial_shapes):
    xs, ys, starts = [], [], []
    s = 0
    for (h, w) in spatial_shapes:
        starts.append(s)
        yy, xx = jnp.meshgrid(jnp.arange(h, dtype=jnp.float32),
                              jnp.arange(w, dtype=jnp.float32), indexing='ij')
        xs.append(xx.reshape(-1))
        ys.append(yy.reshape(-1))
        s += h * w
    return jnp.concatenate(xs).reshape(1, -1), jnp.concatenate(ys).reshape(1, -1), starts


def deformable_transformer_decoder_forward(params, tgt, reference_points, src,
                                           src_spatial_shapes, src_valid_ratios,
                                           query_pos=None, return_intermediate=False,
                                           n_heads=4, n_levels=2, n_points=2):
    if query_pos is None:
        query_pos = jnp.zeros_like(tgt)
    pos_x, pos_y, level_starts = build_level_coords(src_spatial_shapes)
    output = tgt
    intermediate, intermediate_rp = [], []
    for layer_p in params['layers']:
        if reference_points.shape[-1] == 4:
            # TODO(synk): 4-d reference-point (box-refinement) sampling variant
            # (offsets / n_points * wh * 0.5) not implemented in the fused kernel.
            rp_input = reference_points[:, :, None] * jnp.concatenate(
                [src_valid_ratios, src_valid_ratios], -1)[:, None]
            rp_xy = rp_input[..., :2]
        else:
            assert reference_points.shape[-1] == 2
            rp_xy = reference_points[:, :, None] * src_valid_ratios[:, None]
        output = fused_decoder_layer(layer_p, output, query_pos, rp_xy, src,
                                     pos_x, pos_y, src_spatial_shapes, level_starts,
                                     n_heads, n_levels, n_points)
        if return_intermediate:
            intermediate.append(output)
            intermediate_rp.append(reference_points)
    if return_intermediate:
        return jnp.stack(intermediate), jnp.stack(intermediate_rp)
    return output, reference_points


# --------------------------------------------------------------------------------------
# Deterministic parameter init (shapes from DeformableTransformerDecoderLayer.__init__),
# pre-fused / pre-shaped for the kernel.
# --------------------------------------------------------------------------------------
def _init_linear(key, din, dout, scale=0.02):
    kw, kb = jax.random.split(key)
    w = scale * jax.random.normal(kw, (din, dout), jnp.float32)
    b = scale * jax.random.normal(kb, (dout,), jnp.float32)
    return w, b


def init_layer_params(key, d_model, d_ffn, n_heads, n_levels, n_points):
    ks = jax.random.split(key, 10)
    p = {}
    wq, bq = _init_linear(ks[0], d_model, d_model)
    wk, bk = _init_linear(ks[1], d_model, d_model)
    p['w_qk'] = jnp.concatenate([wq, wk], axis=1)
    p['b_qk'] = jnp.concatenate([bq, bk]).reshape(1, -1)
    wv, bv = _init_linear(ks[2], d_model, d_model)
    p['w_v'], p['b_v'] = wv, bv.reshape(1, -1)
    wo, bo = _init_linear(ks[3], d_model, d_model)
    p['w_o'], p['b_o'] = wo, bo.reshape(1, -1)
    cawv, cabv = _init_linear(ks[4], d_model, d_model)
    p['ca_wv'], p['ca_bv'] = cawv, cabv.reshape(1, -1)
    hlp = n_heads * n_levels * n_points
    woff, boff = _init_linear(ks[5], d_model, hlp * 2)
    wattn, battn = _init_linear(ks[6], d_model, hlp)
    p['ca_wop'] = jnp.concatenate([woff, wattn], axis=1)
    p['ca_bop'] = jnp.concatenate([boff, battn]).reshape(1, -1)
    wout, bout = _init_linear(ks[7], d_model, d_model)
    p['ca_wout'], p['ca_bout'] = wout, bout.reshape(1, -1)
    w1, b1 = _init_linear(ks[8], d_model, d_ffn)
    p['f_w1'], p['f_b1'] = w1, b1.reshape(1, -1)
    w2, b2 = _init_linear(ks[9], d_ffn, d_model)
    p['f_w2'], p['f_b2'] = w2, b2.reshape(1, -1)
    for n in ('n1', 'n2', 'n3'):
        p[n + '_g'] = jnp.ones((1, d_model), jnp.float32)
        p[n + '_b'] = jnp.zeros((1, d_model), jnp.float32)
    return p


def init_decoder_params(key, num_layers, d_model, d_ffn, n_heads, n_levels, n_points):
    keys = jax.random.split(key, num_layers)
    return {'layers': [init_layer_params(k, d_model, d_ffn, n_heads, n_levels, n_points)
                       for k in keys]}


# --------------------------------------------------------------------------------------
if __name__ == "__main__":
    B, Q, D = 2, 8, 32
    n_heads, n_levels, n_points = 4, 2, 2
    d_ffn, num_layers = 64, 2
    spatial_shapes = [(8, 8), (4, 4)]          # (H_l, W_l) per level
    S = sum(h * w for h, w in spatial_shapes)  # 80

    key = jax.random.PRNGKey(0)
    k_params, k_tgt, k_ref, k_src, k_vr, k_qp = jax.random.split(key, 6)

    params = init_decoder_params(k_params, num_layers, D, d_ffn, n_heads, n_levels, n_points)
    tgt = jax.random.normal(k_tgt, (B, Q, D), jnp.float32)
    reference_points = jax.nn.sigmoid(jax.random.normal(k_ref, (B, Q, 2), jnp.float32))
    src = jax.random.normal(k_src, (B, S, D), jnp.float32)
    src_valid_ratios = 0.5 + 0.5 * jax.nn.sigmoid(
        jax.random.normal(k_vr, (B, n_levels, 2), jnp.float32))
    query_pos = jax.random.normal(k_qp, (B, Q, D), jnp.float32)

    out, ref_out = deformable_transformer_decoder_forward(
        params, tgt, reference_points, src, spatial_shapes, src_valid_ratios,
        query_pos=query_pos, return_intermediate=False,
        n_heads=n_heads, n_levels=n_levels, n_points=n_points)

    out, ref_out = jax.block_until_ready((out, ref_out))
    assert out.shape == (B, Q, D) and ref_out.shape == (B, Q, 2)
    assert bool(jnp.isfinite(out).all()) and bool(jnp.isfinite(ref_out).all())
    print("KERNEL_OK")
</pallas_src>

<mosaic_0001>
module attributes {stable_mosaic.version = 11 : i64} {
  func.func @_decoder_layer_kernel(%arg0: memref<16x32xf32, #tpu.memory_space<vmem>>, %arg1: memref<16x32xf32, #tpu.memory_space<vmem>>, %arg2: memref<160x32xf32, #tpu.memory_space<vmem>>, %arg3: memref<16x4xf32, #tpu.memory_space<vmem>>, %arg4: memref<1x80xf32, #tpu.memory_space<vmem>>, %arg5: memref<1x80xf32, #tpu.memory_space<vmem>>, %arg6: memref<32x64xf32, #tpu.memory_space<vmem>>, %arg7: memref<1x64xf32, #tpu.memory_space<vmem>>, %arg8: memref<32x32xf32, #tpu.memory_space<vmem>>, %arg9: memref<1x32xf32, #tpu.memory_space<vmem>>, %arg10: memref<32x32xf32, #tpu.memory_space<vmem>>, %arg11: memref<1x32xf32, #tpu.memory_space<vmem>>, %arg12: memref<1x32xf32, #tpu.memory_space<vmem>>, %arg13: memref<1x32xf32, #tpu.memory_space<vmem>>, %arg14: memref<32x32xf32, #tpu.memory_space<vmem>>, %arg15: memref<1x32xf32, #tpu.memory_space<vmem>>, %arg16: memref<32x48xf32, #tpu.memory_space<vmem>>, %arg17: memref<1x48xf32, #tpu.memory_space<vmem>>, %arg18: memref<32x32xf32, #tpu.memory_space<vmem>>, %arg19: memref<1x32xf32, #tpu.memory_space<vmem>>, %arg20: memref<1x32xf32, #tpu.memory_space<vmem>>, %arg21: memref<1x32xf32, #tpu.memory_space<vmem>>, %arg22: memref<32x64xf32, #tpu.memory_space<vmem>>, %arg23: memref<1x64xf32, #tpu.memory_space<vmem>>, %arg24: memref<64x32xf32, #tpu.memory_space<vmem>>, %arg25: memref<1x32xf32, #tpu.memory_space<vmem>>, %arg26: memref<1x32xf32, #tpu.memory_space<vmem>>, %arg27: memref<1x32xf32, #tpu.memory_space<vmem>>, %arg28: memref<16x32xf32, #tpu.memory_space<vmem>>) attributes {dimension_semantics = [], scalar_prefetch = 0 : i64, scratch_operands = 0 : i64, tpu.core_type = #tpu.core_type<tc>} {
    %c0 = arith.constant 0 : index
    %c0_0 = arith.constant 0 : index
    %0 = vector.load %arg0[%c0, %c0_0] : memref<16x32xf32, #tpu.memory_space<vmem>>, vector<16x32xf32>
    %c0_1 = arith.constant 0 : index
    %c0_2 = arith.constant 0 : index
    %1 = vector.load %arg1[%c0_1, %c0_2] : memref<16x32xf32, #tpu.memory_space<vmem>>, vector<16x32xf32>
    %c0_3 = arith.constant 0 : index
    %c0_4 = arith.constant 0 : index
    %2 = vector.load %arg2[%c0_3, %c0_4] : memref<160x32xf32, #tpu.memory_space<vmem>>, vector<160x32xf32>
    %c0_5 = arith.constant 0 : index
    %c0_6 = arith.constant 0 : index
    %3 = vector.load %arg3[%c0_5, %c0_6] : memref<16x4xf32, #tpu.memory_space<vmem>>, vector<16x4xf32>
    %c0_7 = arith.constant 0 : index
    %c0_8 = arith.constant 0 : index
    %4 = vector.load %arg4[%c0_7, %c0_8] : memref<1x80xf32, #tpu.memory_space<vmem>>, vector<1x80xf32>
    %c0_9 = arith.constant 0 : index
    %c0_10 = arith.constant 0 : index
    %5 = vector.load %arg5[%c0_9, %c0_10] : memref<1x80xf32, #tpu.memory_space<vmem>>, vector<1x80xf32>
    %6 = arith.addf %0, %1 : vector<16x32xf32>
    %c0_11 = arith.constant 0 : index
    %c0_12 = arith.constant 0 : index
    %7 = vector.load %arg6[%c0_11, %c0_12] : memref<32x64xf32, #tpu.memory_space<vmem>>, vector<32x64xf32>
    %cst = arith.constant dense<0.000000e+00> : vector<16x64xf32>
    %8 = tpu.matmul %6, %7, %cst {dimension_numbers = #tpu.dot_dimension_numbers<[1], [0], [0], [1], [0, 0, 1, 1], [], []>} : vector<16x32xf32>, vector<32x64xf32>, vector<16x64xf32> -> vector<16x64xf32>
    %c0_13 = arith.constant 0 : index
    %c0_14 = arith.constant 0 : index
    %9 = vector.load %arg7[%c0_13, %c0_14] : memref<1x64xf32, #tpu.memory_space<vmem>>, vector<1x64xf32>
    %10 = vector.broadcast %9 : vector<1x64xf32> to vector<16x64xf32>
    %11 = arith.addf %8, %10 : vector<16x64xf32>
    %12 = vector.extract_strided_slice %11 {offsets = [0, 0], sizes = [16, 32], strides = [1, 1]} : vector<16x64xf32> to vector<16x32xf32>
    %13 = vector.extract_strided_slice %11 {offsets = [0, 32], sizes = [16, 32], strides = [1, 1]} : vector<16x64xf32> to vector<16x32xf32>
    %c0_15 = arith.constant 0 : index
    %c0_16 = arith.constant 0 : index
    %14 = vector.load %arg8[%c0_15, %c0_16] : memref<32x32xf32, #tpu.memory_space<vmem>>, vector<32x32xf32>
    %cst_17 = arith.constant dense<0.000000e+00> : vector<16x32xf32>
    %15 = tpu.matmul %0, %14, %cst_17 {dimension_numbers = #tpu.dot_dimension_numbers<[1], [0], [0], [1], [0, 0, 1, 1], [], []>} : vector<16x32xf32>, vector<32x32xf32>, vector<16x32xf32> -> vector<16x32xf32>
    %c0_18 = arith.constant 0 : index
    %c0_19 = arith.constant 0 : index
    %16 = vector.load %arg9[%c0_18, %c0_19] : memref<1x32xf32, #tpu.memory_space<vmem>>, vector<1x32xf32>
    %17 = vector.broadcast %16 : vector<1x32xf32> to vector<16x32xf32>
    %18 = arith.addf %15, %17 : vector<16x32xf32>
    %19 = vector.extract_strided_slice %12 {offsets = [0, 0], sizes = [8, 8], strides = [1, 1]} : vector<16x32xf32> to vector<8x8xf32>
    %20 = vector.extract_strided_slice %13 {offsets = [0, 0], sizes = [8, 8], strides = [1, 1]} : vector<16x32xf32> to vector<8x8xf32>
    %21 = vector.extract_strided_slice %18 {offsets = [0, 0], sizes = [8, 8], strides = [1, 1]} : vector<16x32xf32> to vector<8x8xf32>
    %cst_20 = arith.constant dense<0.000000e+00> : vector<8x8xf32>
    %22 = tpu.matmul %19, %20, %cst_20 {dimension_numbers = #tpu.dot_dimension_numbers<[1], [1], [0], [0], [0, 0, 1, 0], [], []>} : vector<8x8xf32>, vector<8x8xf32>, vector<8x8xf32> -> vector<8x8xf32>
    %cst_21 = arith.constant 0.353553385 : f32
    %23 = vector.broadcast %cst_21 : f32 to vector<8x8xf32>
    %24 = arith.mulf %22, %23 : vector<8x8xf32>
    %cst_22 = arith.constant dense<0xFF800000> : vector<8xf32>
    %25 = vector.multi_reduction <maximumf>, %24, %cst_22 [1] : vector<8x8xf32> to vector<8xf32>
    %26 = vector.shape_cast %25 : vector<8xf32> to vector<8x1xf32>
    %27 = vector.broadcast %26 : vector<8x1xf32> to vector<8x8xf32>
    %28 = arith.subf %24, %27 : vector<8x8xf32>
    %29 = math.exp %28 : vector<8x8xf32>
    %cst_23 = arith.constant dense<0.000000e+00> : vector<8xf32>
    %30 = vector.multi_reduction <add>, %29, %cst_23 [1] : vector<8x8xf32> to vector<8xf32>
    %31 = vector.shape_cast %30 : vector<8xf32> to vector<8x1xf32>
    %cst_24 = arith.constant dense<0.000000e+00> : vector<8x8xf32>
    %32 = tpu.matmul %29, %21, %cst_24 {dimension_numbers = #tpu.dot_dimension_numbers<[1], [0], [0], [1], [0, 0, 1, 1], [], []>} : vector<8x8xf32>, vector<8x8xf32>, vector<8x8xf32> -> vector<8x8xf32>
    %33 = tpu.reciprocal %31 {approx = true} : vector<8x1xf32> -> vector<8x1xf32>
    %34 = vector.broadcast %33 : vector<8x1xf32> to vector<8x8xf32>
    %35 = arith.mulf %32, %34 : vector<8x8xf32>
    %36 = vector.extract_strided_slice %12 {offsets = [0, 8], sizes = [8, 8], strides = [1, 1]} : vector<16x32xf32> to vector<8x8xf32>
    %37 = vector.extract_strided_slice %13 {offsets = [0, 8], sizes = [8, 8], strides = [1, 1]} : vector<16x32xf32> to vector<8x8xf32>
    %38 = vector.extract_strided_slice %18 {offsets = [0, 8], sizes = [8, 8], strides = [1, 1]} : vector<16x32xf32> to vector<8x8xf32>
    %cst_25 = arith.constant dense<0.000000e+00> : vector<8x8xf32>
    %39 = tpu.matmul %36, %37, %cst_25 {dimension_numbers = #tpu.dot_dimension_numbers<[1], [1], [0], [0], [0, 0, 1, 0], [], []>} : vector<8x8xf32>, vector<8x8xf32>, vector<8x8xf32> -> vector<8x8xf32>
    %cst_26 = arith.constant 0.353553385 : f32
    %40 = vector.broadcast %cst_26 : f32 to vector<8x8xf32>
    %41 = arith.mulf %39, %40 : vector<8x8xf32>
    %cst_27 = arith.constant dense<0xFF800000> : vector<8xf32>
    %42 = vector.multi_reduction <maximumf>, %41, %cst_27 [1] : vector<8x8xf32> to vector<8xf32>
    %43 = vector.shape_cast %42 : vector<8xf32> to vector<8x1xf32>
    %44 = vector.broadcast %43 : vector<8x1xf32> to vector<8x8xf32>
    %45 = arith.subf %41, %44 : vector<8x8xf32>
    %46 = math.exp %45 : vector<8x8xf32>
    %cst_28 = arith.constant dense<0.000000e+00> : vector<8xf32>
    %47 = vector.multi_reduction <add>, %46, %cst_28 [1] : vector<8x8xf32> to vector<8xf32>
    %48 = vector.shape_cast %47 : vector<8xf32> to vector<8x1xf32>
    %cst_29 = arith.constant dense<0.000000e+00> : vector<8x8xf32>
    %49 = tpu.matmul %46, %38, %cst_29 {dimension_numbers = #tpu.dot_dimension_numbers<[1], [0], [0], [1], [0, 0, 1, 1], [], []>} : vector<8x8xf32>, vector<8x8xf32>, vector<8x8xf32> -> vector<8x8xf32>
    %50 = tpu.reciprocal %48 {approx = true} : vector<8x1xf32> -> vector<8x1xf32>
    %51 = vector.broadcast %50 : vector<8x1xf32> to vector<8x8xf32>
    %52 = arith.mulf %49, %51 : vector<8x8xf32>
    %53 = vector.extract_strided_slice %12 {offsets = [0, 16], sizes = [8, 8], strides = [1, 1]} : vector<16x32xf32> to vector<8x8xf32>
    %54 = vector.extract_strided_slice %13 {offsets = [0, 16], sizes = [8, 8], strides = [1, 1]} : vector<16x32xf32> to vector<8x8xf32>
    %55 = vector.extract_strided_slice %18 {offsets = [0, 16], sizes = [8, 8], strides = [1, 1]} : vector<16x32xf32> to vector<8x8xf32>
    %cst_30 = arith.constant dense<0.000000e+00> : vector<8x8xf32>
    %56 = tpu.matmul %53, %54, %cst_30 {dimension_numbers = #tpu.dot_dimension_numbers<[1], [1], [0], [0], [0, 0, 1, 0], [], []>} : vector<8x8xf32>, vector<8x8xf32>, vector<8x8xf32> -> vector<8x8xf32>
    %cst_31 = arith.constant 0.353553385 : f32
    %57 = vector.broadcast %cst_31 : f32 to vector<8x8xf32>
    %58 = arith.mulf %56, %57 : vector<8x8xf32>
    %cst_32 = arith.constant dense<0xFF800000> : vector<8xf32>
    %59 = vector.multi_reduction <maximumf>, %58, %cst_32 [1] : vector<8x8xf32> to vector<8xf32>
    %60 = vector.shape_cast %59 : vector<8xf32> to vector<8x1xf32>
    %61 = vector.broadcast %60 : vector<8x1xf32> to vector<8x8xf32>
    %62 = arith.subf %58, %61 : vector<8x8xf32>
    %63 = math.exp %62 : vector<8x8xf32>
    %cst_33 = arith.constant dense<0.000000e+00> : vector<8xf32>
    %64 = vector.multi_reduction <add>, %63, %cst_33 [1] : vector<8x8xf32> to vector<8xf32>
    %65 = vector.shape_cast %64 : vector<8xf32> to vector<8x1xf32>
    %cst_34 = arith.constant dense<0.000000e+00> : vector<8x8xf32>
    %66 = tpu.matmul %63, %55, %cst_34 {dimension_numbers = #tpu.dot_dimension_numbers<[1], [0], [0], [1], [0, 0, 1, 1], [], []>} : vector<8x8xf32>, vector<8x8xf32>, vector<8x8xf32> -> vector<8x8xf32>
    %67 = tpu.reciprocal %65 {approx = true} : vector<8x1xf32> -> vector<8x1xf32>
    %68 = vector.broadcast %67 : vector<8x1xf32> to vector<8x8xf32>
    %69 = arith.mulf %66, %68 : vector<8x8xf32>
    %70 = vector.extract_strided_slice %12 {offsets = [0, 24], sizes = [8, 8], strides = [1, 1]} : vector<16x32xf32> to vector<8x8xf32>
    %71 = vector.extract_strided_slice %13 {offsets = [0, 24], sizes = [8, 8], strides = [1, 1]} : vector<16x32xf32> to vector<8x8xf32>
    %72 = vector.extract_strided_slice %18 {offsets = [0, 24], sizes = [8, 8], strides = [1, 1]} : vector<16x32xf32> to vector<8x8xf32>
    %cst_35 = arith.constant dense<0.000000e+00> : vector<8x8xf32>
    %73 = tpu.matmul %70, %71, %cst_35 {dimension_numbers = #tpu.dot_dimension_numbers<[1], [1], [0], [0], [0, 0, 1, 0], [], []>} : vector<8x8xf32>, vector<8x8xf32>, vector<8x8xf32> -> vector<8x8xf32>
    %cst_36 = arith.constant 0.353553385 : f32
    %74 = vector.broadcast %cst_36 : f32 to vector<8x8xf32>
    %75 = arith.mulf %73, %74 : vector<8x8xf32>
    %cst_37 = arith.constant dense<0xFF800000> : vector<8xf32>
    %76 = vector.multi_reduction <maximumf>, %75, %cst_37 [1] : vector<8x8xf32> to vector<8xf32>
    %77 = vector.shape_cast %76 : vector<8xf32> to vector<8x1xf32>
    %78 = vector.broadcast %77 : vector<8x1xf32> to vector<8x8xf32>
    %79 = arith.subf %75, %78 : vector<8x8xf32>
    %80 = math.exp %79 : vector<8x8xf32>
    %cst_38 = arith.constant dense<0.000000e+00> : vector<8xf32>
    %81 = vector.multi_reduction <add>, %80, %cst_38 [1] : vector<8x8xf32> to vector<8xf32>
    %82 = vector.shape_cast %81 : vector<8xf32> to vector<8x1xf32>
    %cst_39 = arith.constant dense<0.000000e+00> : vector<8x8xf32>
    %83 = tpu.matmul %80, %72, %cst_39 {dimension_numbers = #tpu.dot_dimension_numbers<[1], [0], [0], [1], [0, 0, 1, 1], [], []>} : vector<8x8xf32>, vector<8x8xf32>, vector<8x8xf32> -> vector<8x8xf32>
    %84 = tpu.reciprocal %82 {approx = true} : vector<8x1xf32> -> vector<8x1xf32>
    %85 = vector.broadcast %84 : vector<8x1xf32> to vector<8x8xf32>
    %86 = arith.mulf %83, %85 : vector<8x8xf32>
    %87 = tpu.concatenate %35, %52, %69, %86 in 1 : vector<8x8xf32>, vector<8x8xf32>, vector<8x8xf32>, vector<8x8xf32> -> vector<8x32xf32>
    %88 = vector.extract_strided_slice %12 {offsets = [8, 0], sizes = [8, 8], strides = [1, 1]} : vector<16x32xf32> to vector<8x8xf32>
    %89 = vector.extract_strided_slice %13 {offsets = [8, 0], sizes = [8, 8], strides = [1, 1]} : vector<16x32xf32> to vector<8x8xf32>
    %90 = vector.extract_strided_slice %18 {offsets = [8, 0], sizes = [8, 8], strides = [1, 1]} : vector<16x32xf32> to vector<8x8xf32>
    %cst_40 = arith.constant dense<0.000000e+00> : vector<8x8xf32>
    %91 = tpu.matmul %88, %89, %cst_40 {dimension_numbers = #tpu.dot_dimension_numbers<[1], [1], [0], [0], [0, 0, 1, 0], [], []>} : vector<8x8xf32>, vector<8x8xf32>, vector<8x8xf32> -> vector<8x8xf32>
    %cst_41 = arith.constant 0.353553385 : f32
    %92 = vector.broadcast %cst_41 : f32 to vector<8x8xf32>
    %93 = arith.mulf %91, %92 : vector<8x8xf32>
    %cst_42 = arith.constant dense<0xFF800000> : vector<8xf32>
    %94 = vector.multi_reduction <maximumf>, %93, %cst_42 [1] : vector<8x8xf32> to vector<8xf32>
    %95 = vector.shape_cast %94 : vector<8xf32> to vector<8x1xf32>
    %96 = vector.broadcast %95 : vector<8x1xf32> to vector<8x8xf32>
    %97 = arith.subf %93, %96 : vector<8x8xf32>
    %98 = math.exp %97 : vector<8x8xf32>
    %cst_43 = arith.constant dense<0.000000e+00> : vector<8xf32>
    %99 = vector.multi_reduction <add>, %98, %cst_43 [1] : vector<8x8xf32> to vector<8xf32>
    %100 = vector.shape_cast %99 : vector<8xf32> to vector<8x1xf32>
    %cst_44 = arith.constant dense<0.000000e+00> : vector<8x8xf32>
    %101 = tpu.matmul %98, %90, %cst_44 {dimension_numbers = #tpu.dot_dimension_numbers<[1], [0], [0], [1], [0, 0, 1, 1], [], []>} : vector<8x8xf32>, vector<8x8xf32>, vector<8x8xf32> -> vector<8x8xf32>
    %102 = tpu.reciprocal %100 {approx = true} : vector<8x1xf32> -> vector<8x1xf32>
    %103 = vector.broadcast %102 : vector<8x1xf32> to vector<8x8xf32>
    %104 = arith.mulf %101, %103 : vector<8x8xf32>
    %105 = vector.extract_strided_slice %12 {offsets = [8, 8], sizes = [8, 8], strides = [1, 1]} : vector<16x32xf32> to vector<8x8xf32>
    %106 = vector.extract_strided_slice %13 {offsets = [8, 8], sizes = [8, 8], strides = [1, 1]} : vector<16x32xf32> to vector<8x8xf32>
    %107 = vector.extract_strided_slice %18 {offsets = [8, 8], sizes = [8, 8], strides = [1, 1]} : vector<16x32xf32> to vector<8x8xf32>
    %cst_45 = arith.constant dense<0.000000e+00> : vector<8x8xf32>
    %108 = tpu.matmul %105, %106, %cst_45 {dimension_numbers = #tpu.dot_dimension_numbers<[1], [1], [0], [0], [0, 0, 1, 0], [], []>} : vector<8x8xf32>, vector<8x8xf32>, vector<8x8xf32> -> vector<8x8xf32>
    %cst_46 = arith.constant 0.353553385 : f32
    %109 = vector.broadcast %cst_46 : f32 to vector<8x8xf32>
    %110 = arith.mulf %108, %109 : vector<8x8xf32>
    %cst_47 = arith.constant dense<0xFF800000> : vector<8xf32>
    %111 = vector.multi_reduction <maximumf>, %110, %cst_47 [1] : vector<8x8xf32> to vector<8xf32>
    %112 = vector.shape_cast %111 : vector<8xf32> to vector<8x1xf32>
    %113 = vector.broadcast %112 : vector<8x1xf32> to vector<8x8xf32>
    %114 = arith.subf %110, %113 : vector<8x8xf32>
    %115 = math.exp %114 : vector<8x8xf32>
    %cst_48 = arith.constant dense<0.000000e+00> : vector<8xf32>
    %116 = vector.multi_reduction <add>, %115, %cst_48 [1] : vector<8x8xf32> to vector<8xf32>
    %117 = vector.shape_cast %116 : vector<8xf32> to vector<8x1xf32>
    %cst_49 = arith.constant dense<0.000000e+00> : vector<8x8xf32>
    %118 = tpu.matmul %115, %107, %cst_49 {dimension_numbers = #tpu.dot_dimension_numbers<[1], [0], [0], [1], [0, 0, 1, 1], [], []>} : vector<8x8xf32>, vector<8x8xf32>, vector<8x8xf32> -> vector<8x8xf32>
    %119 = tpu.reciprocal %117 {approx = true} : vector<8x1xf32> -> vector<8x1xf32>
    %120 = vector.broadcast %119 : vector<8x1xf32> to vector<8x8xf32>
    %121 = arith.mulf %118, %120 : vector<8x8xf32>
    %122 = vector.extract_strided_slice %12 {offsets = [8, 16], sizes = [8, 8], strides = [1, 1]} : vector<16x32xf32> to vector<8x8xf32>
    %123 = vector.extract_strided_slice %13 {offsets = [8, 16], sizes = [8, 8], strides = [1, 1]} : vector<16x32xf32> to vector<8x8xf32>
    %124 = vector.extract_strided_slice %18 {offsets = [8, 16], sizes = [8, 8], strides = [1, 1]} : vector<16x32xf32> to vector<8x8xf32>
    %cst_50 = arith.constant dense<0.000000e+00> : vector<8x8xf32>
    %125 = tpu.matmul %122, %123, %cst_50 {dimension_numbers = #tpu.dot_dimension_numbers<[1], [1], [0], [0], [0, 0, 1, 0], [], []>} : vector<8x8xf32>, vector<8x8xf32>, vector<8x8xf32> -> vector<8x8xf32>
    %cst_51 = arith.constant 0.353553385 : f32
    %126 = vector.broadcast %cst_51 : f32 to vector<8x8xf32>
    %127 = arith.mulf %125, %126 : vector<8x8xf32>
    %cst_52 = arith.constant dense<0xFF800000> : vector<8xf32>
    %128 = vector.multi_reduction <maximumf>, %127, %cst_52 [1] : vector<8x8xf32> to vector<8xf32>
    %129 = vector.shape_cast %128 : vector<8xf32> to vector<8x1xf32>
    %130 = vector.broadcast %129 : vector<8x1xf32> to vector<8x8xf32>
    %131 = arith.subf %127, %130 : vector<8x8xf32>
    %132 = math.exp %131 : vector<8x8xf32>
    %cst_53 = arith.constant dense<0.000000e+00> : vector<8xf32>
    %133 = vector.multi_reduction <add>, %132, %cst_53 [1] : vector<8x8xf32> to vector<8xf32>
    %134 = vector.shape_cast %133 : vector<8xf32> to vector<8x1xf32>
    %cst_54 = arith.constant dense<0.000000e+00> : vector<8x8xf32>
    %135 = tpu.matmul %132, %124, %cst_54 {dimension_numbers = #tpu.dot_dimension_numbers<[1], [0], [0], [1], [0, 0, 1, 1], [], []>} : vector<8x8xf32>, vector<8x8xf32>, vector<8x8xf32> -> vector<8x8xf32>
    %136 = tpu.reciprocal %134 {approx = true} : vector<8x1xf32> -> vector<8x1xf32>
    %137 = vector.broadcast %136 : vector<8x1xf32> to vector<8x8xf32>
    %138 = arith.mulf %135, %137 : vector<8x8xf32>
    %139 = vector.extract_strided_slice %12 {offsets = [8, 24], sizes = [8, 8], strides = [1, 1]} : vector<16x32xf32> to vector<8x8xf32>
    %140 = vector.extract_strided_slice %13 {offsets = [8, 24], sizes = [8, 8], strides = [1, 1]} : vector<16x32xf32> to vector<8x8xf32>
    %141 = vector.extract_strided_slice %18 {offsets = [8, 24], sizes = [8, 8], strides = [1, 1]} : vector<16x32xf32> to vector<8x8xf32>
    %cst_55 = arith.constant dense<0.000000e+00> : vector<8x8xf32>
    %142 = tpu.matmul %139, %140, %cst_55 {dimension_numbers = #tpu.dot_dimension_numbers<[1], [1], [0], [0], [0, 0, 1, 0], [], []>} : vector<8x8xf32>, vector<8x8xf32>, vector<8x8xf32> -> vector<8x8xf32>
    %cst_56 = arith.constant 0.353553385 : f32
    %143 = vector.broadcast %cst_56 : f32 to vector<8x8xf32>
    %144 = arith.mulf %142, %143 : vector<8x8xf32>
    %cst_57 = arith.constant dense<0xFF800000> : vector<8xf32>
    %145 = vector.multi_reduction <maximumf>, %144, %cst_57 [1] : vector<8x8xf32> to vector<8xf32>
    %146 = vector.shape_cast %145 : vector<8xf32> to vector<8x1xf32>
    %147 = vector.broadcast %146 : vector<8x1xf32> to vector<8x8xf32>
    %148 = arith.subf %144, %147 : vector<8x8xf32>
    %149 = math.exp %148 : vector<8x8xf32>
    %cst_58 = arith.constant dense<0.000000e+00> : vector<8xf32>
    %150 = vector.multi_reduction <add>, %149, %cst_58 [1] : vector<8x8xf32> to vector<8xf32>
    %151 = vector.shape_cast %150 : vector<8xf32> to vector<8x1xf32>
    %cst_59 = arith.constant dense<0.000000e+00> : vector<8x8xf32>
    %152 = tpu.matmul %149, %141, %cst_59 {dimension_numbers = #tpu.dot_dimension_numbers<[1], [0], [0], [1], [0, 0, 1, 1], [], []>} : vector<8x8xf32>, vector<8x8xf32>, vector<8x8xf32> -> vector<8x8xf32>
    %153 = tpu.reciprocal %151 {approx = true} : vector<8x1xf32> -> vector<8x1xf32>
    %154 = vector.broadcast %153 : vector<8x1xf32> to vector<8x8xf32>
    %155 = arith.mulf %152, %154 : vector<8x8xf32>
    %156 = tpu.concatenate %104, %121, %138, %155 in 1 : vector<8x8xf32>, vector<8x8xf32>, vector<8x8xf32>, vector<8x8xf32> -> vector<8x32xf32>
    %157 = tpu.concatenate %87, %156 in 0 : vector<8x32xf32>, vector<8x32xf32> -> vector<16x32xf32>
    %c0_60 = arith.constant 0 : index
    %c0_61 = arith.constant 0 : index
    %158 = vector.load %arg10[%c0_60, %c0_61] : memref<32x32xf32, #tpu.memory_space<vmem>>, vector<32x32xf32>
    %cst_62 = arith.constant dense<0.000000e+00> : vector<16x32xf32>
    %159 = tpu.matmul %157, %158, %cst_62 {dimension_numbers = #tpu.dot_dimension_numbers<[1], [0], [0], [1], [0, 0, 1, 1], [], []>} : vector<16x32xf32>, vector<32x32xf32>, vector<16x32xf32> -> vector<16x32xf32>
    %160 = arith.addf %0, %159 : vector<16x32xf32>
    %c0_63 = arith.constant 0 : index
    %c0_64 = arith.constant 0 : index
    %161 = vector.load %arg11[%c0_63, %c0_64] : memref<1x32xf32, #tpu.memory_space<vmem>>, vector<1x32xf32>
    %162 = vector.broadcast %161 : vector<1x32xf32> to vector<16x32xf32>
    %163 = arith.addf %160, %162 : vector<16x32xf32>
    %c0_65 = arith.constant 0 : index
    %c0_66 = arith.constant 0 : index
    %164 = vector.load %arg12[%c0_65, %c0_66] : memref<1x32xf32, #tpu.memory_space<vmem>>, vector<1x32xf32>
    %c0_67 = arith.constant 0 : index
    %c0_68 = arith.constant 0 : index
    %165 = vector.load %arg13[%c0_67, %c0_68] : memref<1x32xf32, #tpu.memory_space<vmem>>, vector<1x32xf32>
    %cst_69 = arith.constant dense<0.000000e+00> : vector<16xf32>
    %166 = vector.multi_reduction <add>, %163, %cst_69 [1] : vector<16x32xf32> to vector<16xf32>
    %167 = vector.shape_cast %166 : vector<16xf32> to vector<16x1xf32>
    %cst_70 = arith.constant 3.200000e+01 : f32
    %168 = vector.broadcast %cst_70 : f32 to vector<16x1xf32>
    %169 = arith.divf %167, %168 : vector<16x1xf32>
    %170 = vector.broadcast %169 : vector<16x1xf32> to vector<16x32xf32>
    %171 = arith.subf %163, %170 : vector<16x32xf32>
    %172 = arith.mulf %171, %171 : vector<16x32xf32>
    %cst_71 = arith.constant dense<0.000000e+00> : vector<16xf32>
    %173 = vector.multi_reduction <add>, %172, %cst_71 [1] : vector<16x32xf32> to vector<16xf32>
    %174 = vector.shape_cast %173 : vector<16xf32> to vector<16x1xf32>
    %cst_72 = arith.constant 3.200000e+01 : f32
    %175 = vector.broadcast %cst_72 : f32 to vector<16x1xf32>
    %176 = arith.divf %174, %175 : vector<16x1xf32>
    %177 = vector.broadcast %169 : vector<16x1xf32> to vector<16x32xf32>
    %178 = arith.subf %163, %177 : vector<16x32xf32>
    %cst_73 = arith.constant 9.99999974E-6 : f32
    %179 = vector.broadcast %cst_73 : f32 to vector<16x1xf32>
    %180 = arith.addf %176, %179 : vector<16x1xf32>
    %181 = math.rsqrt %180 : vector<16x1xf32>
    %182 = vector.broadcast %181 : vector<16x1xf32> to vector<16x32xf32>
    %183 = arith.mulf %178, %182 : vector<16x32xf32>
    %184 = vector.broadcast %164 : vector<1x32xf32> to vector<16x32xf32>
    %185 = arith.mulf %183, %184 : vector<16x32xf32>
    %186 = vector.broadcast %165 : vector<1x32xf32> to vector<16x32xf32>
    %187 = arith.addf %185, %186 : vector<16x32xf32>
    %188 = arith.addf %187, %1 : vector<16x32xf32>
    %c0_74 = arith.constant 0 : index
    %c0_75 = arith.constant 0 : index
    %189 = vector.load %arg14[%c0_74, %c0_75] : memref<32x32xf32, #tpu.memory_space<vmem>>, vector<32x32xf32>
    %cst_76 = arith.constant dense<0.000000e+00> : vector<160x32xf32>
    %190 = tpu.matmul %2, %189, %cst_76 {dimension_numbers = #tpu.dot_dimension_numbers<[1], [0], [0], [1], [0, 0, 1, 1], [], []>} : vector<160x32xf32>, vector<32x32xf32>, vector<160x32xf32> -> vector<160x32xf32>
    %c0_77 = arith.constant 0 : index
    %c0_78 = arith.constant 0 : index
    %191 = vector.load %arg15[%c0_77, %c0_78] : memref<1x32xf32, #tpu.memory_space<vmem>>, vector<1x32xf32>
    %192 = vector.broadcast %191 : vector<1x32xf32> to vector<160x32xf32>
    %193 = arith.addf %190, %192 : vector<160x32xf32>
    %c0_79 = arith.constant 0 : index
    %c0_80 = arith.constant 0 : index
    %194 = vector.load %arg16[%c0_79, %c0_80] : memref<32x48xf32, #tpu.memory_space<vmem>>, vector<32x48xf32>
    %cst_81 = arith.constant dense<0.000000e+00> : vector<16x48xf32>
    %195 = tpu.matmul %188, %194, %cst_81 {dimension_numbers = #tpu.dot_dimension_numbers<[1], [0], [0], [1], [0, 0, 1, 1], [], []>} : vector<16x32xf32>, vector<32x48xf32>, vector<16x48xf32> -> vector<16x48xf32>
    %c0_82 = arith.constant 0 : index
    %c0_83 = arith.constant 0 : index
    %196 = vector.load %arg17[%c0_82, %c0_83] : memref<1x48xf32, #tpu.memory_space<vmem>>, vector<1x48xf32>
    %197 = vector.broadcast %196 : vector<1x48xf32> to vector<16x48xf32>
    %198 = arith.addf %195, %197 : vector<16x48xf32>
    %199 = vector.extract_strided_slice %198 {offsets = [0, 0], sizes = [16, 32], strides = [1, 1]} : vector<16x48xf32> to vector<16x32xf32>
    %200 = vector.extract_strided_slice %198 {offsets = [0, 32], sizes = [16, 16], strides = [1, 1]} : vector<16x48xf32> to vector<16x16xf32>
    %201 = vector.extract_strided_slice %200 {offsets = [0, 0], sizes = [8, 4], strides = [1, 1]} : vector<16x16xf32> to vector<8x4xf32>
    %cst_84 = arith.constant dense<0xFF800000> : vector<8xf32>
    %202 = vector.multi_reduction <maximumf>, %201, %cst_84 [1] : vector<8x4xf32> to vector<8xf32>
    %203 = vector.shape_cast %202 : vector<8xf32> to vector<8x1xf32>
    %204 = vector.broadcast %203 : vector<8x1xf32> to vector<8x4xf32>
    %205 = arith.subf %201, %204 : vector<8x4xf32>
    %206 = math.exp %205 : vector<8x4xf32>
    %cst_85 = arith.constant dense<0.000000e+00> : vector<8xf32>
    %207 = vector.multi_reduction <add>, %206, %cst_85 [1] : vector<8x4xf32> to vector<8xf32>
    %208 = vector.shape_cast %207 : vector<8xf32> to vector<8x1xf32>
    %209 = tpu.reciprocal %208 {approx = true} : vector<8x1xf32> -> vector<8x1xf32>
    %210 = vector.broadcast %209 : vector<8x1xf32> to vector<8x4xf32>
    %211 = arith.mulf %206, %210 : vector<8x4xf32>
    %cst_86 = arith.constant 0.000000e+00 : f32
    %212 = vector.broadcast %cst_86 : f32 to vector<8x8xf32>
    %213 = vector.extract_strided_slice %4 {offsets = [0, 0], sizes = [1, 64], strides = [1, 1]} : vector<1x80xf32> to vector<1x64xf32>
    %214 = vector.extract_strided_slice %5 {offsets = [0, 0], sizes = [1, 64], strides = [1, 1]} : vector<1x80xf32> to vector<1x64xf32>
    %215 = vector.extract_strided_slice %3 {offsets = [0, 0], sizes = [8, 1], strides = [1, 1]} : vector<16x4xf32> to vector<8x1xf32>
    %216 = vector.extract_strided_slice %3 {offsets = [0, 1], sizes = [8, 1], strides = [1, 1]} : vector<16x4xf32> to vector<8x1xf32>
    %cst_87 = arith.constant 0.000000e+00 : f32
    %217 = vector.broadcast %cst_87 : f32 to vector<8x64xf32>
    %cst_88 = arith.constant 8.000000e+00 : f32
    %218 = vector.broadcast %cst_88 : f32 to vector<8x1xf32>
    %219 = arith.mulf %215, %218 : vector<8x1xf32>
    %220 = vector.extract_strided_slice %199 {offsets = [0, 0], sizes = [8, 1], strides = [1, 1]} : vector<16x32xf32> to vector<8x1xf32>
    %221 = arith.addf %219, %220 : vector<8x1xf32>
    %cst_89 = arith.constant 5.000000e-01 : f32
    %222 = vector.broadcast %cst_89 : f32 to vector<8x1xf32>
    %223 = arith.subf %221, %222 : vector<8x1xf32>
    %cst_90 = arith.constant 8.000000e+00 : f32
    %224 = vector.broadcast %cst_90 : f32 to vector<8x1xf32>
    %225 = arith.mulf %216, %224 : vector<8x1xf32>
    %226 = vector.extract_strided_slice %199 {offsets = [0, 1], sizes = [8, 1], strides = [1, 1]} : vector<16x32xf32> to vector<8x1xf32>
    %227 = arith.addf %225, %226 : vector<8x1xf32>
    %cst_91 = arith.constant 5.000000e-01 : f32
    %228 = vector.broadcast %cst_91 : f32 to vector<8x1xf32>
    %229 = arith.subf %227, %228 : vector<8x1xf32>
    %230 = vector.broadcast %223 : vector<8x1xf32> to vector<8x64xf32>
    %231 = vector.broadcast %213 : vector<1x64xf32> to vector<8x64xf32>
    %232 = arith.subf %230, %231 : vector<8x64xf32>
    %233 = math.absf %232 : vector<8x64xf32>
    %cst_92 = arith.constant 1.000000e+00 : f32
    %234 = vector.broadcast %cst_92 : f32 to vector<8x64xf32>
    %235 = arith.subf %234, %233 : vector<8x64xf32>
    %cst_93 = arith.constant 0.000000e+00 : f32
    %236 = vector.broadcast %cst_93 : f32 to vector<8x64xf32>
    %237 = arith.maximumf %235, %236 : vector<8x64xf32>
    %238 = vector.broadcast %229 : vector<8x1xf32> to vector<8x64xf32>
    %239 = vector.broadcast %214 : vector<1x64xf32> to vector<8x64xf32>
    %240 = arith.subf %238, %239 : vector<8x64xf32>
    %241 = math.absf %240 : vector<8x64xf32>
    %cst_94 = arith.constant 1.000000e+00 : f32
    %242 = vector.broadcast %cst_94 : f32 to vector<8x64xf32>
    %243 = arith.subf %242, %241 : vector<8x64xf32>
    %cst_95 = arith.constant 0.000000e+00 : f32
    %244 = vector.broadcast %cst_95 : f32 to vector<8x64xf32>
    %245 = arith.maximumf %243, %244 : vector<8x64xf32>
    %246 = arith.mulf %237, %245 : vector<8x64xf32>
    %247 = vector.extract_strided_slice %211 {offsets = [0, 0], sizes = [8, 1], strides = [1, 1]} : vector<8x4xf32> to vector<8x1xf32>
    %248 = vector.broadcast %247 : vector<8x1xf32> to vector<8x64xf32>
    %249 = arith.mulf %246, %248 : vector<8x64xf32>
    %250 = arith.addf %217, %249 : vector<8x64xf32>
    %cst_96 = arith.constant 8.000000e+00 : f32
    %251 = vector.broadcast %cst_96 : f32 to vector<8x1xf32>
    %252 = arith.mulf %215, %251 : vector<8x1xf32>
    %253 = vector.extract_strided_slice %199 {offsets = [0, 2], sizes = [8, 1], strides = [1, 1]} : vector<16x32xf32> to vector<8x1xf32>
    %254 = arith.addf %252, %253 : vector<8x1xf32>
    %cst_97 = arith.constant 5.000000e-01 : f32
    %255 = vector.broadcast %cst_97 : f32 to vector<8x1xf32>
    %256 = arith.subf %254, %255 : vector<8x1xf32>
    %cst_98 = arith.constant 8.000000e+00 : f32
    %257 = vector.broadcast %cst_98 : f32 to vector<8x1xf32>
    %258 = arith.mulf %216, %257 : vector<8x1xf32>
    %259 = vector.extract_strided_slice %199 {offsets = [0, 3], sizes = [8, 1], strides = [1, 1]} : vector<16x32xf32> to vector<8x1xf32>
    %260 = arith.addf %258, %259 : vector<8x1xf32>
    %cst_99 = arith.constant 5.000000e-01 : f32
    %261 = vector.broadcast %cst_99 : f32 to vector<8x1xf32>
    %262 = arith.subf %260, %261 : vector<8x1xf32>
    %263 = vector.broadcast %256 : vector<8x1xf32> to vector<8x64xf32>
    %264 = vector.broadcast %213 : vector<1x64xf32> to vector<8x64xf32>
    %265 = arith.subf %263, %264 : vector<8x64xf32>
    %266 = math.absf %265 : vector<8x64xf32>
    %cst_100 = arith.constant 1.000000e+00 : f32
    %267 = vector.broadcast %cst_100 : f32 to vector<8x64xf32>
    %268 = arith.subf %267, %266 : vector<8x64xf32>
    %cst_101 = arith.constant 0.000000e+00 : f32
    %269 = vector.broadcast %cst_101 : f32 to vector<8x64xf32>
    %270 = arith.maximumf %268, %269 : vector<8x64xf32>
    %271 = vector.broadcast %262 : vector<8x1xf32> to vector<8x64xf32>
    %272 = vector.broadcast %214 : vector<1x64xf32> to vector<8x64xf32>
    %273 = arith.subf %271, %272 : vector<8x64xf32>
    %274 = math.absf %273 : vector<8x64xf32>
    %cst_102 = arith.constant 1.000000e+00 : f32
    %275 = vector.broadcast %cst_102 : f32 to vector<8x64xf32>
    %276 = arith.subf %275, %274 : vector<8x64xf32>
    %cst_103 = arith.constant 0.000000e+00 : f32
    %277 = vector.broadcast %cst_103 : f32 to vector<8x64xf32>
    %278 = arith.maximumf %276, %277 : vector<8x64xf32>
    %279 = arith.mulf %270, %278 : vector<8x64xf32>
    %280 = vector.extract_strided_slice %211 {offsets = [0, 1], sizes = [8, 1], strides = [1, 1]} : vector<8x4xf32> to vector<8x1xf32>
    %281 = vector.broadcast %280 : vector<8x1xf32> to vector<8x64xf32>
    %282 = arith.mulf %279, %281 : vector<8x64xf32>
    %283 = arith.addf %250, %282 : vector<8x64xf32>
    %284 = vector.extract_strided_slice %193 {offsets = [0, 0], sizes = [64, 8], strides = [1, 1]} : vector<160x32xf32> to vector<64x8xf32>
    %cst_104 = arith.constant dense<0.000000e+00> : vector<8x8xf32>
    %285 = tpu.matmul %283, %284, %cst_104 {dimension_numbers = #tpu.dot_dimension_numbers<[1], [0], [0], [1], [0, 0, 1, 1], [], []>} : vector<8x64xf32>, vector<64x8xf32>, vector<8x8xf32> -> vector<8x8xf32>
    %286 = arith.addf %212, %285 : vector<8x8xf32>
    %287 = vector.extract_strided_slice %4 {offsets = [0, 64], sizes = [1, 16], strides = [1, 1]} : vector<1x80xf32> to vector<1x16xf32>
    %288 = vector.extract_strided_slice %5 {offsets = [0, 64], sizes = [1, 16], strides = [1, 1]} : vector<1x80xf32> to vector<1x16xf32>
    %289 = vector.extract_strided_slice %3 {offsets = [0, 2], sizes = [8, 1], strides = [1, 1]} : vector<16x4xf32> to vector<8x1xf32>
    %290 = vector.extract_strided_slice %3 {offsets = [0, 3], sizes = [8, 1], strides = [1, 1]} : vector<16x4xf32> to vector<8x1xf32>
    %cst_105 = arith.constant 0.000000e+00 : f32
    %291 = vector.broadcast %cst_105 : f32 to vector<8x16xf32>
    %cst_106 = arith.constant 4.000000e+00 : f32
    %292 = vector.broadcast %cst_106 : f32 to vector<8x1xf32>
    %293 = arith.mulf %289, %292 : vector<8x1xf32>
    %294 = vector.extract_strided_slice %199 {offsets = [0, 4], sizes = [8, 1], strides = [1, 1]} : vector<16x32xf32> to vector<8x1xf32>
    %295 = arith.addf %293, %294 : vector<8x1xf32>
    %cst_107 = arith.constant 5.000000e-01 : f32
    %296 = vector.broadcast %cst_107 : f32 to vector<8x1xf32>
    %297 = arith.subf %295, %296 : vector<8x1xf32>
    %cst_108 = arith.constant 4.000000e+00 : f32
    %298 = vector.broadcast %cst_108 : f32 to vector<8x1xf32>
    %299 = arith.mulf %290, %298 : vector<8x1xf32>
    %300 = vector.extract_strided_slice %199 {offsets = [0, 5], sizes = [8, 1], strides = [1, 1]} : vector<16x32xf32> to vector<8x1xf32>
    %301 = arith.addf %299, %300 : vector<8x1xf32>
    %cst_109 = arith.constant 5.000000e-01 : f32
    %302 = vector.broadcast %cst_109 : f32 to vector<8x1xf32>
    %303 = arith.subf %301, %302 : vector<8x1xf32>
    %304 = vector.broadcast %297 : vector<8x1xf32> to vector<8x16xf32>
    %305 = vector.broadcast %287 : vector<1x16xf32> to vector<8x16xf32>
    %306 = arith.subf %304, %305 : vector<8x16xf32>
    %307 = math.absf %306 : vector<8x16xf32>
    %cst_110 = arith.constant 1.000000e+00 : f32
    %308 = vector.broadcast %cst_110 : f32 to vector<8x16xf32>
    %309 = arith.subf %308, %307 : vector<8x16xf32>
    %cst_111 = arith.constant 0.000000e+00 : f32
    %310 = vector.broadcast %cst_111 : f32 to vector<8x16xf32>
    %311 = arith.maximumf %309, %310 : vector<8x16xf32>
    %312 = vector.broadcast %303 : vector<8x1xf32> to vector<8x16xf32>
    %313 = vector.broadcast %288 : vector<1x16xf32> to vector<8x16xf32>
    %314 = arith.subf %312, %313 : vector<8x16xf32>
    %315 = math.absf %314 : vector<8x16xf32>
    %cst_112 = arith.constant 1.000000e+00 : f32
    %316 = vector.broadcast %cst_112 : f32 to vector<8x16xf32>
    %317 = arith.subf %316, %315 : vector<8x16xf32>
    %cst_113 = arith.constant 0.000000e+00 : f32
    %318 = vector.broadcast %cst_113 : f32 to vector<8x16xf32>
    %319 = arith.maximumf %317, %318 : vector<8x16xf32>
    %320 = arith.mulf %311, %319 : vector<8x16xf32>
    %321 = vector.extract_strided_slice %211 {offsets = [0, 2], sizes = [8, 1], strides = [1, 1]} : vector<8x4xf32> to vector<8x1xf32>
    %322 = vector.broadcast %321 : vector<8x1xf32> to vector<8x16xf32>
    %323 = arith.mulf %320, %322 : vector<8x16xf32>
    %324 = arith.addf %291, %323 : vector<8x16xf32>
    %cst_114 = arith.constant 4.000000e+00 : f32
    %325 = vector.broadcast %cst_114 : f32 to vector<8x1xf32>
    %326 = arith.mulf %289, %325 : vector<8x1xf32>
    %327 = vector.extract_strided_slice %199 {offsets = [0, 6], sizes = [8, 1], strides = [1, 1]} : vector<16x32xf32> to vector<8x1xf32>
    %328 = arith.addf %326, %327 : vector<8x1xf32>
    %cst_115 = arith.constant 5.000000e-01 : f32
    %329 = vector.broadcast %cst_115 : f32 to vector<8x1xf32>
    %330 = arith.subf %328, %329 : vector<8x1xf32>
    %cst_116 = arith.constant 4.000000e+00 : f32
    %331 = vector.broadcast %cst_116 : f32 to vector<8x1xf32>
    %332 = arith.mulf %290, %331 : vector<8x1xf32>
    %333 = vector.extract_strided_slice %199 {offsets = [0, 7], sizes = [8, 1], strides = [1, 1]} : vector<16x32xf32> to vector<8x1xf32>
    %334 = arith.addf %332, %333 : vector<8x1xf32>
    %cst_117 = arith.constant 5.000000e-01 : f32
    %335 = vector.broadcast %cst_117 : f32 to vector<8x1xf32>
    %336 = arith.subf %334, %335 : vector<8x1xf32>
    %337 = vector.broadcast %330 : vector<8x1xf32> to vector<8x16xf32>
    %338 = vector.broadcast %287 : vector<1x16xf32> to vector<8x16xf32>
    %339 = arith.subf %337, %338 : vector<8x16xf32>
    %340 = math.absf %339 : vector<8x16xf32>
    %cst_118 = arith.constant 1.000000e+00 : f32
    %341 = vector.broadcast %cst_118 : f32 to vector<8x16xf32>
    %342 = arith.subf %341, %340 : vector<8x16xf32>
    %cst_119 = arith.constant 0.000000e+00 : f32
    %343 = vector.broadcast %cst_119 : f32 to vector<8x16xf32>
    %344 = arith.maximumf %342, %343 : vector<8x16xf32>
    %345 = vector.broadcast %336 : vector<8x1xf32> to vector<8x16xf32>
    %346 = vector.broadcast %288 : vector<1x16xf32> to vector<8x16xf32>
    %347 = arith.subf %345, %346 : vector<8x16xf32>
    %348 = math.absf %347 : vector<8x16xf32>
    %cst_120 = arith.constant 1.000000e+00 : f32
    %349 = vector.broadcast %cst_120 : f32 to vector<8x16xf32>
    %350 = arith.subf %349, %348 : vector<8x16xf32>
    %cst_121 = arith.constant 0.000000e+00 : f32
    %351 = vector.broadcast %cst_121 : f32 to vector<8x16xf32>
    %352 = arith.maximumf %350, %351 : vector<8x16xf32>
    %353 = arith.mulf %344, %352 : vector<8x16xf32>
    %354 = vector.extract_strided_slice %211 {offsets = [0, 3], sizes = [8, 1], strides = [1, 1]} : vector<8x4xf32> to vector<8x1xf32>
    %355 = vector.broadcast %354 : vector<8x1xf32> to vector<8x16xf32>
    %356 = arith.mulf %353, %355 : vector<8x16xf32>
    %357 = arith.addf %324, %356 : vector<8x16xf32>
    %358 = vector.extract_strided_slice %193 {offsets = [64, 0], sizes = [16, 8], strides = [1, 1]} : vector<160x32xf32> to vector<16x8xf32>
    %cst_122 = arith.constant dense<0.000000e+00> : vector<8x8xf32>
    %359 = tpu.matmul %357, %358, %cst_122 {dimension_numbers = #tpu.dot_dimension_numbers<[1], [0], [0], [1], [0, 0, 1, 1], [], []>} : vector<8x16xf32>, vector<16x8xf32>, vector<8x8xf32> -> vector<8x8xf32>
    %360 = arith.addf %286, %359 : vector<8x8xf32>
    %361 = vector.extract_strided_slice %200 {offsets = [0, 4], sizes = [8, 4], strides = [1, 1]} : vector<16x16xf32> to vector<8x4xf32>
    %cst_123 = arith.constant dense<0xFF800000> : vector<8xf32>
    %362 = vector.multi_reduction <maximumf>, %361, %cst_123 [1] : vector<8x4xf32> to vector<8xf32>
    %363 = vector.shape_cast %362 : vector<8xf32> to vector<8x1xf32>
    %364 = vector.broadcast %363 : vector<8x1xf32> to vector<8x4xf32>
    %365 = arith.subf %361, %364 : vector<8x4xf32>
    %366 = math.exp %365 : vector<8x4xf32>
    %cst_124 = arith.constant dense<0.000000e+00> : vector<8xf32>
    %367 = vector.multi_reduction <add>, %366, %cst_124 [1] : vector<8x4xf32> to vector<8xf32>
    %368 = vector.shape_cast %367 : vector<8xf32> to vector<8x1xf32>
    %369 = tpu.reciprocal %368 {approx = true} : vector<8x1xf32> -> vector<8x1xf32>
    %370 = vector.broadcast %369 : vector<8x1xf32> to vector<8x4xf32>
    %371 = arith.mulf %366, %370 : vector<8x4xf32>
    %cst_125 = arith.constant 0.000000e+00 : f32
    %372 = vector.broadcast %cst_125 : f32 to vector<8x8xf32>
    %373 = vector.extract_strided_slice %4 {offsets = [0, 0], sizes = [1, 64], strides = [1, 1]} : vector<1x80xf32> to vector<1x64xf32>
    %374 = vector.extract_strided_slice %5 {offsets = [0, 0], sizes = [1, 64], strides = [1, 1]} : vector<1x80xf32> to vector<1x64xf32>
    %375 = vector.extract_strided_slice %3 {offsets = [0, 0], sizes = [8, 1], strides = [1, 1]} : vector<16x4xf32> to vector<8x1xf32>
    %376 = vector.extract_strided_slice %3 {offsets = [0, 1], sizes = [8, 1], strides = [1, 1]} : vector<16x4xf32> to vector<8x1xf32>
    %cst_126 = arith.constant 0.000000e+00 : f32
    %377 = vector.broadcast %cst_126 : f32 to vector<8x64xf32>
    %cst_127 = arith.constant 8.000000e+00 : f32
    %378 = vector.broadcast %cst_127 : f32 to vector<8x1xf32>
    %379 = arith.mulf %375, %378 : vector<8x1xf32>
    %380 = vector.extract_strided_slice %199 {offsets = [0, 8], sizes = [8, 1], strides = [1, 1]} : vector<16x32xf32> to vector<8x1xf32>
    %381 = arith.addf %379, %380 : vector<8x1xf32>
    %cst_128 = arith.constant 5.000000e-01 : f32
    %382 = vector.broadcast %cst_128 : f32 to vector<8x1xf32>
    %383 = arith.subf %381, %382 : vector<8x1xf32>
    %cst_129 = arith.constant 8.000000e+00 : f32
    %384 = vector.broadcast %cst_129 : f32 to vector<8x1xf32>
    %385 = arith.mulf %376, %384 : vector<8x1xf32>
    %386 = vector.extract_strided_slice %199 {offsets = [0, 9], sizes = [8, 1], strides = [1, 1]} : vector<16x32xf32> to vector<8x1xf32>
    %387 = arith.addf %385, %386 : vector<8x1xf32>
    %cst_130 = arith.constant 5.000000e-01 : f32
    %388 = vector.broadcast %cst_130 : f32 to vector<8x1xf32>
    %389 = arith.subf %387, %388 : vector<8x1xf32>
    %390 = vector.broadcast %383 : vector<8x1xf32> to vector<8x64xf32>
    %391 = vector.broadcast %373 : vector<1x64xf32> to vector<8x64xf32>
    %392 = arith.subf %390, %391 : vector<8x64xf32>
    %393 = math.absf %392 : vector<8x64xf32>
    %cst_131 = arith.constant 1.000000e+00 : f32
    %394 = vector.broadcast %cst_131 : f32 to vector<8x64xf32>
    %395 = arith.subf %394, %393 : vector<8x64xf32>
    %cst_132 = arith.constant 0.000000e+00 : f32
    %396 = vector.broadcast %cst_132 : f32 to vector<8x64xf32>
    %397 = arith.maximumf %395, %396 : vector<8x64xf32>
    %398 = vector.broadcast %389 : vector<8x1xf32> to vector<8x64xf32>
    %399 = vector.broadcast %374 : vector<1x64xf32> to vector<8x64xf32>
    %400 = arith.subf %398, %399 : vector<8x64xf32>
    %401 = math.absf %400 : vector<8x64xf32>
    %cst_133 = arith.constant 1.000000e+00 : f32
    %402 = vector.broadcast %cst_133 : f32 to vector<8x64xf32>
    %403 = arith.subf %402, %401 : vector<8x64xf32>
    %cst_134 = arith.constant 0.000000e+00 : f32
    %404 = vector.broadcast %cst_134 : f32 to vector<8x64xf32>
    %405 = arith.maximumf %403, %404 : vector<8x64xf32>
    %406 = arith.mulf %397, %405 : vector<8x64xf32>
    %407 = vector.extract_strided_slice %371 {offsets = [0, 0], sizes = [8, 1], strides = [1, 1]} : vector<8x4xf32> to vector<8x1xf32>
    %408 = vector.broadcast %407 : vector<8x1xf32> to vector<8x64xf32>
    %409 = arith.mulf %406, %408 : vector<8x64xf32>
    %410 = arith.addf %377, %409 : vector<8x64xf32>
    %cst_135 = arith.constant 8.000000e+00 : f32
    %411 = vector.broadcast %cst_135 : f32 to vector<8x1xf32>
    %412 = arith.mulf %375, %411 : vector<8x1xf32>
    %413 = vector.extract_strided_slice %199 {offsets = [0, 10], sizes = [8, 1], strides = [1, 1]} : vector<16x32xf32> to vector<8x1xf32>
    %414 = arith.addf %412, %413 : vector<8x1xf32>
    %cst_136 = arith.constant 5.000000e-01 : f32
    %415 = vector.broadcast %cst_136 : f32 to vector<8x1xf32>
    %416 = arith.subf %414, %415 : vector<8x1xf32>
    %cst_137 = arith.constant 8.000000e+00 : f32
    %417 = vector.broadcast %cst_137 : f32 to vector<8x1xf32>
    %418 = arith.mulf %376, %417 : vector<8x1xf32>
    %419 = vector.extract_strided_slice %199 {offsets = [0, 11], sizes = [8, 1], strides = [1, 1]} : vector<16x32xf32> to vector<8x1xf32>
    %420 = arith.addf %418, %419 : vector<8x1xf32>
    %cst_138 = arith.constant 5.000000e-01 : f32
    %421 = vector.broadcast %cst_138 : f32 to vector<8x1xf32>
    %422 = arith.subf %420, %421 : vector<8x1xf32>
    %423 = vector.broadcast %416 : vector<8x1xf32> to vector<8x64xf32>
    %424 = vector.broadcast %373 : vector<1x64xf32> to vector<8x64xf32>
    %425 = arith.subf %423, %424 : vector<8x64xf32>
    %426 = math.absf %425 : vector<8x64xf32>
    %cst_139 = arith.constant 1.000000e+00 : f32
    %427 = vector.broadcast %cst_139 : f32 to vector<8x64xf32>
    %428 = arith.subf %427, %426 : vector<8x64xf32>
    %cst_140 = arith.constant 0.000000e+00 : f32
    %429 = vector.broadcast %cst_140 : f32 to vector<8x64xf32>
    %430 = arith.maximumf %428, %429 : vector<8x64xf32>
    %431 = vector.broadcast %422 : vector<8x1xf32> to vector<8x64xf32>
    %432 = vector.broadcast %374 : vector<1x64xf32> to vector<8x64xf32>
    %433 = arith.subf %431, %432 : vector<8x64xf32>
    %434 = math.absf %433 : vector<8x64xf32>
    %cst_141 = arith.constant 1.000000e+00 : f32
    %435 = vector.broadcast %cst_141 : f32 to vector<8x64xf32>
    %436 = arith.subf %435, %434 : vector<8x64xf32>
    %cst_142 = arith.constant 0.000000e+00 : f32
    %437 = vector.broadcast %cst_142 : f32 to vector<8x64xf32>
    %438 = arith.maximumf %436, %437 : vector<8x64xf32>
    %439 = arith.mulf %430, %438 : vector<8x64xf32>
    %440 = vector.extract_strided_slice %371 {offsets = [0, 1], sizes = [8, 1], strides = [1, 1]} : vector<8x4xf32> to vector<8x1xf32>
    %441 = vector.broadcast %440 : vector<8x1xf32> to vector<8x64xf32>
    %442 = arith.mulf %439, %441 : vector<8x64xf32>
    %443 = arith.addf %410, %442 : vector<8x64xf32>
    %444 = vector.extract_strided_slice %193 {offsets = [0, 8], sizes = [64, 8], strides = [1, 1]} : vector<160x32xf32> to vector<64x8xf32>
    %cst_143 = arith.constant dense<0.000000e+00> : vector<8x8xf32>
    %445 = tpu.matmul %443, %444, %cst_143 {dimension_numbers = #tpu.dot_dimension_numbers<[1], [0], [0], [1], [0, 0, 1, 1], [], []>} : vector<8x64xf32>, vector<64x8xf32>, vector<8x8xf32> -> vector<8x8xf32>
    %446 = arith.addf %372, %445 : vector<8x8xf32>
    %447 = vector.extract_strided_slice %4 {offsets = [0, 64], sizes = [1, 16], strides = [1, 1]} : vector<1x80xf32> to vector<1x16xf32>
    %448 = vector.extract_strided_slice %5 {offsets = [0, 64], sizes = [1, 16], strides = [1, 1]} : vector<1x80xf32> to vector<1x16xf32>
    %449 = vector.extract_strided_slice %3 {offsets = [0, 2], sizes = [8, 1], strides = [1, 1]} : vector<16x4xf32> to vector<8x1xf32>
    %450 = vector.extract_strided_slice %3 {offsets = [0, 3], sizes = [8, 1], strides = [1, 1]} : vector<16x4xf32> to vector<8x1xf32>
    %cst_144 = arith.constant 0.000000e+00 : f32
    %451 = vector.broadcast %cst_144 : f32 to vector<8x16xf32>
    %cst_145 = arith.constant 4.000000e+00 : f32
    %452 = vector.broadcast %cst_145 : f32 to vector<8x1xf32>
    %453 = arith.mulf %449, %452 : vector<8x1xf32>
    %454 = vector.extract_strided_slice %199 {offsets = [0, 12], sizes = [8, 1], strides = [1, 1]} : vector<16x32xf32> to vector<8x1xf32>
    %455 = arith.addf %453, %454 : vector<8x1xf32>
    %cst_146 = arith.constant 5.000000e-01 : f32
    %456 = vector.broadcast %cst_146 : f32 to vector<8x1xf32>
    %457 = arith.subf %455, %456 : vector<8x1xf32>
    %cst_147 = arith.constant 4.000000e+00 : f32
    %458 = vector.broadcast %cst_147 : f32 to vector<8x1xf32>
    %459 = arith.mulf %450, %458 : vector<8x1xf32>
    %460 = vector.extract_strided_slice %199 {offsets = [0, 13], sizes = [8, 1], strides = [1, 1]} : vector<16x32xf32> to vector<8x1xf32>
    %461 = arith.addf %459, %460 : vector<8x1xf32>
    %cst_148 = arith.constant 5.000000e-01 : f32
    %462 = vector.broadcast %cst_148 : f32 to vector<8x1xf32>
    %463 = arith.subf %461, %462 : vector<8x1xf32>
    %464 = vector.broadcast %457 : vector<8x1xf32> to vector<8x16xf32>
    %465 = vector.broadcast %447 : vector<1x16xf32> to vector<8x16xf32>
    %466 = arith.subf %464, %465 : vector<8x16xf32>
    %467 = math.absf %466 : vector<8x16xf32>
    %cst_149 = arith.constant 1.000000e+00 : f32
    %468 = vector.broadcast %cst_149 : f32 to vector<8x16xf32>
    %469 = arith.subf %468, %467 : vector<8x16xf32>
    %cst_150 = arith.constant 0.000000e+00 : f32
    %470 = vector.broadcast %cst_150 : f32 to vector<8x16xf32>
    %471 = arith.maximumf %469, %470 : vector<8x16xf32>
    %472 = vector.broadcast %463 : vector<8x1xf32> to vector<8x16xf32>
    %473 = vector.broadcast %448 : vector<1x16xf32> to vector<8x16xf32>
    %474 = arith.subf %472, %473 : vector<8x16xf32>
    %475 = math.absf %474 : vector<8x16xf32>
    %cst_151 = arith.constant 1.000000e+00 : f32
    %476 = vector.broadcast %cst_151 : f32 to vector<8x16xf32>
    %477 = arith.subf %476, %475 : vector<8x16xf32>
    %cst_152 = arith.constant 0.000000e+00 : f32
    %478 = vector.broadcast %cst_152 : f32 to vector<8x16xf32>
    %479 = arith.maximumf %477, %478 : vector<8x16xf32>
    %480 = arith.mulf %471, %479 : vector<8x16xf32>
    %481 = vector.extract_strided_slice %371 {offsets = [0, 2], sizes = [8, 1], strides = [1, 1]} : vector<8x4xf32> to vector<8x1xf32>
    %482 = vector.broadcast %481 : vector<8x1xf32> to vector<8x16xf32>
    %483 = arith.mulf %480, %482 : vector<8x16xf32>
    %484 = arith.addf %451, %483 : vector<8x16xf32>
    %cst_153 = arith.constant 4.000000e+00 : f32
    %485 = vector.broadcast %cst_153 : f32 to vector<8x1xf32>
    %486 = arith.mulf %449, %485 : vector<8x1xf32>
    %487 = vector.extract_strided_slice %199 {offsets = [0, 14], sizes = [8, 1], strides = [1, 1]} : vector<16x32xf32> to vector<8x1xf32>
    %488 = arith.addf %486, %487 : vector<8x1xf32>
    %cst_154 = arith.constant 5.000000e-01 : f32
    %489 = vector.broadcast %cst_154 : f32 to vector<8x1xf32>
    %490 = arith.subf %488, %489 : vector<8x1xf32>
    %cst_155 = arith.constant 4.000000e+00 : f32
    %491 = vector.broadcast %cst_155 : f32 to vector<8x1xf32>
    %492 = arith.mulf %450, %491 : vector<8x1xf32>
    %493 = vector.extract_strided_slice %199 {offsets = [0, 15], sizes = [8, 1], strides = [1, 1]} : vector<16x32xf32> to vector<8x1xf32>
    %494 = arith.addf %492, %493 : vector<8x1xf32>
    %cst_156 = arith.constant 5.000000e-01 : f32
    %495 = vector.broadcast %cst_156 : f32 to vector<8x1xf32>
    %496 = arith.subf %494, %495 : vector<8x1xf32>
    %497 = vector.broadcast %490 : vector<8x1xf32> to vector<8x16xf32>
    %498 = vector.broadcast %447 : vector<1x16xf32> to vector<8x16xf32>
    %499 = arith.subf %497, %498 : vector<8x16xf32>
    %500 = math.absf %499 : vector<8x16xf32>
    %cst_157 = arith.constant 1.000000e+00 : f32
    %501 = vector.broadcast %cst_157 : f32 to vector<8x16xf32>
    %502 = arith.subf %501, %500 : vector<8x16xf32>
    %cst_158 = arith.constant 0.000000e+00 : f32
    %503 = vector.broadcast %cst_158 : f32 to vector<8x16xf32>
    %504 = arith.maximumf %502, %503 : vector<8x16xf32>
    %505 = vector.broadcast %496 : vector<8x1xf32> to vector<8x16xf32>
    %506 = vector.broadcast %448 : vector<1x16xf32> to vector<8x16xf32>
    %507 = arith.subf %505, %506 : vector<8x16xf32>
    %508 = math.absf %507 : vector<8x16xf32>
    %cst_159 = arith.constant 1.000000e+00 : f32
    %509 = vector.broadcast %cst_159 : f32 to vector<8x16xf32>
    %510 = arith.subf %509, %508 : vector<8x16xf32>
    %cst_160 = arith.constant 0.000000e+00 : f32
    %511 = vector.broadcast %cst_160 : f32 to vector<8x16xf32>
    %512 = arith.maximumf %510, %511 : vector<8x16xf32>
    %513 = arith.mulf %504, %512 : vector<8x16xf32>
    %514 = vector.extract_strided_slice %371 {offsets = [0, 3], sizes = [8, 1], strides = [1, 1]} : vector<8x4xf32> to vector<8x1xf32>
    %515 = vector.broadcast %514 : vector<8x1xf32> to vector<8x16xf32>
    %516 = arith.mulf %513, %515 : vector<8x16xf32>
    %517 = arith.addf %484, %516 : vector<8x16xf32>
    %518 = vector.extract_strided_slice %193 {offsets = [64, 8], sizes = [16, 8], strides = [1, 1]} : vector<160x32xf32> to vector<16x8xf32>
    %cst_161 = arith.constant dense<0.000000e+00> : vector<8x8xf32>
    %519 = tpu.matmul %517, %518, %cst_161 {dimension_numbers = #tpu.dot_dimension_numbers<[1], [0], [0], [1], [0, 0, 1, 1], [], []>} : vector<8x16xf32>, vector<16x8xf32>, vector<8x8xf32> -> vector<8x8xf32>
    %520 = arith.addf %446, %519 : vector<8x8xf32>
    %521 = vector.extract_strided_slice %200 {offsets = [0, 8], sizes = [8, 4], strides = [1, 1]} : vector<16x16xf32> to vector<8x4xf32>
    %cst_162 = arith.constant dense<0xFF800000> : vector<8xf32>
    %522 = vector.multi_reduction <maximumf>, %521, %cst_162 [1] : vector<8x4xf32> to vector<8xf32>
    %523 = vector.shape_cast %522 : vector<8xf32> to vector<8x1xf32>
    %524 = vector.broadcast %523 : vector<8x1xf32> to vector<8x4xf32>
    %525 = arith.subf %521, %524 : vector<8x4xf32>
    %526 = math.exp %525 : vector<8x4xf32>
    %cst_163 = arith.constant dense<0.000000e+00> : vector<8xf32>
    %527 = vector.multi_reduction <add>, %526, %cst_163 [1] : vector<8x4xf32> to vector<8xf32>
    %528 = vector.shape_cast %527 : vector<8xf32> to vector<8x1xf32>
    %529 = tpu.reciprocal %528 {approx = true} : vector<8x1xf32> -> vector<8x1xf32>
    %530 = vector.broadcast %529 : vector<8x1xf32> to vector<8x4xf32>
    %531 = arith.mulf %526, %530 : vector<8x4xf32>
    %cst_164 = arith.constant 0.000000e+00 : f32
    %532 = vector.broadcast %cst_164 : f32 to vector<8x8xf32>
    %533 = vector.extract_strided_slice %4 {offsets = [0, 0], sizes = [1, 64], strides = [1, 1]} : vector<1x80xf32> to vector<1x64xf32>
    %534 = vector.extract_strided_slice %5 {offsets = [0, 0], sizes = [1, 64], strides = [1, 1]} : vector<1x80xf32> to vector<1x64xf32>
    %535 = vector.extract_strided_slice %3 {offsets = [0, 0], sizes = [8, 1], strides = [1, 1]} : vector<16x4xf32> to vector<8x1xf32>
    %536 = vector.extract_strided_slice %3 {offsets = [0, 1], sizes = [8, 1], strides = [1, 1]} : vector<16x4xf32> to vector<8x1xf32>
    %cst_165 = arith.constant 0.000000e+00 : f32
    %537 = vector.broadcast %cst_165 : f32 to vector<8x64xf32>
    %cst_166 = arith.constant 8.000000e+00 : f32
    %538 = vector.broadcast %cst_166 : f32 to vector<8x1xf32>
    %539 = arith.mulf %535, %538 : vector<8x1xf32>
    %540 = vector.extract_strided_slice %199 {offsets = [0, 16], sizes = [8, 1], strides = [1, 1]} : vector<16x32xf32> to vector<8x1xf32>
    %541 = arith.addf %539, %540 : vector<8x1xf32>
    %cst_167 = arith.constant 5.000000e-01 : f32
    %542 = vector.broadcast %cst_167 : f32 to vector<8x1xf32>
    %543 = arith.subf %541, %542 : vector<8x1xf32>
    %cst_168 = arith.constant 8.000000e+00 : f32
    %544 = vector.broadcast %cst_168 : f32 to vector<8x1xf32>
    %545 = arith.mulf %536, %544 : vector<8x1xf32>
    %546 = vector.extract_strided_slice %199 {offsets = [0, 17], sizes = [8, 1], strides = [1, 1]} : vector<16x32xf32> to vector<8x1xf32>
    %547 = arith.addf %545, %546 : vector<8x1xf32>
    %cst_169 = arith.constant 5.000000e-01 : f32
    %548 = vector.broadcast %cst_169 : f32 to vector<8x1xf32>
    %549 = arith.subf %547, %548 : vector<8x1xf32>
    %550 = vector.broadcast %543 : vector<8x1xf32> to vector<8x64xf32>
    %551 = vector.broadcast %533 : vector<1x64xf32> to vector<8x64xf32>
    %552 = arith.subf %550, %551 : vector<8x64xf32>
    %553 = math.absf %552 : vector<8x64xf32>
    %cst_170 = arith.constant 1.000000e+00 : f32
    %554 = vector.broadcast %cst_170 : f32 to vector<8x64xf32>
    %555 = arith.subf %554, %553 : vector<8x64xf32>
    %cst_171 = arith.constant 0.000000e+00 : f32
    %556 = vector.broadcast %cst_171 : f32 to vector<8x64xf32>
    %557 = arith.maximumf %555, %556 : vector<8x64xf32>
    %558 = vector.broadcast %549 : vector<8x1xf32> to vector<8x64xf32>
    %559 = vector.broadcast %534 : vector<1x64xf32> to vector<8x64xf32>
    %560 = arith.subf %558, %559 : vector<8x64xf32>
    %561 = math.absf %560 : vector<8x64xf32>
    %cst_172 = arith.constant 1.000000e+00 : f32
    %562 = vector.broadcast %cst_172 : f32 to vector<8x64xf32>
    %563 = arith.subf %562, %561 : vector<8x64xf32>
    %cst_173 = arith.constant 0.000000e+00 : f32
    %564 = vector.broadcast %cst_173 : f32 to vector<8x64xf32>
    %565 = arith.maximumf %563, %564 : vector<8x64xf32>
    %566 = arith.mulf %557, %565 : vector<8x64xf32>
    %567 = vector.extract_strided_slice %531 {offsets = [0, 0], sizes = [8, 1], strides = [1, 1]} : vector<8x4xf32> to vector<8x1xf32>
    %568 = vector.broadcast %567 : vector<8x1xf32> to vector<8x64xf32>
    %569 = arith.mulf %566, %568 : vector<8x64xf32>
    %570 = arith.addf %537, %569 : vector<8x64xf32>
    %cst_174 = arith.constant 8.000000e+00 : f32
    %571 = vector.broadcast %cst_174 : f32 to vector<8x1xf32>
    %572 = arith.mulf %535, %571 : vector<8x1xf32>
    %573 = vector.extract_strided_slice %199 {offsets = [0, 18], sizes = [8, 1], strides = [1, 1]} : vector<16x32xf32> to vector<8x1xf32>
    %574 = arith.addf %572, %573 : vector<8x1xf32>
    %cst_175 = arith.constant 5.000000e-01 : f32
    %575 = vector.broadcast %cst_175 : f32 to vector<8x1xf32>
    %576 = arith.subf %574, %575 : vector<8x1xf32>
    %cst_176 = arith.constant 8.000000e+00 : f32
    %577 = vector.broadcast %cst_176 : f32 to vector<8x1xf32>
    %578 = arith.mulf %536, %577 : vector<8x1xf32>
    %579 = vector.extract_strided_slice %199 {offsets = [0, 19], sizes = [8, 1], strides = [1, 1]} : vector<16x32xf32> to vector<8x1xf32>
    %580 = arith.addf %578, %579 : vector<8x1xf32>
    %cst_177 = arith.constant 5.000000e-01 : f32
    %581 = vector.broadcast %cst_177 : f32 to vector<8x1xf32>
    %582 = arith.subf %580, %581 : vector<8x1xf32>
    %583 = vector.broadcast %576 : vector<8x1xf32> to vector<8x64xf32>
    %584 = vector.broadcast %533 : vector<1x64xf32> to vector<8x64xf32>
    %585 = arith.subf %583, %584 : vector<8x64xf32>
    %586 = math.absf %585 : vector<8x64xf32>
    %cst_178 = arith.constant 1.000000e+00 : f32
    %587 = vector.broadcast %cst_178 : f32 to vector<8x64xf32>
    %588 = arith.subf %587, %586 : vector<8x64xf32>
    %cst_179 = arith.constant 0.000000e+00 : f32
    %589 = vector.broadcast %cst_179 : f32 to vector<8x64xf32>
    %590 = arith.maximumf %588, %589 : vector<8x64xf32>
    %591 = vector.broadcast %582 : vector<8x1xf32> to vector<8x64xf32>
    %592 = vector.broadcast %534 : vector<1x64xf32> to vector<8x64xf32>
    %593 = arith.subf %591, %592 : vector<8x64xf32>
    %594 = math.absf %593 : vector<8x64xf32>
    %cst_180 = arith.constant 1.000000e+00 : f32
    %595 = vector.broadcast %cst_180 : f32 to vector<8x64xf32>
    %596 = arith.subf %595, %594 : vector<8x64xf32>
    %cst_181 = arith.constant 0.000000e+00 : f32
    %597 = vector.broadcast %cst_181 : f32 to vector<8x64xf32>
    %598 = arith.maximumf %596, %597 : vector<8x64xf32>
    %599 = arith.mulf %590, %598 : vector<8x64xf32>
    %600 = vector.extract_strided_slice %531 {offsets = [0, 1], sizes = [8, 1], strides = [1, 1]} : vector<8x4xf32> to vector<8x1xf32>
    %601 = vector.broadcast %600 : vector<8x1xf32> to vector<8x64xf32>
    %602 = arith.mulf %599, %601 : vector<8x64xf32>
    %603 = arith.addf %570, %602 : vector<8x64xf32>
    %604 = vector.extract_strided_slice %193 {offsets = [0, 16], sizes = [64, 8], strides = [1, 1]} : vector<160x32xf32> to vector<64x8xf32>
    %cst_182 = arith.constant dense<0.000000e+00> : vector<8x8xf32>
    %605 = tpu.matmul %603, %604, %cst_182 {dimension_numbers = #tpu.dot_dimension_numbers<[1], [0], [0], [1], [0, 0, 1, 1], [], []>} : vector<8x64xf32>, vector<64x8xf32>, vector<8x8xf32> -> vector<8x8xf32>
    %606 = arith.addf %532, %605 : vector<8x8xf32>
    %607 = vector.extract_strided_slice %4 {offsets = [0, 64], sizes = [1, 16], strides = [1, 1]} : vector<1x80xf32> to vector<1x16xf32>
    %608 = vector.extract_strided_slice %5 {offsets = [0, 64], sizes = [1, 16], strides = [1, 1]} : vector<1x80xf32> to vector<1x16xf32>
    %609 = vector.extract_strided_slice %3 {offsets = [0, 2], sizes = [8, 1], strides = [1, 1]} : vector<16x4xf32> to vector<8x1xf32>
    %610 = vector.extract_strided_slice %3 {offsets = [0, 3], sizes = [8, 1], strides = [1, 1]} : vector<16x4xf32> to vector<8x1xf32>
    %cst_183 = arith.constant 0.000000e+00 : f32
    %611 = vector.broadcast %cst_183 : f32 to vector<8x16xf32>
    %cst_184 = arith.constant 4.000000e+00 : f32
    %612 = vector.broadcast %cst_184 : f32 to vector<8x1xf32>
    %613 = arith.mulf %609, %612 : vector<8x1xf32>
    %614 = vector.extract_strided_slice %199 {offsets = [0, 20], sizes = [8, 1], strides = [1, 1]} : vector<16x32xf32> to vector<8x1xf32>
    %615 = arith.addf %613, %614 : vector<8x1xf32>
    %cst_185 = arith.constant 5.000000e-01 : f32
    %616 = vector.broadcast %cst_185 : f32 to vector<8x1xf32>
    %617 = arith.subf %615, %616 : vector<8x1xf32>
    %cst_186 = arith.constant 4.000000e+00 : f32
    %618 = vector.broadcast %cst_186 : f32 to vector<8x1xf32>
    %619 = arith.mulf %610, %618 : vector<8x1xf32>
    %620 = vector.extract_strided_slice %199 {offsets = [0, 21], sizes = [8, 1], strides = [1, 1]} : vector<16x32xf32> to vector<8x1xf32>
    %621 = arith.addf %619, %620 : vector<8x1xf32>
    %cst_187 = arith.constant 5.000000e-01 : f32
    %622 = vector.broadcast %cst_187 : f32 to vector<8x1xf32>
    %623 = arith.subf %621, %622 : vector<8x1xf32>
    %624 = vector.broadcast %617 : vector<8x1xf32> to vector<8x16xf32>
    %625 = vector.broadcast %607 : vector<1x16xf32> to vector<8x16xf32>
    %626 = arith.subf %624, %625 : vector<8x16xf32>
    %627 = math.absf %626 : vector<8x16xf32>
    %cst_188 = arith.constant 1.000000e+00 : f32
    %628 = vector.broadcast %cst_188 : f32 to vector<8x16xf32>
    %629 = arith.subf %628, %627 : vector<8x16xf32>
    %cst_189 = arith.constant 0.000000e+00 : f32
    %630 = vector.broadcast %cst_189 : f32 to vector<8x16xf32>
    %631 = arith.maximumf %629, %630 : vector<8x16xf32>
    %632 = vector.broadcast %623 : vector<8x1xf32> to vector<8x16xf32>
    %633 = vector.broadcast %608 : vector<1x16xf32> to vector<8x16xf32>
    %634 = arith.subf %632, %633 : vector<8x16xf32>
    %635 = math.absf %634 : vector<8x16xf32>
    %cst_190 = arith.constant 1.000000e+00 : f32
    %636 = vector.broadcast %cst_190 : f32 to vector<8x16xf32>
    %637 = arith.subf %636, %635 : vector<8x16xf32>
    %cst_191 = arith.constant 0.000000e+00 : f32
    %638 = vector.broadcast %cst_191 : f32 to vector<8x16xf32>
    %639 = arith.maximumf %637, %638 : vector<8x16xf32>
    %640 = arith.mulf %631, %639 : vector<8x16xf32>
    %641 = vector.extract_strided_slice %531 {offsets = [0, 2], sizes = [8, 1], strides = [1, 1]} : vector<8x4xf32> to vector<8x1xf32>
    %642 = vector.broadcast %641 : vector<8x1xf32> to vector<8x16xf32>
    %643 = arith.mulf %640, %642 : vector<8x16xf32>
    %644 = arith.addf %611, %643 : vector<8x16xf32>
    %cst_192 = arith.constant 4.000000e+00 : f32
    %645 = vector.broadcast %cst_192 : f32 to vector<8x1xf32>
    %646 = arith.mulf %609, %645 : vector<8x1xf32>
    %647 = vector.extract_strided_slice %199 {offsets = [0, 22], sizes = [8, 1], strides = [1, 1]} : vector<16x32xf32> to vector<8x1xf32>
    %648 = arith.addf %646, %647 : vector<8x1xf32>
    %cst_193 = arith.constant 5.000000e-01 : f32
    %649 = vector.broadcast %cst_193 : f32 to vector<8x1xf32>
    %650 = arith.subf %648, %649 : vector<8x1xf32>
    %cst_194 = arith.constant 4.000000e+00 : f32
    %651 = vector.broadcast %cst_194 : f32 to vector<8x1xf32>
    %652 = arith.mulf %610, %651 : vector<8x1xf32>
    %653 = vector.extract_strided_slice %199 {offsets = [0, 23], sizes = [8, 1], strides = [1, 1]} : vector<16x32xf32> to vector<8x1xf32>
    %654 = arith.addf %652, %653 : vector<8x1xf32>
    %cst_195 = arith.constant 5.000000e-01 : f32
    %655 = vector.broadcast %cst_195 : f32 to vector<8x1xf32>
    %656 = arith.subf %654, %655 : vector<8x1xf32>
    %657 = vector.broadcast %650 : vector<8x1xf32> to vector<8x16xf32>
    %658 = vector.broadcast %607 : vector<1x16xf32> to vector<8x16xf32>
    %659 = arith.subf %657, %658 : vector<8x16xf32>
    %660 = math.absf %659 : vector<8x16xf32>
    %cst_196 = arith.constant 1.000000e+00 : f32
    %661 = vector.broadcast %cst_196 : f32 to vector<8x16xf32>
    %662 = arith.subf %661, %660 : vector<8x16xf32>
    %cst_197 = arith.constant 0.000000e+00 : f32
    %663 = vector.broadcast %cst_197 : f32 to vector<8x16xf32>
    %664 = arith.maximumf %662, %663 : vector<8x16xf32>
    %665 = vector.broadcast %656 : vector<8x1xf32> to vector<8x16xf32>
    %666 = vector.broadcast %608 : vector<1x16xf32> to vector<8x16xf32>
    %667 = arith.subf %665, %666 : vector<8x16xf32>
    %668 = math.absf %667 : vector<8x16xf32>
    %cst_198 = arith.constant 1.000000e+00 : f32
    %669 = vector.broadcast %cst_198 : f32 to vector<8x16xf32>
    %670 = arith.subf %669, %668 : vector<8x16xf32>
    %cst_199 = arith.constant 0.000000e+00 : f32
    %671 = vector.broadcast %cst_199 : f32 to vector<8x16xf32>
    %672 = arith.maximumf %670, %671 : vector<8x16xf32>
    %673 = arith.mulf %664, %672 : vector<8x16xf32>
    %674 = vector.extract_strided_slice %531 {offsets = [0, 3], sizes = [8, 1], strides = [1, 1]} : vector<8x4xf32> to vector<8x1xf32>
    %675 = vector.broadcast %674 : vector<8x1xf32> to vector<8x16xf32>
    %676 = arith.mulf %673, %675 : vector<8x16xf32>
    %677 = arith.addf %644, %676 : vector<8x16xf32>
    %678 = vector.extract_strided_slice %193 {offsets = [64, 16], sizes = [16, 8], strides = [1, 1]} : vector<160x32xf32> to vector<16x8xf32>
    %cst_200 = arith.constant dense<0.000000e+00> : vector<8x8xf32>
    %679 = tpu.matmul %677, %678, %cst_200 {dimension_numbers = #tpu.dot_dimension_numbers<[1], [0], [0], [1], [0, 0, 1, 1], [], []>} : vector<8x16xf32>, vector<16x8xf32>, vector<8x8xf32> -> vector<8x8xf32>
    %680 = arith.addf %606, %679 : vector<8x8xf32>
    %681 = vector.extract_strided_slice %200 {offsets = [0, 12], sizes = [8, 4], strides = [1, 1]} : vector<16x16xf32> to vector<8x4xf32>
    %cst_201 = arith.constant dense<0xFF800000> : vector<8xf32>
    %682 = vector.multi_reduction <maximumf>, %681, %cst_201 [1] : vector<8x4xf32> to vector<8xf32>
    %683 = vector.shape_cast %682 : vector<8xf32> to vector<8x1xf32>
    %684 = vector.broadcast %683 : vector<8x1xf32> to vector<8x4xf32>
    %685 = arith.subf %681, %684 : vector<8x4xf32>
    %686 = math.exp %685 : vector<8x4xf32>
    %cst_202 = arith.constant dense<0.000000e+00> : vector<8xf32>
    %687 = vector.multi_reduction <add>, %686, %cst_202 [1] : vector<8x4xf32> to vector<8xf32>
    %688 = vector.shape_cast %687 : vector<8xf32> to vector<8x1xf32>
    %689 = tpu.reciprocal %688 {approx = true} : vector<8x1xf32> -> vector<8x1xf32>
    %690 = vector.broadcast %689 : vector<8x1xf32> to vector<8x4xf32>
    %691 = arith.mulf %686, %690 : vector<8x4xf32>
    %cst_203 = arith.constant 0.000000e+00 : f32
    %692 = vector.broadcast %cst_203 : f32 to vector<8x8xf32>
    %693 = vector.extract_strided_slice %4 {offsets = [0, 0], sizes = [1, 64], strides = [1, 1]} : vector<1x80xf32> to vector<1x64xf32>
    %694 = vector.extract_strided_slice %5 {offsets = [0, 0], sizes = [1, 64], strides = [1, 1]} : vector<1x80xf32> to vector<1x64xf32>
    %695 = vector.extract_strided_slice %3 {offsets = [0, 0], sizes = [8, 1], strides = [1, 1]} : vector<16x4xf32> to vector<8x1xf32>
    %696 = vector.extract_strided_slice %3 {offsets = [0, 1], sizes = [8, 1], strides = [1, 1]} : vector<16x4xf32> to vector<8x1xf32>
    %cst_204 = arith.constant 0.000000e+00 : f32
    %697 = vector.broadcast %cst_204 : f32 to vector<8x64xf32>
    %cst_205 = arith.constant 8.000000e+00 : f32
    %698 = vector.broadcast %cst_205 : f32 to vector<8x1xf32>
    %699 = arith.mulf %695, %698 : vector<8x1xf32>
    %700 = vector.extract_strided_slice %199 {offsets = [0, 24], sizes = [8, 1], strides = [1, 1]} : vector<16x32xf32> to vector<8x1xf32>
    %701 = arith.addf %699, %700 : vector<8x1xf32>
    %cst_206 = arith.constant 5.000000e-01 : f32
    %702 = vector.broadcast %cst_206 : f32 to vector<8x1xf32>
    %703 = arith.subf %701, %702 : vector<8x1xf32>
    %cst_207 = arith.constant 8.000000e+00 : f32
    %704 = vector.broadcast %cst_207 : f32 to vector<8x1xf32>
    %705 = arith.mulf %696, %704 : vector<8x1xf32>
    %706 = vector.extract_strided_slice %199 {offsets = [0, 25], sizes = [8, 1], strides = [1, 1]} : vector<16x32xf32> to vector<8x1xf32>
    %707 = arith.addf %705, %706 : vector<8x1xf32>
    %cst_208 = arith.constant 5.000000e-01 : f32
    %708 = vector.broadcast %cst_208 : f32 to vector<8x1xf32>
    %709 = arith.subf %707, %708 : vector<8x1xf32>
    %710 = vector.broadcast %703 : vector<8x1xf32> to vector<8x64xf32>
    %711 = vector.broadcast %693 : vector<1x64xf32> to vector<8x64xf32>
    %712 = arith.subf %710, %711 : vector<8x64xf32>
    %713 = math.absf %712 : vector<8x64xf32>
    %cst_209 = arith.constant 1.000000e+00 : f32
    %714 = vector.broadcast %cst_209 : f32 to vector<8x64xf32>
    %715 = arith.subf %714, %713 : vector<8x64xf32>
    %cst_210 = arith.constant 0.000000e+00 : f32
    %716 = vector.broadcast %cst_210 : f32 to vector<8x64xf32>
    %717 = arith.maximumf %715, %716 : vector<8x64xf32>
    %718 = vector.broadcast %709 : vector<8x1xf32> to vector<8x64xf32>
    %719 = vector.broadcast %694 : vector<1x64xf32> to vector<8x64xf32>
    %720 = arith.subf %718, %719 : vector<8x64xf32>
    %721 = math.absf %720 : vector<8x64xf32>
    %cst_211 = arith.constant 1.000000e+00 : f32
    %722 = vector.broadcast %cst_211 : f32 to vector<8x64xf32>
    %723 = arith.subf %722, %721 : vector<8x64xf32>
    %cst_212 = arith.constant 0.000000e+00 : f32
    %724 = vector.broadcast %cst_212 : f32 to vector<8x64xf32>
    %725 = arith.maximumf %723, %724 : vector<8x64xf32>
    %726 = arith.mulf %717, %725 : vector<8x64xf32>
    %727 = vector.extract_strided_slice %691 {offsets = [0, 0], sizes = [8, 1], strides = [1, 1]} : vector<8x4xf32> to vector<8x1xf32>
    %728 = vector.broadcast %727 : vector<8x1xf32> to vector<8x64xf32>
    %729 = arith.mulf %726, %728 : vector<8x64xf32>
    %730 = arith.addf %697, %729 : vector<8x64xf32>
    %cst_213 = arith.constant 8.000000e+00 : f32
    %731 = vector.broadcast %cst_213 : f32 to vector<8x1xf32>
    %732 = arith.mulf %695, %731 : vector<8x1xf32>
    %733 = vector.extract_strided_slice %199 {offsets = [0, 26], sizes = [8, 1], strides = [1, 1]} : vector<16x32xf32> to vector<8x1xf32>
    %734 = arith.addf %732, %733 : vector<8x1xf32>
    %cst_214 = arith.constant 5.000000e-01 : f32
    %735 = vector.broadcast %cst_214 : f32 to vector<8x1xf32>
    %736 = arith.subf %734, %735 : vector<8x1xf32>
    %cst_215 = arith.constant 8.000000e+00 : f32
    %737 = vector.broadcast %cst_215 : f32 to vector<8x1xf32>
    %738 = arith.mulf %696, %737 : vector<8x1xf32>
    %739 = vector.extract_strided_slice %199 {offsets = [0, 27], sizes = [8, 1], strides = [1, 1]} : vector<16x32xf32> to vector<8x1xf32>
    %740 = arith.addf %738, %739 : vector<8x1xf32>
    %cst_216 = arith.constant 5.000000e-01 : f32
    %741 = vector.broadcast %cst_216 : f32 to vector<8x1xf32>
    %742 = arith.subf %740, %741 : vector<8x1xf32>
    %743 = vector.broadcast %736 : vector<8x1xf32> to vector<8x64xf32>
    %744 = vector.broadcast %693 : vector<1x64xf32> to vector<8x64xf32>
    %745 = arith.subf %743, %744 : vector<8x64xf32>
    %746 = math.absf %745 : vector<8x64xf32>
    %cst_217 = arith.constant 1.000000e+00 : f32
    %747 = vector.broadcast %cst_217 : f32 to vector<8x64xf32>
    %748 = arith.subf %747, %746 : vector<8x64xf32>
    %cst_218 = arith.constant 0.000000e+00 : f32
    %749 = vector.broadcast %cst_218 : f32 to vector<8x64xf32>
    %750 = arith.maximumf %748, %749 : vector<8x64xf32>
    %751 = vector.broadcast %742 : vector<8x1xf32> to vector<8x64xf32>
    %752 = vector.broadcast %694 : vector<1x64xf32> to vector<8x64xf32>
    %753 = arith.subf %751, %752 : vector<8x64xf32>
    %754 = math.absf %753 : vector<8x64xf32>
    %cst_219 = arith.constant 1.000000e+00 : f32
    %755 = vector.broadcast %cst_219 : f32 to vector<8x64xf32>
    %756 = arith.subf %755, %754 : vector<8x64xf32>
    %cst_220 = arith.constant 0.000000e+00 : f32
    %757 = vector.broadcast %cst_220 : f32 to vector<8x64xf32>
    %758 = arith.maximumf %756, %757 : vector<8x64xf32>
    %759 = arith.mulf %750, %758 : vector<8x64xf32>
    %760 = vector.extract_strided_slice %691 {offsets = [0, 1], sizes = [8, 1], strides = [1, 1]} : vector<8x4xf32> to vector<8x1xf32>
    %761 = vector.broadcast %760 : vector<8x1xf32> to vector<8x64xf32>
    %762 = arith.mulf %759, %761 : vector<8x64xf32>
    %763 = arith.addf %730, %762 : vector<8x64xf32>
    %764 = vector.extract_strided_slice %193 {offsets = [0, 24], sizes = [64, 8], strides = [1, 1]} : vector<160x32xf32> to vector<64x8xf32>
    %cst_221 = arith.constant dense<0.000000e+00> : vector<8x8xf32>
    %765 = tpu.matmul %763, %764, %cst_221 {dimension_numbers = #tpu.dot_dimension_numbers<[1], [0], [0], [1], [0, 0, 1, 1], [], []>} : vector<8x64xf32>, vector<64x8xf32>, vector<8x8xf32> -> vector<8x8xf32>
    %766 = arith.addf %692, %765 : vector<8x8xf32>
    %767 = vector.extract_strided_slice %4 {offsets = [0, 64], sizes = [1, 16], strides = [1, 1]} : vector<1x80xf32> to vector<1x16xf32>
    %768 = vector.extract_strided_slice %5 {offsets = [0, 64], sizes = [1, 16], strides = [1, 1]} : vector<1x80xf32> to vector<1x16xf32>
    %769 = vector.extract_strided_slice %3 {offsets = [0, 2], sizes = [8, 1], strides = [1, 1]} : vector<16x4xf32> to vector<8x1xf32>
    %770 = vector.extract_strided_slice %3 {offsets = [0, 3], sizes = [8, 1], strides = [1, 1]} : vector<16x4xf32> to vector<8x1xf32>
    %cst_222 = arith.constant 0.000000e+00 : f32
    %771 = vector.broadcast %cst_222 : f32 to vector<8x16xf32>
    %cst_223 = arith.constant 4.000000e+00 : f32
    %772 = vector.broadcast %cst_223 : f32 to vector<8x1xf32>
    %773 = arith.mulf %769, %772 : vector<8x1xf32>
    %774 = vector.extract_strided_slice %199 {offsets = [0, 28], sizes = [8, 1], strides = [1, 1]} : vector<16x32xf32> to vector<8x1xf32>
    %775 = arith.addf %773, %774 : vector<8x1xf32>
    %cst_224 = arith.constant 5.000000e-01 : f32
    %776 = vector.broadcast %cst_224 : f32 to vector<8x1xf32>
    %777 = arith.subf %775, %776 : vector<8x1xf32>
    %cst_225 = arith.constant 4.000000e+00 : f32
    %778 = vector.broadcast %cst_225 : f32 to vector<8x1xf32>
    %779 = arith.mulf %770, %778 : vector<8x1xf32>
    %780 = vector.extract_strided_slice %199 {offsets = [0, 29], sizes = [8, 1], strides = [1, 1]} : vector<16x32xf32> to vector<8x1xf32>
    %781 = arith.addf %779, %780 : vector<8x1xf32>
    %cst_226 = arith.constant 5.000000e-01 : f32
    %782 = vector.broadcast %cst_226 : f32 to vector<8x1xf32>
    %783 = arith.subf %781, %782 : vector<8x1xf32>
    %784 = vector.broadcast %777 : vector<8x1xf32> to vector<8x16xf32>
    %785 = vector.broadcast %767 : vector<1x16xf32> to vector<8x16xf32>
    %786 = arith.subf %784, %785 : vector<8x16xf32>
    %787 = math.absf %786 : vector<8x16xf32>
    %cst_227 = arith.constant 1.000000e+00 : f32
    %788 = vector.broadcast %cst_227 : f32 to vector<8x16xf32>
    %789 = arith.subf %788, %787 : vector<8x16xf32>
    %cst_228 = arith.constant 0.000000e+00 : f32
    %790 = vector.broadcast %cst_228 : f32 to vector<8x16xf32>
    %791 = arith.maximumf %789, %790 : vector<8x16xf32>
    %792 = vector.broadcast %783 : vector<8x1xf32> to vector<8x16xf32>
    %793 = vector.broadcast %768 : vector<1x16xf32> to vector<8x16xf32>
    %794 = arith.subf %792, %793 : vector<8x16xf32>
    %795 = math.absf %794 : vector<8x16xf32>
    %cst_229 = arith.constant 1.000000e+00 : f32
    %796 = vector.broadcast %cst_229 : f32 to vector<8x16xf32>
    %797 = arith.subf %796, %795 : vector<8x16xf32>
    %cst_230 = arith.constant 0.000000e+00 : f32
    %798 = vector.broadcast %cst_230 : f32 to vector<8x16xf32>
    %799 = arith.maximumf %797, %798 : vector<8x16xf32>
    %800 = arith.mulf %791, %799 : vector<8x16xf32>
    %801 = vector.extract_strided_slice %691 {offsets = [0, 2], sizes = [8, 1], strides = [1, 1]} : vector<8x4xf32> to vector<8x1xf32>
    %802 = vector.broadcast %801 : vector<8x1xf32> to vector<8x16xf32>
    %803 = arith.mulf %800, %802 : vector<8x16xf32>
    %804 = arith.addf %771, %803 : vector<8x16xf32>
    %cst_231 = arith.constant 4.000000e+00 : f32
    %805 = vector.broadcast %cst_231 : f32 to vector<8x1xf32>
    %806 = arith.mulf %769, %805 : vector<8x1xf32>
    %807 = vector.extract_strided_slice %199 {offsets = [0, 30], sizes = [8, 1], strides = [1, 1]} : vector<16x32xf32> to vector<8x1xf32>
    %808 = arith.addf %806, %807 : vector<8x1xf32>
    %cst_232 = arith.constant 5.000000e-01 : f32
    %809 = vector.broadcast %cst_232 : f32 to vector<8x1xf32>
    %810 = arith.subf %808, %809 : vector<8x1xf32>
    %cst_233 = arith.constant 4.000000e+00 : f32
    %811 = vector.broadcast %cst_233 : f32 to vector<8x1xf32>
    %812 = arith.mulf %770, %811 : vector<8x1xf32>
    %813 = vector.extract_strided_slice %199 {offsets = [0, 31], sizes = [8, 1], strides = [1, 1]} : vector<16x32xf32> to vector<8x1xf32>
    %814 = arith.addf %812, %813 : vector<8x1xf32>
    %cst_234 = arith.constant 5.000000e-01 : f32
    %815 = vector.broadcast %cst_234 : f32 to vector<8x1xf32>
    %816 = arith.subf %814, %815 : vector<8x1xf32>
    %817 = vector.broadcast %810 : vector<8x1xf32> to vector<8x16xf32>
    %818 = vector.broadcast %767 : vector<1x16xf32> to vector<8x16xf32>
    %819 = arith.subf %817, %818 : vector<8x16xf32>
    %820 = math.absf %819 : vector<8x16xf32>
    %cst_235 = arith.constant 1.000000e+00 : f32
    %821 = vector.broadcast %cst_235 : f32 to vector<8x16xf32>
    %822 = arith.subf %821, %820 : vector<8x16xf32>
    %cst_236 = arith.constant 0.000000e+00 : f32
    %823 = vector.broadcast %cst_236 : f32 to vector<8x16xf32>
    %824 = arith.maximumf %822, %823 : vector<8x16xf32>
    %825 = vector.broadcast %816 : vector<8x1xf32> to vector<8x16xf32>
    %826 = vector.broadcast %768 : vector<1x16xf32> to vector<8x16xf32>
    %827 = arith.subf %825, %826 : vector<8x16xf32>
    %828 = math.absf %827 : vector<8x16xf32>
    %cst_237 = arith.constant 1.000000e+00 : f32
    %829 = vector.broadcast %cst_237 : f32 to vector<8x16xf32>
    %830 = arith.subf %829, %828 : vector<8x16xf32>
    %cst_238 = arith.constant 0.000000e+00 : f32
    %831 = vector.broadcast %cst_238 : f32 to vector<8x16xf32>
    %832 = arith.maximumf %830, %831 : vector<8x16xf32>
    %833 = arith.mulf %824, %832 : vector<8x16xf32>
    %834 = vector.extract_strided_slice %691 {offsets = [0, 3], sizes = [8, 1], strides = [1, 1]} : vector<8x4xf32> to vector<8x1xf32>
    %835 = vector.broadcast %834 : vector<8x1xf32> to vector<8x16xf32>
    %836 = arith.mulf %833, %835 : vector<8x16xf32>
    %837 = arith.addf %804, %836 : vector<8x16xf32>
    %838 = vector.extract_strided_slice %193 {offsets = [64, 24], sizes = [16, 8], strides = [1, 1]} : vector<160x32xf32> to vector<16x8xf32>
    %cst_239 = arith.constant dense<0.000000e+00> : vector<8x8xf32>
    %839 = tpu.matmul %837, %838, %cst_239 {dimension_numbers = #tpu.dot_dimension_numbers<[1], [0], [0], [1], [0, 0, 1, 1], [], []>} : vector<8x16xf32>, vector<16x8xf32>, vector<8x8xf32> -> vector<8x8xf32>
    %840 = arith.addf %766, %839 : vector<8x8xf32>
    %841 = tpu.concatenate %360, %520, %680, %840 in 1 : vector<8x8xf32>, vector<8x8xf32>, vector<8x8xf32>, vector<8x8xf32> -> vector<8x32xf32>
    %842 = vector.extract_strided_slice %200 {offsets = [8, 0], sizes = [8, 4], strides = [1, 1]} : vector<16x16xf32> to vector<8x4xf32>
    %cst_240 = arith.constant dense<0xFF800000> : vector<8xf32>
    %843 = vector.multi_reduction <maximumf>, %842, %cst_240 [1] : vector<8x4xf32> to vector<8xf32>
    %844 = vector.shape_cast %843 : vector<8xf32> to vector<8x1xf32>
    %845 = vector.broadcast %844 : vector<8x1xf32> to vector<8x4xf32>
    %846 = arith.subf %842, %845 : vector<8x4xf32>
    %847 = math.exp %846 : vector<8x4xf32>
    %cst_241 = arith.constant dense<0.000000e+00> : vector<8xf32>
    %848 = vector.multi_reduction <add>, %847, %cst_241 [1] : vector<8x4xf32> to vector<8xf32>
    %849 = vector.shape_cast %848 : vector<8xf32> to vector<8x1xf32>
    %850 = tpu.reciprocal %849 {approx = true} : vector<8x1xf32> -> vector<8x1xf32>
    %851 = vector.broadcast %850 : vector<8x1xf32> to vector<8x4xf32>
    %852 = arith.mulf %847, %851 : vector<8x4xf32>
    %cst_242 = arith.constant 0.000000e+00 : f32
    %853 = vector.broadcast %cst_242 : f32 to vector<8x8xf32>
    %854 = vector.extract_strided_slice %4 {offsets = [0, 0], sizes = [1, 64], strides = [1, 1]} : vector<1x80xf32> to vector<1x64xf32>
    %855 = vector.extract_strided_slice %5 {offsets = [0, 0], sizes = [1, 64], strides = [1, 1]} : vector<1x80xf32> to vector<1x64xf32>
    %856 = vector.extract_strided_slice %3 {offsets = [8, 0], sizes = [8, 1], strides = [1, 1]} : vector<16x4xf32> to vector<8x1xf32>
    %857 = vector.extract_strided_slice %3 {offsets = [8, 1], sizes = [8, 1], strides = [1, 1]} : vector<16x4xf32> to vector<8x1xf32>
    %cst_243 = arith.constant 0.000000e+00 : f32
    %858 = vector.broadcast %cst_243 : f32 to vector<8x64xf32>
    %cst_244 = arith.constant 8.000000e+00 : f32
    %859 = vector.broadcast %cst_244 : f32 to vector<8x1xf32>
    %860 = arith.mulf %856, %859 : vector<8x1xf32>
    %861 = vector.extract_strided_slice %199 {offsets = [8, 0], sizes = [8, 1], strides = [1, 1]} : vector<16x32xf32> to vector<8x1xf32>
    %862 = arith.addf %860, %861 : vector<8x1xf32>
    %cst_245 = arith.constant 5.000000e-01 : f32
    %863 = vector.broadcast %cst_245 : f32 to vector<8x1xf32>
    %864 = arith.subf %862, %863 : vector<8x1xf32>
    %cst_246 = arith.constant 8.000000e+00 : f32
    %865 = vector.broadcast %cst_246 : f32 to vector<8x1xf32>
    %866 = arith.mulf %857, %865 : vector<8x1xf32>
    %867 = vector.extract_strided_slice %199 {offsets = [8, 1], sizes = [8, 1], strides = [1, 1]} : vector<16x32xf32> to vector<8x1xf32>
    %868 = arith.addf %866, %867 : vector<8x1xf32>
    %cst_247 = arith.constant 5.000000e-01 : f32
    %869 = vector.broadcast %cst_247 : f32 to vector<8x1xf32>
    %870 = arith.subf %868, %869 : vector<8x1xf32>
    %871 = vector.broadcast %864 : vector<8x1xf32> to vector<8x64xf32>
    %872 = vector.broadcast %854 : vector<1x64xf32> to vector<8x64xf32>
    %873 = arith.subf %871, %872 : vector<8x64xf32>
    %874 = math.absf %873 : vector<8x64xf32>
    %cst_248 = arith.constant 1.000000e+00 : f32
    %875 = vector.broadcast %cst_248 : f32 to vector<8x64xf32>
    %876 = arith.subf %875, %874 : vector<8x64xf32>
    %cst_249 = arith.constant 0.000000e+00 : f32
    %877 = vector.broadcast %cst_249 : f32 to vector<8x64xf32>
    %878 = arith.maximumf %876, %877 : vector<8x64xf32>
    %879 = vector.broadcast %870 : vector<8x1xf32> to vector<8x64xf32>
    %880 = vector.broadcast %855 : vector<1x64xf32> to vector<8x64xf32>
    %881 = arith.subf %879, %880 : vector<8x64xf32>
    %882 = math.absf %881 : vector<8x64xf32>
    %cst_250 = arith.constant 1.000000e+00 : f32
    %883 = vector.broadcast %cst_250 : f32 to vector<8x64xf32>
    %884 = arith.subf %883, %882 : vector<8x64xf32>
    %cst_251 = arith.constant 0.000000e+00 : f32
    %885 = vector.broadcast %cst_251 : f32 to vector<8x64xf32>
    %886 = arith.maximumf %884, %885 : vector<8x64xf32>
    %887 = arith.mulf %878, %886 : vector<8x64xf32>
    %888 = vector.extract_strided_slice %852 {offsets = [0, 0], sizes = [8, 1], strides = [1, 1]} : vector<8x4xf32> to vector<8x1xf32>
    %889 = vector.broadcast %888 : vector<8x1xf32> to vector<8x64xf32>
    %890 = arith.mulf %887, %889 : vector<8x64xf32>
    %891 = arith.addf %858, %890 : vector<8x64xf32>
    %cst_252 = arith.constant 8.000000e+00 : f32
    %892 = vector.broadcast %cst_252 : f32 to vector<8x1xf32>
    %893 = arith.mulf %856, %892 : vector<8x1xf32>
    %894 = vector.extract_strided_slice %199 {offsets = [8, 2], sizes = [8, 1], strides = [1, 1]} : vector<16x32xf32> to vector<8x1xf32>
    %895 = arith.addf %893, %894 : vector<8x1xf32>
    %cst_253 = arith.constant 5.000000e-01 : f32
    %896 = vector.broadcast %cst_253 : f32 to vector<8x1xf32>
    %897 = arith.subf %895, %896 : vector<8x1xf32>
    %cst_254 = arith.constant 8.000000e+00 : f32
    %898 = vector.broadcast %cst_254 : f32 to vector<8x1xf32>
    %899 = arith.mulf %857, %898 : vector<8x1xf32>
    %900 = vector.extract_strided_slice %199 {offsets = [8, 3], sizes = [8, 1], strides = [1, 1]} : vector<16x32xf32> to vector<8x1xf32>
    %901 = arith.addf %899, %900 : vector<8x1xf32>
    %cst_255 = arith.constant 5.000000e-01 : f32
    %902 = vector.broadcast %cst_255 : f32 to vector<8x1xf32>
    %903 = arith.subf %901, %902 : vector<8x1xf32>
    %904 = vector.broadcast %897 : vector<8x1xf32> to vector<8x64xf32>
    %905 = vector.broadcast %854 : vector<1x64xf32> to vector<8x64xf32>
    %906 = arith.subf %904, %905 : vector<8x64xf32>
    %907 = math.absf %906 : vector<8x64xf32>
    %cst_256 = arith.constant 1.000000e+00 : f32
    %908 = vector.broadcast %cst_256 : f32 to vector<8x64xf32>
    %909 = arith.subf %908, %907 : vector<8x64xf32>
    %cst_257 = arith.constant 0.000000e+00 : f32
    %910 = vector.broadcast %cst_257 : f32 to vector<8x64xf32>
    %911 = arith.maximumf %909, %910 : vector<8x64xf32>
    %912 = vector.broadcast %903 : vector<8x1xf32> to vector<8x64xf32>
    %913 = vector.broadcast %855 : vector<1x64xf32> to vector<8x64xf32>
    %914 = arith.subf %912, %913 : vector<8x64xf32>
    %915 = math.absf %914 : vector<8x64xf32>
    %cst_258 = arith.constant 1.000000e+00 : f32
    %916 = vector.broadcast %cst_258 : f32 to vector<8x64xf32>
    %917 = arith.subf %916, %915 : vector<8x64xf32>
    %cst_259 = arith.constant 0.000000e+00 : f32
    %918 = vector.broadcast %cst_259 : f32 to vector<8x64xf32>
    %919 = arith.maximumf %917, %918 : vector<8x64xf32>
    %920 = arith.mulf %911, %919 : vector<8x64xf32>
    %921 = vector.extract_strided_slice %852 {offsets = [0, 1], sizes = [8, 1], strides = [1, 1]} : vector<8x4xf32> to vector<8x1xf32>
    %922 = vector.broadcast %921 : vector<8x1xf32> to vector<8x64xf32>
    %923 = arith.mulf %920, %922 : vector<8x64xf32>
    %924 = arith.addf %891, %923 : vector<8x64xf32>
    %925 = vector.extract_strided_slice %193 {offsets = [80, 0], sizes = [64, 8], strides = [1, 1]} : vector<160x32xf32> to vector<64x8xf32>
    %cst_260 = arith.constant dense<0.000000e+00> : vector<8x8xf32>
    %926 = tpu.matmul %924, %925, %cst_260 {dimension_numbers = #tpu.dot_dimension_numbers<[1], [0], [0], [1], [0, 0, 1, 1], [], []>} : vector<8x64xf32>, vector<64x8xf32>, vector<8x8xf32> -> vector<8x8xf32>
    %927 = arith.addf %853, %926 : vector<8x8xf32>
    %928 = vector.extract_strided_slice %4 {offsets = [0, 64], sizes = [1, 16], strides = [1, 1]} : vector<1x80xf32> to vector<1x16xf32>
    %929 = vector.extract_strided_slice %5 {offsets = [0, 64], sizes = [1, 16], strides = [1, 1]} : vector<1x80xf32> to vector<1x16xf32>
    %930 = vector.extract_strided_slice %3 {offsets = [8, 2], sizes = [8, 1], strides = [1, 1]} : vector<16x4xf32> to vector<8x1xf32>
    %931 = vector.extract_strided_slice %3 {offsets = [8, 3], sizes = [8, 1], strides = [1, 1]} : vector<16x4xf32> to vector<8x1xf32>
    %cst_261 = arith.constant 0.000000e+00 : f32
    %932 = vector.broadcast %cst_261 : f32 to vector<8x16xf32>
    %cst_262 = arith.constant 4.000000e+00 : f32
    %933 = vector.broadcast %cst_262 : f32 to vector<8x1xf32>
    %934 = arith.mulf %930, %933 : vector<8x1xf32>
    %935 = vector.extract_strided_slice %199 {offsets = [8, 4], sizes = [8, 1], strides = [1, 1]} : vector<16x32xf32> to vector<8x1xf32>
    %936 = arith.addf %934, %935 : vector<8x1xf32>
    %cst_263 = arith.constant 5.000000e-01 : f32
    %937 = vector.broadcast %cst_263 : f32 to vector<8x1xf32>
    %938 = arith.subf %936, %937 : vector<8x1xf32>
    %cst_264 = arith.constant 4.000000e+00 : f32
    %939 = vector.broadcast %cst_264 : f32 to vector<8x1xf32>
    %940 = arith.mulf %931, %939 : vector<8x1xf32>
    %941 = vector.extract_strided_slice %199 {offsets = [8, 5], sizes = [8, 1], strides = [1, 1]} : vector<16x32xf32> to vector<8x1xf32>
    %942 = arith.addf %940, %941 : vector<8x1xf32>
    %cst_265 = arith.constant 5.000000e-01 : f32
    %943 = vector.broadcast %cst_265 : f32 to vector<8x1xf32>
    %944 = arith.subf %942, %943 : vector<8x1xf32>
    %945 = vector.broadcast %938 : vector<8x1xf32> to vector<8x16xf32>
    %946 = vector.broadcast %928 : vector<1x16xf32> to vector<8x16xf32>
    %947 = arith.subf %945, %946 : vector<8x16xf32>
    %948 = math.absf %947 : vector<8x16xf32>
    %cst_266 = arith.constant 1.000000e+00 : f32
    %949 = vector.broadcast %cst_266 : f32 to vector<8x16xf32>
    %950 = arith.subf %949, %948 : vector<8x16xf32>
    %cst_267 = arith.constant 0.000000e+00 : f32
    %951 = vector.broadcast %cst_267 : f32 to vector<8x16xf32>
    %952 = arith.maximumf %950, %951 : vector<8x16xf32>
    %953 = vector.broadcast %944 : vector<8x1xf32> to vector<8x16xf32>
    %954 = vector.broadcast %929 : vector<1x16xf32> to vector<8x16xf32>
    %955 = arith.subf %953, %954 : vector<8x16xf32>
    %956 = math.absf %955 : vector<8x16xf32>
    %cst_268 = arith.constant 1.000000e+00 : f32
    %957 = vector.broadcast %cst_268 : f32 to vector<8x16xf32>
    %958 = arith.subf %957, %956 : vector<8x16xf32>
    %cst_269 = arith.constant 0.000000e+00 : f32
    %959 = vector.broadcast %cst_269 : f32 to vector<8x16xf32>
    %960 = arith.maximumf %958, %959 : vector<8x16xf32>
    %961 = arith.mulf %952, %960 : vector<8x16xf32>
    %962 = vector.extract_strided_slice %852 {offsets = [0, 2], sizes = [8, 1], strides = [1, 1]} : vector<8x4xf32> to vector<8x1xf32>
    %963 = vector.broadcast %962 : vector<8x1xf32> to vector<8x16xf32>
    %964 = arith.mulf %961, %963 : vector<8x16xf32>
    %965 = arith.addf %932, %964 : vector<8x16xf32>
    %cst_270 = arith.constant 4.000000e+00 : f32
    %966 = vector.broadcast %cst_270 : f32 to vector<8x1xf32>
    %967 = arith.mulf %930, %966 : vector<8x1xf32>
    %968 = vector.extract_strided_slice %199 {offsets = [8, 6], sizes = [8, 1], strides = [1, 1]} : vector<16x32xf32> to vector<8x1xf32>
    %969 = arith.addf %967, %968 : vector<8x1xf32>
    %cst_271 = arith.constant 5.000000e-01 : f32
    %970 = vector.broadcast %cst_271 : f32 to vector<8x1xf32>
    %971 = arith.subf %969, %970 : vector<8x1xf32>
    %cst_272 = arith.constant 4.000000e+00 : f32
    %972 = vector.broadcast %cst_272 : f32 to vector<8x1xf32>
    %973 = arith.mulf %931, %972 : vector<8x1xf32>
    %974 = vector.extract_strided_slice %199 {offsets = [8, 7], sizes = [8, 1], strides = [1, 1]} : vector<16x32xf32> to vector<8x1xf32>
    %975 = arith.addf %973, %974 : vector<8x1xf32>
    %cst_273 = arith.constant 5.000000e-01 : f32
    %976 = vector.broadcast %cst_273 : f32 to vector<8x1xf32>
    %977 = arith.subf %975, %976 : vector<8x1xf32>
    %978 = vector.broadcast %971 : vector<8x1xf32> to vector<8x16xf32>
    %979 = vector.broadcast %928 : vector<1x16xf32> to vector<8x16xf32>
    %980 = arith.subf %978, %979 : vector<8x16xf32>
    %981 = math.absf %980 : vector<8x16xf32>
    %cst_274 = arith.constant 1.000000e+00 : f32
    %982 = vector.broadcast %cst_274 : f32 to vector<8x16xf32>
    %983 = arith.subf %982, %981 : vector<8x16xf32>
    %cst_275 = arith.constant 0.000000e+00 : f32
    %984 = vector.broadcast %cst_275 : f32 to vector<8x16xf32>
    %985 = arith.maximumf %983, %984 : vector<8x16xf32>
    %986 = vector.broadcast %977 : vector<8x1xf32> to vector<8x16xf32>
    %987 = vector.broadcast %929 : vector<1x16xf32> to vector<8x16xf32>
    %988 = arith.subf %986, %987 : vector<8x16xf32>
    %989 = math.absf %988 : vector<8x16xf32>
    %cst_276 = arith.constant 1.000000e+00 : f32
    %990 = vector.broadcast %cst_276 : f32 to vector<8x16xf32>
    %991 = arith.subf %990, %989 : vector<8x16xf32>
    %cst_277 = arith.constant 0.000000e+00 : f32
    %992 = vector.broadcast %cst_277 : f32 to vector<8x16xf32>
    %993 = arith.maximumf %991, %992 : vector<8x16xf32>
    %994 = arith.mulf %985, %993 : vector<8x16xf32>
    %995 = vector.extract_strided_slice %852 {offsets = [0, 3], sizes = [8, 1], strides = [1, 1]} : vector<8x4xf32> to vector<8x1xf32>
    %996 = vector.broadcast %995 : vector<8x1xf32> to vector<8x16xf32>
    %997 = arith.mulf %994, %996 : vector<8x16xf32>
    %998 = arith.addf %965, %997 : vector<8x16xf32>
    %999 = vector.extract_strided_slice %193 {offsets = [144, 0], sizes = [16, 8], strides = [1, 1]} : vector<160x32xf32> to vector<16x8xf32>
    %cst_278 = arith.constant dense<0.000000e+00> : vector<8x8xf32>
    %1000 = tpu.matmul %998, %999, %cst_278 {dimension_numbers = #tpu.dot_dimension_numbers<[1], [0], [0], [1], [0, 0, 1, 1], [], []>} : vector<8x16xf32>, vector<16x8xf32>, vector<8x8xf32> -> vector<8x8xf32>
    %1001 = arith.addf %927, %1000 : vector<8x8xf32>
    %1002 = vector.extract_strided_slice %200 {offsets = [8, 4], sizes = [8, 4], strides = [1, 1]} : vector<16x16xf32> to vector<8x4xf32>
    %cst_279 = arith.constant dense<0xFF800000> : vector<8xf32>
    %1003 = vector.multi_reduction <maximumf>, %1002, %cst_279 [1] : vector<8x4xf32> to vector<8xf32>
    %1004 = vector.shape_cast %1003 : vector<8xf32> to vector<8x1xf32>
    %1005 = vector.broadcast %1004 : vector<8x1xf32> to vector<8x4xf32>
    %1006 = arith.subf %1002, %1005 : vector<8x4xf32>
    %1007 = math.exp %1006 : vector<8x4xf32>
    %cst_280 = arith.constant dense<0.000000e+00> : vector<8xf32>
    %1008 = vector.multi_reduction <add>, %1007, %cst_280 [1] : vector<8x4xf32> to vector<8xf32>
    %1009 = vector.shape_cast %1008 : vector<8xf32> to vector<8x1xf32>
    %1010 = tpu.reciprocal %1009 {approx = true} : vector<8x1xf32> -> vector<8x1xf32>
    %1011 = vector.broadcast %1010 : vector<8x1xf32> to vector<8x4xf32>
    %1012 = arith.mulf %1007, %1011 : vector<8x4xf32>
    %cst_281 = arith.constant 0.000000e+00 : f32
    %1013 = vector.broadcast %cst_281 : f32 to vector<8x8xf32>
    %1014 = vector.extract_strided_slice %4 {offsets = [0, 0], sizes = [1, 64], strides = [1, 1]} : vector<1x80xf32> to vector<1x64xf32>
    %1015 = vector.extract_strided_slice %5 {offsets = [0, 0], sizes = [1, 64], strides = [1, 1]} : vector<1x80xf32> to vector<1x64xf32>
    %1016 = vector.extract_strided_slice %3 {offsets = [8, 0], sizes = [8, 1], strides = [1, 1]} : vector<16x4xf32> to vector<8x1xf32>
    %1017 = vector.extract_strided_slice %3 {offsets = [8, 1], sizes = [8, 1], strides = [1, 1]} : vector<16x4xf32> to vector<8x1xf32>
    %cst_282 = arith.constant 0.000000e+00 : f32
    %1018 = vector.broadcast %cst_282 : f32 to vector<8x64xf32>
    %cst_283 = arith.constant 8.000000e+00 : f32
    %1019 = vector.broadcast %cst_283 : f32 to vector<8x1xf32>
    %1020 = arith.mulf %1016, %1019 : vector<8x1xf32>
    %1021 = vector.extract_strided_slice %199 {offsets = [8, 8], sizes = [8, 1], strides = [1, 1]} : vector<16x32xf32> to vector<8x1xf32>
    %1022 = arith.addf %1020, %1021 : vector<8x1xf32>
    %cst_284 = arith.constant 5.000000e-01 : f32
    %1023 = vector.broadcast %cst_284 : f32 to vector<8x1xf32>
    %1024 = arith.subf %1022, %1023 : vector<8x1xf32>
    %cst_285 = arith.constant 8.000000e+00 : f32
    %1025 = vector.broadcast %cst_285 : f32 to vector<8x1xf32>
    %1026 = arith.mulf %1017, %1025 : vector<8x1xf32>
    %1027 = vector.extract_strided_slice %199 {offsets = [8, 9], sizes = [8, 1], strides = [1, 1]} : vector<16x32xf32> to vector<8x1xf32>
    %1028 = arith.addf %1026, %1027 : vector<8x1xf32>
    %cst_286 = arith.constant 5.000000e-01 : f32
    %1029 = vector.broadcast %cst_286 : f32 to vector<8x1xf32>
    %1030 = arith.subf %1028, %1029 : vector<8x1xf32>
    %1031 = vector.broadcast %1024 : vector<8x1xf32> to vector<8x64xf32>
    %1032 = vector.broadcast %1014 : vector<1x64xf32> to vector<8x64xf32>
    %1033 = arith.subf %1031, %1032 : vector<8x64xf32>
    %1034 = math.absf %1033 : vector<8x64xf32>
    %cst_287 = arith.constant 1.000000e+00 : f32
    %1035 = vector.broadcast %cst_287 : f32 to vector<8x64xf32>
    %1036 = arith.subf %1035, %1034 : vector<8x64xf32>
    %cst_288 = arith.constant 0.000000e+00 : f32
    %1037 = vector.broadcast %cst_288 : f32 to vector<8x64xf32>
    %1038 = arith.maximumf %1036, %1037 : vector<8x64xf32>
    %1039 = vector.broadcast %1030 : vector<8x1xf32> to vector<8x64xf32>
    %1040 = vector.broadcast %1015 : vector<1x64xf32> to vector<8x64xf32>
    %1041 = arith.subf %1039, %1040 : vector<8x64xf32>
    %1042 = math.absf %1041 : vector<8x64xf32>
    %cst_289 = arith.constant 1.000000e+00 : f32
    %1043 = vector.broadcast %cst_289 : f32 to vector<8x64xf32>
    %1044 = arith.subf %1043, %1042 : vector<8x64xf32>
    %cst_290 = arith.constant 0.000000e+00 : f32
    %1045 = vector.broadcast %cst_290 : f32 to vector<8x64xf32>
    %1046 = arith.maximumf %1044, %1045 : vector<8x64xf32>
    %1047 = arith.mulf %1038, %1046 : vector<8x64xf32>
    %1048 = vector.extract_strided_slice %1012 {offsets = [0, 0], sizes = [8, 1], strides = [1, 1]} : vector<8x4xf32> to vector<8x1xf32>
    %1049 = vector.broadcast %1048 : vector<8x1xf32> to vector<8x64xf32>
    %1050 = arith.mulf %1047, %1049 : vector<8x64xf32>
    %1051 = arith.addf %1018, %1050 : vector<8x64xf32>
    %cst_291 = arith.constant 8.000000e+00 : f32
    %1052 = vector.broadcast %cst_291 : f32 to vector<8x1xf32>
    %1053 = arith.mulf %1016, %1052 : vector<8x1xf32>
    %1054 = vector.extract_strided_slice %199 {offsets = [8, 10], sizes = [8, 1], strides = [1, 1]} : vector<16x32xf32> to vector<8x1xf32>
    %1055 = arith.addf %1053, %1054 : vector<8x1xf32>
    %cst_292 = arith.constant 5.000000e-01 : f32
    %1056 = vector.broadcast %cst_292 : f32 to vector<8x1xf32>
    %1057 = arith.subf %1055, %1056 : vector<8x1xf32>
    %cst_293 = arith.constant 8.000000e+00 : f32
    %1058 = vector.broadcast %cst_293 : f32 to vector<8x1xf32>
    %1059 = arith.mulf %1017, %1058 : vector<8x1xf32>
    %1060 = vector.extract_strided_slice %199 {offsets = [8, 11], sizes = [8, 1], strides = [1, 1]} : vector<16x32xf32> to vector<8x1xf32>
    %1061 = arith.addf %1059, %1060 : vector<8x1xf32>
    %cst_294 = arith.constant 5.000000e-01 : f32
    %1062 = vector.broadcast %cst_294 : f32 to vector<8x1xf32>
    %1063 = arith.subf %1061, %1062 : vector<8x1xf32>
    %1064 = vector.broadcast %1057 : vector<8x1xf32> to vector<8x64xf32>
    %1065 = vector.broadcast %1014 : vector<1x64xf32> to vector<8x64xf32>
    %1066 = arith.subf %1064, %1065 : vector<8x64xf32>
    %1067 = math.absf %1066 : vector<8x64xf32>
    %cst_295 = arith.constant 1.000000e+00 : f32
    %1068 = vector.broadcast %cst_295 : f32 to vector<8x64xf32>
    %1069 = arith.subf %1068, %1067 : vector<8x64xf32>
    %cst_296 = arith.constant 0.000000e+00 : f32
    %1070 = vector.broadcast %cst_296 : f32 to vector<8x64xf32>
    %1071 = arith.maximumf %1069, %1070 : vector<8x64xf32>
    %1072 = vector.broadcast %1063 : vector<8x1xf32> to vector<8x64xf32>
    %1073 = vector.broadcast %1015 : vector<1x64xf32> to vector<8x64xf32>
    %1074 = arith.subf %1072, %1073 : vector<8x64xf32>
    %1075 = math.absf %1074 : vector<8x64xf32>
    %cst_297 = arith.constant 1.000000e+00 : f32
    %1076 = vector.broadcast %cst_297 : f32 to vector<8x64xf32>
    %1077 = arith.subf %1076, %1075 : vector<8x64xf32>
    %cst_298 = arith.constant 0.000000e+00 : f32
    %1078 = vector.broadcast %cst_298 : f32 to vector<8x64xf32>
    %1079 = arith.maximumf %1077, %1078 : vector<8x64xf32>
    %1080 = arith.mulf %1071, %1079 : vector<8x64xf32>
    %1081 = vector.extract_strided_slice %1012 {offsets = [0, 1], sizes = [8, 1], strides = [1, 1]} : vector<8x4xf32> to vector<8x1xf32>
    %1082 = vector.broadcast %1081 : vector<8x1xf32> to vector<8x64xf32>
    %1083 = arith.mulf %1080, %1082 : vector<8x64xf32>
    %1084 = arith.addf %1051, %1083 : vector<8x64xf32>
    %1085 = vector.extract_strided_slice %193 {offsets = [80, 8], sizes = [64, 8], strides = [1, 1]} : vector<160x32xf32> to vector<64x8xf32>
    %cst_299 = arith.constant dense<0.000000e+00> : vector<8x8xf32>
    %1086 = tpu.matmul %1084, %1085, %cst_299 {dimension_numbers = #tpu.dot_dimension_numbers<[1], [0], [0], [1], [0, 0, 1, 1], [], []>} : vector<8x64xf32>, vector<64x8xf32>, vector<8x8xf32> -> vector<8x8xf32>
    %1087 = arith.addf %1013, %1086 : vector<8x8xf32>
    %1088 = vector.extract_strided_slice %4 {offsets = [0, 64], sizes = [1, 16], strides = [1, 1]} : vector<1x80xf32> to vector<1x16xf32>
    %1089 = vector.extract_strided_slice %5 {offsets = [0, 64], sizes = [1, 16], strides = [1, 1]} : vector<1x80xf32> to vector<1x16xf32>
    %1090 = vector.extract_strided_slice %3 {offsets = [8, 2], sizes = [8, 1], strides = [1, 1]} : vector<16x4xf32> to vector<8x1xf32>
    %1091 = vector.extract_strided_slice %3 {offsets = [8, 3], sizes = [8, 1], strides = [1, 1]} : vector<16x4xf32> to vector<8x1xf32>
    %cst_300 = arith.constant 0.000000e+00 : f32
    %1092 = vector.broadcast %cst_300 : f32 to vector<8x16xf32>
    %cst_301 = arith.constant 4.000000e+00 : f32
    %1093 = vector.broadcast %cst_301 : f32 to vector<8x1xf32>
    %1094 = arith.mulf %1090, %1093 : vector<8x1xf32>
    %1095 = vector.extract_strided_slice %199 {offsets = [8, 12], sizes = [8, 1], strides = [1, 1]} : vector<16x32xf32> to vector<8x1xf32>
    %1096 = arith.addf %1094, %1095 : vector<8x1xf32>
    %cst_302 = arith.constant 5.000000e-01 : f32
    %1097 = vector.broadcast %cst_302 : f32 to vector<8x1xf32>
    %1098 = arith.subf %1096, %1097 : vector<8x1xf32>
    %cst_303 = arith.constant 4.000000e+00 : f32
    %1099 = vector.broadcast %cst_303 : f32 to vector<8x1xf32>
    %1100 = arith.mulf %1091, %1099 : vector<8x1xf32>
    %1101 = vector.extract_strided_slice %199 {offsets = [8, 13], sizes = [8, 1], strides = [1, 1]} : vector<16x32xf32> to vector<8x1xf32>
    %1102 = arith.addf %1100, %1101 : vector<8x1xf32>
    %cst_304 = arith.constant 5.000000e-01 : f32
    %1103 = vector.broadcast %cst_304 : f32 to vector<8x1xf32>
    %1104 = arith.subf %1102, %1103 : vector<8x1xf32>
    %1105 = vector.broadcast %1098 : vector<8x1xf32> to vector<8x16xf32>
    %1106 = vector.broadcast %1088 : vector<1x16xf32> to vector<8x16xf32>
    %1107 = arith.subf %1105, %1106 : vector<8x16xf32>
    %1108 = math.absf %1107 : vector<8x16xf32>
    %cst_305 = arith.constant 1.000000e+00 : f32
    %1109 = vector.broadcast %cst_305 : f32 to vector<8x16xf32>
    %1110 = arith.subf %1109, %1108 : vector<8x16xf32>
    %cst_306 = arith.constant 0.000000e+00 : f32
    %1111 = vector.broadcast %cst_306 : f32 to vector<8x16xf32>
    %1112 = arith.maximumf %1110, %1111 : vector<8x16xf32>
    %1113 = vector.broadcast %1104 : vector<8x1xf32> to vector<8x16xf32>
    %1114 = vector.broadcast %1089 : vector<1x16xf32> to vector<8x16xf32>
    %1115 = arith.subf %1113, %1114 : vector<8x16xf32>
    %1116 = math.absf %1115 : vector<8x16xf32>
    %cst_307 = arith.constant 1.000000e+00 : f32
    %1117 = vector.broadcast %cst_307 : f32 to vector<8x16xf32>
    %1118 = arith.subf %1117, %1116 : vector<8x16xf32>
    %cst_308 = arith.constant 0.000000e+00 : f32
    %1119 = vector.broadcast %cst_308 : f32 to vector<8x16xf32>
    %1120 = arith.maximumf %1118, %1119 : vector<8x16xf32>
    %1121 = arith.mulf %1112, %1120 : vector<8x16xf32>
    %1122 = vector.extract_strided_slice %1012 {offsets = [0, 2], sizes = [8, 1], strides = [1, 1]} : vector<8x4xf32> to vector<8x1xf32>
    %1123 = vector.broadcast %1122 : vector<8x1xf32> to vector<8x16xf32>
    %1124 = arith.mulf %1121, %1123 : vector<8x16xf32>
    %1125 = arith.addf %1092, %1124 : vector<8x16xf32>
    %cst_309 = arith.constant 4.000000e+00 : f32
    %1126 = vector.broadcast %cst_309 : f32 to vector<8x1xf32>
    %1127 = arith.mulf %1090, %1126 : vector<8x1xf32>
    %1128 = vector.extract_strided_slice %199 {offsets = [8, 14], sizes = [8, 1], strides = [1, 1]} : vector<16x32xf32> to vector<8x1xf32>
    %1129 = arith.addf %1127, %1128 : vector<8x1xf32>
    %cst_310 = arith.constant 5.000000e-01 : f32
    %1130 = vector.broadcast %cst_310 : f32 to vector<8x1xf32>
    %1131 = arith.subf %1129, %1130 : vector<8x1xf32>
    %cst_311 = arith.constant 4.000000e+00 : f32
    %1132 = vector.broadcast %cst_311 : f32 to vector<8x1xf32>
    %1133 = arith.mulf %1091, %1132 : vector<8x1xf32>
    %1134 = vector.extract_strided_slice %199 {offsets = [8, 15], sizes = [8, 1], strides = [1, 1]} : vector<16x32xf32> to vector<8x1xf32>
    %1135 = arith.addf %1133, %1134 : vector<8x1xf32>
    %cst_312 = arith.constant 5.000000e-01 : f32
    %1136 = vector.broadcast %cst_312 : f32 to vector<8x1xf32>
    %1137 = arith.subf %1135, %1136 : vector<8x1xf32>
    %1138 = vector.broadcast %1131 : vector<8x1xf32> to vector<8x16xf32>
    %1139 = vector.broadcast %1088 : vector<1x16xf32> to vector<8x16xf32>
    %1140 = arith.subf %1138, %1139 : vector<8x16xf32>
    %1141 = math.absf %1140 : vector<8x16xf32>
    %cst_313 = arith.constant 1.000000e+00 : f32
    %1142 = vector.broadcast %cst_313 : f32 to vector<8x16xf32>
    %1143 = arith.subf %1142, %1141 : vector<8x16xf32>
    %cst_314 = arith.constant 0.000000e+00 : f32
    %1144 = vector.broadcast %cst_314 : f32 to vector<8x16xf32>
    %1145 = arith.maximumf %1143, %1144 : vector<8x16xf32>
    %1146 = vector.broadcast %1137 : vector<8x1xf32> to vector<8x16xf32>
    %1147 = vector.broadcast %1089 : vector<1x16xf32> to vector<8x16xf32>
    %1148 = arith.subf %1146, %1147 : vector<8x16xf32>
    %1149 = math.absf %1148 : vector<8x16xf32>
    %cst_315 = arith.constant 1.000000e+00 : f32
    %1150 = vector.broadcast %cst_315 : f32 to vector<8x16xf32>
    %1151 = arith.subf %1150, %1149 : vector<8x16xf32>
    %cst_316 = arith.constant 0.000000e+00 : f32
    %1152 = vector.broadcast %cst_316 : f32 to vector<8x16xf32>
    %1153 = arith.maximumf %1151, %1152 : vector<8x16xf32>
    %1154 = arith.mulf %1145, %1153 : vector<8x16xf32>
    %1155 = vector.extract_strided_slice %1012 {offsets = [0, 3], sizes = [8, 1], strides = [1, 1]} : vector<8x4xf32> to vector<8x1xf32>
    %1156 = vector.broadcast %1155 : vector<8x1xf32> to vector<8x16xf32>
    %1157 = arith.mulf %1154, %1156 : vector<8x16xf32>
    %1158 = arith.addf %1125, %1157 : vector<8x16xf32>
    %1159 = vector.extract_strided_slice %193 {offsets = [144, 8], sizes = [16, 8], strides = [1, 1]} : vector<160x32xf32> to vector<16x8xf32>
    %cst_317 = arith.constant dense<0.000000e+00> : vector<8x8xf32>
    %1160 = tpu.matmul %1158, %1159, %cst_317 {dimension_numbers = #tpu.dot_dimension_numbers<[1], [0], [0], [1], [0, 0, 1, 1], [], []>} : vector<8x16xf32>, vector<16x8xf32>, vector<8x8xf32> -> vector<8x8xf32>
    %1161 = arith.addf %1087, %1160 : vector<8x8xf32>
    %1162 = vector.extract_strided_slice %200 {offsets = [8, 8], sizes = [8, 4], strides = [1, 1]} : vector<16x16xf32> to vector<8x4xf32>
    %cst_318 = arith.constant dense<0xFF800000> : vector<8xf32>
    %1163 = vector.multi_reduction <maximumf>, %1162, %cst_318 [1] : vector<8x4xf32> to vector<8xf32>
    %1164 = vector.shape_cast %1163 : vector<8xf32> to vector<8x1xf32>
    %1165 = vector.broadcast %1164 : vector<8x1xf32> to vector<8x4xf32>
    %1166 = arith.subf %1162, %1165 : vector<8x4xf32>
    %1167 = math.exp %1166 : vector<8x4xf32>
    %cst_319 = arith.constant dense<0.000000e+00> : vector<8xf32>
    %1168 = vector.multi_reduction <add>, %1167, %cst_319 [1] : vector<8x4xf32> to vector<8xf32>
    %1169 = vector.shape_cast %1168 : vector<8xf32> to vector<8x1xf32>
    %1170 = tpu.reciprocal %1169 {approx = true} : vector<8x1xf32> -> vector<8x1xf32>
    %1171 = vector.broadcast %1170 : vector<8x1xf32> to vector<8x4xf32>
    %1172 = arith.mulf %1167, %1171 : vector<8x4xf32>
    %cst_320 = arith.constant 0.000000e+00 : f32
    %1173 = vector.broadcast %cst_320 : f32 to vector<8x8xf32>
    %1174 = vector.extract_strided_slice %4 {offsets = [0, 0], sizes = [1, 64], strides = [1, 1]} : vector<1x80xf32> to vector<1x64xf32>
    %1175 = vector.extract_strided_slice %5 {offsets = [0, 0], sizes = [1, 64], strides = [1, 1]} : vector<1x80xf32> to vector<1x64xf32>
    %1176 = vector.extract_strided_slice %3 {offsets = [8, 0], sizes = [8, 1], strides = [1, 1]} : vector<16x4xf32> to vector<8x1xf32>
    %1177 = vector.extract_strided_slice %3 {offsets = [8, 1], sizes = [8, 1], strides = [1, 1]} : vector<16x4xf32> to vector<8x1xf32>
    %cst_321 = arith.constant 0.000000e+00 : f32
    %1178 = vector.broadcast %cst_321 : f32 to vector<8x64xf32>
    %cst_322 = arith.constant 8.000000e+00 : f32
    %1179 = vector.broadcast %cst_322 : f32 to vector<8x1xf32>
    %1180 = arith.mulf %1176, %1179 : vector<8x1xf32>
    %1181 = vector.extract_strided_slice %199 {offsets = [8, 16], sizes = [8, 1], strides = [1, 1]} : vector<16x32xf32> to vector<8x1xf32>
    %1182 = arith.addf %1180, %1181 : vector<8x1xf32>
    %cst_323 = arith.constant 5.000000e-01 : f32
    %1183 = vector.broadcast %cst_323 : f32 to vector<8x1xf32>
    %1184 = arith.subf %1182, %1183 : vector<8x1xf32>
    %cst_324 = arith.constant 8.000000e+00 : f32
    %1185 = vector.broadcast %cst_324 : f32 to vector<8x1xf32>
    %1186 = arith.mulf %1177, %1185 : vector<8x1xf32>
    %1187 = vector.extract_strided_slice %199 {offsets = [8, 17], sizes = [8, 1], strides = [1, 1]} : vector<16x32xf32> to vector<8x1xf32>
    %1188 = arith.addf %1186, %1187 : vector<8x1xf32>
    %cst_325 = arith.constant 5.000000e-01 : f32
    %1189 = vector.broadcast %cst_325 : f32 to vector<8x1xf32>
    %1190 = arith.subf %1188, %1189 : vector<8x1xf32>
    %1191 = vector.broadcast %1184 : vector<8x1xf32> to vector<8x64xf32>
    %1192 = vector.broadcast %1174 : vector<1x64xf32> to vector<8x64xf32>
    %1193 = arith.subf %1191, %1192 : vector<8x64xf32>
    %1194 = math.absf %1193 : vector<8x64xf32>
    %cst_326 = arith.constant 1.000000e+00 : f32
    %1195 = vector.broadcast %cst_326 : f32 to vector<8x64xf32>
    %1196 = arith.subf %1195, %1194 : vector<8x64xf32>
    %cst_327 = arith.constant 0.000000e+00 : f32
    %1197 = vector.broadcast %cst_327 : f32 to vector<8x64xf32>
    %1198 = arith.maximumf %1196, %1197 : vector<8x64xf32>
    %1199 = vector.broadcast %1190 : vector<8x1xf32> to vector<8x64xf32>
    %1200 = vector.broadcast %1175 : vector<1x64xf32> to vector<8x64xf32>
    %1201 = arith.subf %1199, %1200 : vector<8x64xf32>
    %1202 = math.absf %1201 : vector<8x64xf32>
    %cst_328 = arith.constant 1.000000e+00 : f32
    %1203 = vector.broadcast %cst_328 : f32 to vector<8x64xf32>
    %1204 = arith.subf %1203, %1202 : vector<8x64xf32>
    %cst_329 = arith.constant 0.000000e+00 : f32
    %1205 = vector.broadcast %cst_329 : f32 to vector<8x64xf32>
    %1206 = arith.maximumf %1204, %1205 : vector<8x64xf32>
    %1207 = arith.mulf %1198, %1206 : vector<8x64xf32>
    %1208 = vector.extract_strided_slice %1172 {offsets = [0, 0], sizes = [8, 1], strides = [1, 1]} : vector<8x4xf32> to vector<8x1xf32>
    %1209 = vector.broadcast %1208 : vector<8x1xf32> to vector<8x64xf32>
    %1210 = arith.mulf %1207, %1209 : vector<8x64xf32>
    %1211 = arith.addf %1178, %1210 : vector<8x64xf32>
    %cst_330 = arith.constant 8.000000e+00 : f32
    %1212 = vector.broadcast %cst_330 : f32 to vector<8x1xf32>
    %1213 = arith.mulf %1176, %1212 : vector<8x1xf32>
    %1214 = vector.extract_strided_slice %199 {offsets = [8, 18], sizes = [8, 1], strides = [1, 1]} : vector<16x32xf32> to vector<8x1xf32>
    %1215 = arith.addf %1213, %1214 : vector<8x1xf32>
    %cst_331 = arith.constant 5.000000e-01 : f32
    %1216 = vector.broadcast %cst_331 : f32 to vector<8x1xf32>
    %1217 = arith.subf %1215, %1216 : vector<8x1xf32>
    %cst_332 = arith.constant 8.000000e+00 : f32
    %1218 = vector.broadcast %cst_332 : f32 to vector<8x1xf32>
    %1219 = arith.mulf %1177, %1218 : vector<8x1xf32>
    %1220 = vector.extract_strided_slice %199 {offsets = [8, 19], sizes = [8, 1], strides = [1, 1]} : vector<16x32xf32> to vector<8x1xf32>
    %1221 = arith.addf %1219, %1220 : vector<8x1xf32>
    %cst_333 = arith.constant 5.000000e-01 : f32
    %1222 = vector.broadcast %cst_333 : f32 to vector<8x1xf32>
    %1223 = arith.subf %1221, %1222 : vector<8x1xf32>
    %1224 = vector.broadcast %1217 : vector<8x1xf32> to vector<8x64xf32>
    %1225 = vector.broadcast %1174 : vector<1x64xf32> to vector<8x64xf32>
    %1226 = arith.subf %1224, %1225 : vector<8x64xf32>
    %1227 = math.absf %1226 : vector<8x64xf32>
    %cst_334 = arith.constant 1.000000e+00 : f32
    %1228 = vector.broadcast %cst_334 : f32 to vector<8x64xf32>
    %1229 = arith.subf %1228, %1227 : vector<8x64xf32>
    %cst_335 = arith.constant 0.000000e+00 : f32
    %1230 = vector.broadcast %cst_335 : f32 to vector<8x64xf32>
    %1231 = arith.maximumf %1229, %1230 : vector<8x64xf32>
    %1232 = vector.broadcast %1223 : vector<8x1xf32> to vector<8x64xf32>
    %1233 = vector.broadcast %1175 : vector<1x64xf32> to vector<8x64xf32>
    %1234 = arith.subf %1232, %1233 : vector<8x64xf32>
    %1235 = math.absf %1234 : vector<8x64xf32>
    %cst_336 = arith.constant 1.000000e+00 : f32
    %1236 = vector.broadcast %cst_336 : f32 to vector<8x64xf32>
    %1237 = arith.subf %1236, %1235 : vector<8x64xf32>
    %cst_337 = arith.constant 0.000000e+00 : f32
    %1238 = vector.broadcast %cst_337 : f32 to vector<8x64xf32>
    %1239 = arith.maximumf %1237, %1238 : vector<8x64xf32>
    %1240 = arith.mulf %1231, %1239 : vector<8x64xf32>
    %1241 = vector.extract_strided_slice %1172 {offsets = [0, 1], sizes = [8, 1], strides = [1, 1]} : vector<8x4xf32> to vector<8x1xf32>
    %1242 = vector.broadcast %1241 : vector<8x1xf32> to vector<8x64xf32>
    %1243 = arith.mulf %1240, %1242 : vector<8x64xf32>
    %1244 = arith.addf %1211, %1243 : vector<8x64xf32>
    %1245 = vector.extract_strided_slice %193 {offsets = [80, 16], sizes = [64, 8], strides = [1, 1]} : vector<160x32xf32> to vector<64x8xf32>
    %cst_338 = arith.constant dense<0.000000e+00> : vector<8x8xf32>
    %1246 = tpu.matmul %1244, %1245, %cst_338 {dimension_numbers = #tpu.dot_dimension_numbers<[1], [0], [0], [1], [0, 0, 1, 1], [], []>} : vector<8x64xf32>, vector<64x8xf32>, vector<8x8xf32> -> vector<8x8xf32>
    %1247 = arith.addf %1173, %1246 : vector<8x8xf32>
    %1248 = vector.extract_strided_slice %4 {offsets = [0, 64], sizes = [1, 16], strides = [1, 1]} : vector<1x80xf32> to vector<1x16xf32>
    %1249 = vector.extract_strided_slice %5 {offsets = [0, 64], sizes = [1, 16], strides = [1, 1]} : vector<1x80xf32> to vector<1x16xf32>
    %1250 = vector.extract_strided_slice %3 {offsets = [8, 2], sizes = [8, 1], strides = [1, 1]} : vector<16x4xf32> to vector<8x1xf32>
    %1251 = vector.extract_strided_slice %3 {offsets = [8, 3], sizes = [8, 1], strides = [1, 1]} : vector<16x4xf32> to vector<8x1xf32>
    %cst_339 = arith.constant 0.000000e+00 : f32
    %1252 = vector.broadcast %cst_339 : f32 to vector<8x16xf32>
    %cst_340 = arith.constant 4.000000e+00 : f32
    %1253 = vector.broadcast %cst_340 : f32 to vector<8x1xf32>
    %1254 = arith.mulf %1250, %1253 : vector<8x1xf32>
    %1255 = vector.extract_strided_slice %199 {offsets = [8, 20], sizes = [8, 1], strides = [1, 1]} : vector<16x32xf32> to vector<8x1xf32>
    %1256 = arith.addf %1254, %1255 : vector<8x1xf32>
    %cst_341 = arith.constant 5.000000e-01 : f32
    %1257 = vector.broadcast %cst_341 : f32 to vector<8x1xf32>
    %1258 = arith.subf %1256, %1257 : vector<8x1xf32>
    %cst_342 = arith.constant 4.000000e+00 : f32
    %1259 = vector.broadcast %cst_342 : f32 to vector<8x1xf32>
    %1260 = arith.mulf %1251, %1259 : vector<8x1xf32>
    %1261 = vector.extract_strided_slice %199 {offsets = [8, 21], sizes = [8, 1], strides = [1, 1]} : vector<16x32xf32> to vector<8x1xf32>
    %1262 = arith.addf %1260, %1261 : vector<8x1xf32>
    %cst_343 = arith.constant 5.000000e-01 : f32
    %1263 = vector.broadcast %cst_343 : f32 to vector<8x1xf32>
    %1264 = arith.subf %1262, %1263 : vector<8x1xf32>
    %1265 = vector.broadcast %1258 : vector<8x1xf32> to vector<8x16xf32>
    %1266 = vector.broadcast %1248 : vector<1x16xf32> to vector<8x16xf32>
    %1267 = arith.subf %1265, %1266 : vector<8x16xf32>
    %1268 = math.absf %1267 : vector<8x16xf32>
    %cst_344 = arith.constant 1.000000e+00 : f32
    %1269 = vector.broadcast %cst_344 : f32 to vector<8x16xf32>
    %1270 = arith.subf %1269, %1268 : vector<8x16xf32>
    %cst_345 = arith.constant 0.000000e+00 : f32
    %1271 = vector.broadcast %cst_345 : f32 to vector<8x16xf32>
    %1272 = arith.maximumf %1270, %1271 : vector<8x16xf32>
    %1273 = vector.broadcast %1264 : vector<8x1xf32> to vector<8x16xf32>
    %1274 = vector.broadcast %1249 : vector<1x16xf32> to vector<8x16xf32>
    %1275 = arith.subf %1273, %1274 : vector<8x16xf32>
    %1276 = math.absf %1275 : vector<8x16xf32>
    %cst_346 = arith.constant 1.000000e+00 : f32
    %1277 = vector.broadcast %cst_346 : f32 to vector<8x16xf32>
    %1278 = arith.subf %1277, %1276 : vector<8x16xf32>
    %cst_347 = arith.constant 0.000000e+00 : f32
    %1279 = vector.broadcast %cst_347 : f32 to vector<8x16xf32>
    %1280 = arith.maximumf %1278, %1279 : vector<8x16xf32>
    %1281 = arith.mulf %1272, %1280 : vector<8x16xf32>
    %1282 = vector.extract_strided_slice %1172 {offsets = [0, 2], sizes = [8, 1], strides = [1, 1]} : vector<8x4xf32> to vector<8x1xf32>
    %1283 = vector.broadcast %1282 : vector<8x1xf32> to vector<8x16xf32>
    %1284 = arith.mulf %1281, %1283 : vector<8x16xf32>
    %1285 = arith.addf %1252, %1284 : vector<8x16xf32>
    %cst_348 = arith.constant 4.000000e+00 : f32
    %1286 = vector.broadcast %cst_348 : f32 to vector<8x1xf32>
    %1287 = arith.mulf %1250, %1286 : vector<8x1xf32>
    %1288 = vector.extract_strided_slice %199 {offsets = [8, 22], sizes = [8, 1], strides = [1, 1]} : vector<16x32xf32> to vector<8x1xf32>
    %1289 = arith.addf %1287, %1288 : vector<8x1xf32>
    %cst_349 = arith.constant 5.000000e-01 : f32
    %1290 = vector.broadcast %cst_349 : f32 to vector<8x1xf32>
    %1291 = arith.subf %1289, %1290 : vector<8x1xf32>
    %cst_350 = arith.constant 4.000000e+00 : f32
    %1292 = vector.broadcast %cst_350 : f32 to vector<8x1xf32>
    %1293 = arith.mulf %1251, %1292 : vector<8x1xf32>
    %1294 = vector.extract_strided_slice %199 {offsets = [8, 23], sizes = [8, 1], strides = [1, 1]} : vector<16x32xf32> to vector<8x1xf32>
    %1295 = arith.addf %1293, %1294 : vector<8x1xf32>
    %cst_351 = arith.constant 5.000000e-01 : f32
    %1296 = vector.broadcast %cst_351 : f32 to vector<8x1xf32>
    %1297 = arith.subf %1295, %1296 : vector<8x1xf32>
    %1298 = vector.broadcast %1291 : vector<8x1xf32> to vector<8x16xf32>
    %1299 = vector.broadcast %1248 : vector<1x16xf32> to vector<8x16xf32>
    %1300 = arith.subf %1298, %1299 : vector<8x16xf32>
    %1301 = math.absf %1300 : vector<8x16xf32>
    %cst_352 = arith.constant 1.000000e+00 : f32
    %1302 = vector.broadcast %cst_352 : f32 to vector<8x16xf32>
    %1303 = arith.subf %1302, %1301 : vector<8x16xf32>
    %cst_353 = arith.constant 0.000000e+00 : f32
    %1304 = vector.broadcast %cst_353 : f32 to vector<8x16xf32>
    %1305 = arith.maximumf %1303, %1304 : vector<8x16xf32>
    %1306 = vector.broadcast %1297 : vector<8x1xf32> to vector<8x16xf32>
    %1307 = vector.broadcast %1249 : vector<1x16xf32> to vector<8x16xf32>
    %1308 = arith.subf %1306, %1307 : vector<8x16xf32>
    %1309 = math.absf %1308 : vector<8x16xf32>
    %cst_354 = arith.constant 1.000000e+00 : f32
    %1310 = vector.broadcast %cst_354 : f32 to vector<8x16xf32>
    %1311 = arith.subf %1310, %1309 : vector<8x16xf32>
    %cst_355 = arith.constant 0.000000e+00 : f32
    %1312 = vector.broadcast %cst_355 : f32 to vector<8x16xf32>
    %1313 = arith.maximumf %1311, %1312 : vector<8x16xf32>
    %1314 = arith.mulf %1305, %1313 : vector<8x16xf32>
    %1315 = vector.extract_strided_slice %1172 {offsets = [0, 3], sizes = [8, 1], strides = [1, 1]} : vector<8x4xf32> to vector<8x1xf32>
    %1316 = vector.broadcast %1315 : vector<8x1xf32> to vector<8x16xf32>
    %1317 = arith.mulf %1314, %1316 : vector<8x16xf32>
    %1318 = arith.addf %1285, %1317 : vector<8x16xf32>
    %1319 = vector.extract_strided_slice %193 {offsets = [144, 16], sizes = [16, 8], strides = [1, 1]} : vector<160x32xf32> to vector<16x8xf32>
    %cst_356 = arith.constant dense<0.000000e+00> : vector<8x8xf32>
    %1320 = tpu.matmul %1318, %1319, %cst_356 {dimension_numbers = #tpu.dot_dimension_numbers<[1], [0], [0], [1], [0, 0, 1, 1], [], []>} : vector<8x16xf32>, vector<16x8xf32>, vector<8x8xf32> -> vector<8x8xf32>
    %1321 = arith.addf %1247, %1320 : vector<8x8xf32>
    %1322 = vector.extract_strided_slice %200 {offsets = [8, 12], sizes = [8, 4], strides = [1, 1]} : vector<16x16xf32> to vector<8x4xf32>
    %cst_357 = arith.constant dense<0xFF800000> : vector<8xf32>
    %1323 = vector.multi_reduction <maximumf>, %1322, %cst_357 [1] : vector<8x4xf32> to vector<8xf32>
    %1324 = vector.shape_cast %1323 : vector<8xf32> to vector<8x1xf32>
    %1325 = vector.broadcast %1324 : vector<8x1xf32> to vector<8x4xf32>
    %1326 = arith.subf %1322, %1325 : vector<8x4xf32>
    %1327 = math.exp %1326 : vector<8x4xf32>
    %cst_358 = arith.constant dense<0.000000e+00> : vector<8xf32>
    %1328 = vector.multi_reduction <add>, %1327, %cst_358 [1] : vector<8x4xf32> to vector<8xf32>
    %1329 = vector.shape_cast %1328 : vector<8xf32> to vector<8x1xf32>
    %1330 = tpu.reciprocal %1329 {approx = true} : vector<8x1xf32> -> vector<8x1xf32>
    %1331 = vector.broadcast %1330 : vector<8x1xf32> to vector<8x4xf32>
    %1332 = arith.mulf %1327, %1331 : vector<8x4xf32>
    %cst_359 = arith.constant 0.000000e+00 : f32
    %1333 = vector.broadcast %cst_359 : f32 to vector<8x8xf32>
    %1334 = vector.extract_strided_slice %4 {offsets = [0, 0], sizes = [1, 64], strides = [1, 1]} : vector<1x80xf32> to vector<1x64xf32>
    %1335 = vector.extract_strided_slice %5 {offsets = [0, 0], sizes = [1, 64], strides = [1, 1]} : vector<1x80xf32> to vector<1x64xf32>
    %1336 = vector.extract_strided_slice %3 {offsets = [8, 0], sizes = [8, 1], strides = [1, 1]} : vector<16x4xf32> to vector<8x1xf32>
    %1337 = vector.extract_strided_slice %3 {offsets = [8, 1], sizes = [8, 1], strides = [1, 1]} : vector<16x4xf32> to vector<8x1xf32>
    %cst_360 = arith.constant 0.000000e+00 : f32
    %1338 = vector.broadcast %cst_360 : f32 to vector<8x64xf32>
    %cst_361 = arith.constant 8.000000e+00 : f32
    %1339 = vector.broadcast %cst_361 : f32 to vector<8x1xf32>
    %1340 = arith.mulf %1336, %1339 : vector<8x1xf32>
    %1341 = vector.extract_strided_slice %199 {offsets = [8, 24], sizes = [8, 1], strides = [1, 1]} : vector<16x32xf32> to vector<8x1xf32>
    %1342 = arith.addf %1340, %1341 : vector<8x1xf32>
    %cst_362 = arith.constant 5.000000e-01 : f32
    %1343 = vector.broadcast %cst_362 : f32 to vector<8x1xf32>
    %1344 = arith.subf %1342, %1343 : vector<8x1xf32>
    %cst_363 = arith.constant 8.000000e+00 : f32
    %1345 = vector.broadcast %cst_363 : f32 to vector<8x1xf32>
    %1346 = arith.mulf %1337, %1345 : vector<8x1xf32>
    %1347 = vector.extract_strided_slice %199 {offsets = [8, 25], sizes = [8, 1], strides = [1, 1]} : vector<16x32xf32> to vector<8x1xf32>
    %1348 = arith.addf %1346, %1347 : vector<8x1xf32>
    %cst_364 = arith.constant 5.000000e-01 : f32
    %1349 = vector.broadcast %cst_364 : f32 to vector<8x1xf32>
    %1350 = arith.subf %1348, %1349 : vector<8x1xf32>
    %1351 = vector.broadcast %1344 : vector<8x1xf32> to vector<8x64xf32>
    %1352 = vector.broadcast %1334 : vector<1x64xf32> to vector<8x64xf32>
    %1353 = arith.subf %1351, %1352 : vector<8x64xf32>
    %1354 = math.absf %1353 : vector<8x64xf32>
    %cst_365 = arith.constant 1.000000e+00 : f32
    %1355 = vector.broadcast %cst_365 : f32 to vector<8x64xf32>
    %1356 = arith.subf %1355, %1354 : vector<8x64xf32>
    %cst_366 = arith.constant 0.000000e+00 : f32
    %1357 = vector.broadcast %cst_366 : f32 to vector<8x64xf32>
    %1358 = arith.maximumf %1356, %1357 : vector<8x64xf32>
    %1359 = vector.broadcast %1350 : vector<8x1xf32> to vector<8x64xf32>
    %1360 = vector.broadcast %1335 : vector<1x64xf32> to vector<8x64xf32>
    %1361 = arith.subf %1359, %1360 : vector<8x64xf32>
    %1362 = math.absf %1361 : vector<8x64xf32>
    %cst_367 = arith.constant 1.000000e+00 : f32
    %1363 = vector.broadcast %cst_367 : f32 to vector<8x64xf32>
    %1364 = arith.subf %1363, %1362 : vector<8x64xf32>
    %cst_368 = arith.constant 0.000000e+00 : f32
    %1365 = vector.broadcast %cst_368 : f32 to vector<8x64xf32>
    %1366 = arith.maximumf %1364, %1365 : vector<8x64xf32>
    %1367 = arith.mulf %1358, %1366 : vector<8x64xf32>
    %1368 = vector.extract_strided_slice %1332 {offsets = [0, 0], sizes = [8, 1], strides = [1, 1]} : vector<8x4xf32> to vector<8x1xf32>
    %1369 = vector.broadcast %1368 : vector<8x1xf32> to vector<8x64xf32>
    %1370 = arith.mulf %1367, %1369 : vector<8x64xf32>
    %1371 = arith.addf %1338, %1370 : vector<8x64xf32>
    %cst_369 = arith.constant 8.000000e+00 : f32
    %1372 = vector.broadcast %cst_369 : f32 to vector<8x1xf32>
    %1373 = arith.mulf %1336, %1372 : vector<8x1xf32>
    %1374 = vector.extract_strided_slice %199 {offsets = [8, 26], sizes = [8, 1], strides = [1, 1]} : vector<16x32xf32> to vector<8x1xf32>
    %1375 = arith.addf %1373, %1374 : vector<8x1xf32>
    %cst_370 = arith.constant 5.000000e-01 : f32
    %1376 = vector.broadcast %cst_370 : f32 to vector<8x1xf32>
    %1377 = arith.subf %1375, %1376 : vector<8x1xf32>
    %cst_371 = arith.constant 8.000000e+00 : f32
    %1378 = vector.broadcast %cst_371 : f32 to vector<8x1xf32>
    %1379 = arith.mulf %1337, %1378 : vector<8x1xf32>
    %1380 = vector.extract_strided_slice %199 {offsets = [8, 27], sizes = [8, 1], strides = [1, 1]} : vector<16x32xf32> to vector<8x1xf32>
    %1381 = arith.addf %1379, %1380 : vector<8x1xf32>
    %cst_372 = arith.constant 5.000000e-01 : f32
    %1382 = vector.broadcast %cst_372 : f32 to vector<8x1xf32>
    %1383 = arith.subf %1381, %1382 : vector<8x1xf32>
    %1384 = vector.broadcast %1377 : vector<8x1xf32> to vector<8x64xf32>
    %1385 = vector.broadcast %1334 : vector<1x64xf32> to vector<8x64xf32>
    %1386 = arith.subf %1384, %1385 : vector<8x64xf32>
    %1387 = math.absf %1386 : vector<8x64xf32>
    %cst_373 = arith.constant 1.000000e+00 : f32
    %1388 = vector.broadcast %cst_373 : f32 to vector<8x64xf32>
    %1389 = arith.subf %1388, %1387 : vector<8x64xf32>
    %cst_374 = arith.constant 0.000000e+00 : f32
    %1390 = vector.broadcast %cst_374 : f32 to vector<8x64xf32>
    %1391 = arith.maximumf %1389, %1390 : vector<8x64xf32>
    %1392 = vector.broadcast %1383 : vector<8x1xf32> to vector<8x64xf32>
    %1393 = vector.broadcast %1335 : vector<1x64xf32> to vector<8x64xf32>
    %1394 = arith.subf %1392, %1393 : vector<8x64xf32>
    %1395 = math.absf %1394 : vector<8x64xf32>
    %cst_375 = arith.constant 1.000000e+00 : f32
    %1396 = vector.broadcast %cst_375 : f32 to vector<8x64xf32>
    %1397 = arith.subf %1396, %1395 : vector<8x64xf32>
    %cst_376 = arith.constant 0.000000e+00 : f32
    %1398 = vector.broadcast %cst_376 : f32 to vector<8x64xf32>
    %1399 = arith.maximumf %1397, %1398 : vector<8x64xf32>
    %1400 = arith.mulf %1391, %1399 : vector<8x64xf32>
    %1401 = vector.extract_strided_slice %1332 {offsets = [0, 1], sizes = [8, 1], strides = [1, 1]} : vector<8x4xf32> to vector<8x1xf32>
    %1402 = vector.broadcast %1401 : vector<8x1xf32> to vector<8x64xf32>
    %1403 = arith.mulf %1400, %1402 : vector<8x64xf32>
    %1404 = arith.addf %1371, %1403 : vector<8x64xf32>
    %1405 = vector.extract_strided_slice %193 {offsets = [80, 24], sizes = [64, 8], strides = [1, 1]} : vector<160x32xf32> to vector<64x8xf32>
    %cst_377 = arith.constant dense<0.000000e+00> : vector<8x8xf32>
    %1406 = tpu.matmul %1404, %1405, %cst_377 {dimension_numbers = #tpu.dot_dimension_numbers<[1], [0], [0], [1], [0, 0, 1, 1], [], []>} : vector<8x64xf32>, vector<64x8xf32>, vector<8x8xf32> -> vector<8x8xf32>
    %1407 = arith.addf %1333, %1406 : vector<8x8xf32>
    %1408 = vector.extract_strided_slice %4 {offsets = [0, 64], sizes = [1, 16], strides = [1, 1]} : vector<1x80xf32> to vector<1x16xf32>
    %1409 = vector.extract_strided_slice %5 {offsets = [0, 64], sizes = [1, 16], strides = [1, 1]} : vector<1x80xf32> to vector<1x16xf32>
    %1410 = vector.extract_strided_slice %3 {offsets = [8, 2], sizes = [8, 1], strides = [1, 1]} : vector<16x4xf32> to vector<8x1xf32>
    %1411 = vector.extract_strided_slice %3 {offsets = [8, 3], sizes = [8, 1], strides = [1, 1]} : vector<16x4xf32> to vector<8x1xf32>
    %cst_378 = arith.constant 0.000000e+00 : f32
    %1412 = vector.broadcast %cst_378 : f32 to vector<8x16xf32>
    %cst_379 = arith.constant 4.000000e+00 : f32
    %1413 = vector.broadcast %cst_379 : f32 to vector<8x1xf32>
    %1414 = arith.mulf %1410, %1413 : vector<8x1xf32>
    %1415 = vector.extract_strided_slice %199 {offsets = [8, 28], sizes = [8, 1], strides = [1, 1]} : vector<16x32xf32> to vector<8x1xf32>
    %1416 = arith.addf %1414, %1415 : vector<8x1xf32>
    %cst_380 = arith.constant 5.000000e-01 : f32
    %1417 = vector.broadcast %cst_380 : f32 to vector<8x1xf32>
    %1418 = arith.subf %1416, %1417 : vector<8x1xf32>
    %cst_381 = arith.constant 4.000000e+00 : f32
    %1419 = vector.broadcast %cst_381 : f32 to vector<8x1xf32>
    %1420 = arith.mulf %1411, %1419 : vector<8x1xf32>
    %1421 = vector.extract_strided_slice %199 {offsets = [8, 29], sizes = [8, 1], strides = [1, 1]} : vector<16x32xf32> to vector<8x1xf32>
    %1422 = arith.addf %1420, %1421 : vector<8x1xf32>
    %cst_382 = arith.constant 5.000000e-01 : f32
    %1423 = vector.broadcast %cst_382 : f32 to vector<8x1xf32>
    %1424 = arith.subf %1422, %1423 : vector<8x1xf32>
    %1425 = vector.broadcast %1418 : vector<8x1xf32> to vector<8x16xf32>
    %1426 = vector.broadcast %1408 : vector<1x16xf32> to vector<8x16xf32>
    %1427 = arith.subf %1425, %1426 : vector<8x16xf32>
    %1428 = math.absf %1427 : vector<8x16xf32>
    %cst_383 = arith.constant 1.000000e+00 : f32
    %1429 = vector.broadcast %cst_383 : f32 to vector<8x16xf32>
    %1430 = arith.subf %1429, %1428 : vector<8x16xf32>
    %cst_384 = arith.constant 0.000000e+00 : f32
    %1431 = vector.broadcast %cst_384 : f32 to vector<8x16xf32>
    %1432 = arith.maximumf %1430, %1431 : vector<8x16xf32>
    %1433 = vector.broadcast %1424 : vector<8x1xf32> to vector<8x16xf32>
    %1434 = vector.broadcast %1409 : vector<1x16xf32> to vector<8x16xf32>
    %1435 = arith.subf %1433, %1434 : vector<8x16xf32>
    %1436 = math.absf %1435 : vector<8x16xf32>
    %cst_385 = arith.constant 1.000000e+00 : f32
    %1437 = vector.broadcast %cst_385 : f32 to vector<8x16xf32>
    %1438 = arith.subf %1437, %1436 : vector<8x16xf32>
    %cst_386 = arith.constant 0.000000e+00 : f32
    %1439 = vector.broadcast %cst_386 : f32 to vector<8x16xf32>
    %1440 = arith.maximumf %1438, %1439 : vector<8x16xf32>
    %1441 = arith.mulf %1432, %1440 : vector<8x16xf32>
    %1442 = vector.extract_strided_slice %1332 {offsets = [0, 2], sizes = [8, 1], strides = [1, 1]} : vector<8x4xf32> to vector<8x1xf32>
    %1443 = vector.broadcast %1442 : vector<8x1xf32> to vector<8x16xf32>
    %1444 = arith.mulf %1441, %1443 : vector<8x16xf32>
    %1445 = arith.addf %1412, %1444 : vector<8x16xf32>
    %cst_387 = arith.constant 4.000000e+00 : f32
    %1446 = vector.broadcast %cst_387 : f32 to vector<8x1xf32>
    %1447 = arith.mulf %1410, %1446 : vector<8x1xf32>
    %1448 = vector.extract_strided_slice %199 {offsets = [8, 30], sizes = [8, 1], strides = [1, 1]} : vector<16x32xf32> to vector<8x1xf32>
    %1449 = arith.addf %1447, %1448 : vector<8x1xf32>
    %cst_388 = arith.constant 5.000000e-01 : f32
    %1450 = vector.broadcast %cst_388 : f32 to vector<8x1xf32>
    %1451 = arith.subf %1449, %1450 : vector<8x1xf32>
    %cst_389 = arith.constant 4.000000e+00 : f32
    %1452 = vector.broadcast %cst_389 : f32 to vector<8x1xf32>
    %1453 = arith.mulf %1411, %1452 : vector<8x1xf32>
    %1454 = vector.extract_strided_slice %199 {offsets = [8, 31], sizes = [8, 1], strides = [1, 1]} : vector<16x32xf32> to vector<8x1xf32>
    %1455 = arith.addf %1453, %1454 : vector<8x1xf32>
    %cst_390 = arith.constant 5.000000e-01 : f32
    %1456 = vector.broadcast %cst_390 : f32 to vector<8x1xf32>
    %1457 = arith.subf %1455, %1456 : vector<8x1xf32>
    %1458 = vector.broadcast %1451 : vector<8x1xf32> to vector<8x16xf32>
    %1459 = vector.broadcast %1408 : vector<1x16xf32> to vector<8x16xf32>
    %1460 = arith.subf %1458, %1459 : vector<8x16xf32>
    %1461 = math.absf %1460 : vector<8x16xf32>
    %cst_391 = arith.constant 1.000000e+00 : f32
    %1462 = vector.broadcast %cst_391 : f32 to vector<8x16xf32>
    %1463 = arith.subf %1462, %1461 : vector<8x16xf32>
    %cst_392 = arith.constant 0.000000e+00 : f32
    %1464 = vector.broadcast %cst_392 : f32 to vector<8x16xf32>
    %1465 = arith.maximumf %1463, %1464 : vector<8x16xf32>
    %1466 = vector.broadcast %1457 : vector<8x1xf32> to vector<8x16xf32>
    %1467 = vector.broadcast %1409 : vector<1x16xf32> to vector<8x16xf32>
    %1468 = arith.subf %1466, %1467 : vector<8x16xf32>
    %1469 = math.absf %1468 : vector<8x16xf32>
    %cst_393 = arith.constant 1.000000e+00 : f32
    %1470 = vector.broadcast %cst_393 : f32 to vector<8x16xf32>
    %1471 = arith.subf %1470, %1469 : vector<8x16xf32>
    %cst_394 = arith.constant 0.000000e+00 : f32
    %1472 = vector.broadcast %cst_394 : f32 to vector<8x16xf32>
    %1473 = arith.maximumf %1471, %1472 : vector<8x16xf32>
    %1474 = arith.mulf %1465, %1473 : vector<8x16xf32>
    %1475 = vector.extract_strided_slice %1332 {offsets = [0, 3], sizes = [8, 1], strides = [1, 1]} : vector<8x4xf32> to vector<8x1xf32>
    %1476 = vector.broadcast %1475 : vector<8x1xf32> to vector<8x16xf32>
    %1477 = arith.mulf %1474, %1476 : vector<8x16xf32>
    %1478 = arith.addf %1445, %1477 : vector<8x16xf32>
    %1479 = vector.extract_strided_slice %193 {offsets = [144, 24], sizes = [16, 8], strides = [1, 1]} : vector<160x32xf32> to vector<16x8xf32>
    %cst_395 = arith.constant dense<0.000000e+00> : vector<8x8xf32>
    %1480 = tpu.matmul %1478, %1479, %cst_395 {dimension_numbers = #tpu.dot_dimension_numbers<[1], [0], [0], [1], [0, 0, 1, 1], [], []>} : vector<8x16xf32>, vector<16x8xf32>, vector<8x8xf32> -> vector<8x8xf32>
    %1481 = arith.addf %1407, %1480 : vector<8x8xf32>
    %1482 = tpu.concatenate %1001, %1161, %1321, %1481 in 1 : vector<8x8xf32>, vector<8x8xf32>, vector<8x8xf32>, vector<8x8xf32> -> vector<8x32xf32>
    %1483 = tpu.concatenate %841, %1482 in 0 : vector<8x32xf32>, vector<8x32xf32> -> vector<16x32xf32>
    %c0_396 = arith.constant 0 : index
    %c0_397 = arith.constant 0 : index
    %1484 = vector.load %arg18[%c0_396, %c0_397] : memref<32x32xf32, #tpu.memory_space<vmem>>, vector<32x32xf32>
    %cst_398 = arith.constant dense<0.000000e+00> : vector<16x32xf32>
    %1485 = tpu.matmul %1483, %1484, %cst_398 {dimension_numbers = #tpu.dot_dimension_numbers<[1], [0], [0], [1], [0, 0, 1, 1], [], []>} : vector<16x32xf32>, vector<32x32xf32>, vector<16x32xf32> -> vector<16x32xf32>
    %1486 = arith.addf %187, %1485 : vector<16x32xf32>
    %c0_399 = arith.constant 0 : index
    %c0_400 = arith.constant 0 : index
    %1487 = vector.load %arg19[%c0_399, %c0_400] : memref<1x32xf32, #tpu.memory_space<vmem>>, vector<1x32xf32>
    %1488 = vector.broadcast %1487 : vector<1x32xf32> to vector<16x32xf32>
    %1489 = arith.addf %1486, %1488 : vector<16x32xf32>
    %c0_401 = arith.constant 0 : index
    %c0_402 = arith.constant 0 : index
    %1490 = vector.load %arg20[%c0_401, %c0_402] : memref<1x32xf32, #tpu.memory_space<vmem>>, vector<1x32xf32>
    %c0_403 = arith.constant 0 : index
    %c0_404 = arith.constant 0 : index
    %1491 = vector.load %arg21[%c0_403, %c0_404] : memref<1x32xf32, #tpu.memory_space<vmem>>, vector<1x32xf32>
    %cst_405 = arith.constant dense<0.000000e+00> : vector<16xf32>
    %1492 = vector.multi_reduction <add>, %1489, %cst_405 [1] : vector<16x32xf32> to vector<16xf32>
    %1493 = vector.shape_cast %1492 : vector<16xf32> to vector<16x1xf32>
    %cst_406 = arith.constant 3.200000e+01 : f32
    %1494 = vector.broadcast %cst_406 : f32 to vector<16x1xf32>
    %1495 = arith.divf %1493, %1494 : vector<16x1xf32>
    %1496 = vector.broadcast %1495 : vector<16x1xf32> to vector<16x32xf32>
    %1497 = arith.subf %1489, %1496 : vector<16x32xf32>
    %1498 = arith.mulf %1497, %1497 : vector<16x32xf32>
    %cst_407 = arith.constant dense<0.000000e+00> : vector<16xf32>
    %1499 = vector.multi_reduction <add>, %1498, %cst_407 [1] : vector<16x32xf32> to vector<16xf32>
    %1500 = vector.shape_cast %1499 : vector<16xf32> to vector<16x1xf32>
    %cst_408 = arith.constant 3.200000e+01 : f32
    %1501 = vector.broadcast %cst_408 : f32 to vector<16x1xf32>
    %1502 = arith.divf %1500, %1501 : vector<16x1xf32>
    %1503 = vector.broadcast %1495 : vector<16x1xf32> to vector<16x32xf32>
    %1504 = arith.subf %1489, %1503 : vector<16x32xf32>
    %cst_409 = arith.constant 9.99999974E-6 : f32
    %1505 = vector.broadcast %cst_409 : f32 to vector<16x1xf32>
    %1506 = arith.addf %1502, %1505 : vector<16x1xf32>
    %1507 = math.rsqrt %1506 : vector<16x1xf32>
    %1508 = vector.broadcast %1507 : vector<16x1xf32> to vector<16x32xf32>
    %1509 = arith.mulf %1504, %1508 : vector<16x32xf32>
    %1510 = vector.broadcast %1490 : vector<1x32xf32> to vector<16x32xf32>
    %1511 = arith.mulf %1509, %1510 : vector<16x32xf32>
    %1512 = vector.broadcast %1491 : vector<1x32xf32> to vector<16x32xf32>
    %1513 = arith.addf %1511, %1512 : vector<16x32xf32>
    %c0_410 = arith.constant 0 : index
    %c0_411 = arith.constant 0 : index
    %1514 = vector.load %arg22[%c0_410, %c0_411] : memref<32x64xf32, #tpu.memory_space<vmem>>, vector<32x64xf32>
    %cst_412 = arith.constant dense<0.000000e+00> : vector<16x64xf32>
    %1515 = tpu.matmul %1513, %1514, %cst_412 {dimension_numbers = #tpu.dot_dimension_numbers<[1], [0], [0], [1], [0, 0, 1, 1], [], []>} : vector<16x32xf32>, vector<32x64xf32>, vector<16x64xf32> -> vector<16x64xf32>
    %c0_413 = arith.constant 0 : index
    %c0_414 = arith.constant 0 : index
    %1516 = vector.load %arg23[%c0_413, %c0_414] : memref<1x64xf32, #tpu.memory_space<vmem>>, vector<1x64xf32>
    %1517 = vector.broadcast %1516 : vector<1x64xf32> to vector<16x64xf32>
    %1518 = arith.addf %1515, %1517 : vector<16x64xf32>
    %cst_415 = arith.constant 0.000000e+00 : f32
    %1519 = vector.broadcast %cst_415 : f32 to vector<16x64xf32>
    %1520 = arith.maximumf %1518, %1519 : vector<16x64xf32>
    %c0_416 = arith.constant 0 : index
    %c0_417 = arith.constant 0 : index
    %1521 = vector.load %arg24[%c0_416, %c0_417] : memref<64x32xf32, #tpu.memory_space<vmem>>, vector<64x32xf32>
    %cst_418 = arith.constant dense<0.000000e+00> : vector<16x32xf32>
    %1522 = tpu.matmul %1520, %1521, %cst_418 {dimension_numbers = #tpu.dot_dimension_numbers<[1], [0], [0], [1], [0, 0, 1, 1], [], []>} : vector<16x64xf32>, vector<64x32xf32>, vector<16x32xf32> -> vector<16x32xf32>
    %1523 = arith.addf %1513, %1522 : vector<16x32xf32>
    %c0_419 = arith.constant 0 : index
    %c0_420 = arith.constant 0 : index
    %1524 = vector.load %arg25[%c0_419, %c0_420] : memref<1x32xf32, #tpu.memory_space<vmem>>, vector<1x32xf32>
    %1525 = vector.broadcast %1524 : vector<1x32xf32> to vector<16x32xf32>
    %1526 = arith.addf %1523, %1525 : vector<16x32xf32>
    %c0_421 = arith.constant 0 : index
    %c0_422 = arith.constant 0 : index
    %1527 = vector.load %arg26[%c0_421, %c0_422] : memref<1x32xf32, #tpu.memory_space<vmem>>, vector<1x32xf32>
    %c0_423 = arith.constant 0 : index
    %c0_424 = arith.constant 0 : index
    %1528 = vector.load %arg27[%c0_423, %c0_424] : memref<1x32xf32, #tpu.memory_space<vmem>>, vector<1x32xf32>
    %cst_425 = arith.constant dense<0.000000e+00> : vector<16xf32>
    %1529 = vector.multi_reduction <add>, %1526, %cst_425 [1] : vector<16x32xf32> to vector<16xf32>
    %1530 = vector.shape_cast %1529 : vector<16xf32> to vector<16x1xf32>
    %cst_426 = arith.constant 3.200000e+01 : f32
    %1531 = vector.broadcast %cst_426 : f32 to vector<16x1xf32>
    %1532 = arith.divf %1530, %1531 : vector<16x1xf32>
    %1533 = vector.broadcast %1532 : vector<16x1xf32> to vector<16x32xf32>
    %1534 = arith.subf %1526, %1533 : vector<16x32xf32>
    %1535 = arith.mulf %1534, %1534 : vector<16x32xf32>
    %cst_427 = arith.constant dense<0.000000e+00> : vector<16xf32>
    %1536 = vector.multi_reduction <add>, %1535, %cst_427 [1] : vector<16x32xf32> to vector<16xf32>
    %1537 = vector.shape_cast %1536 : vector<16xf32> to vector<16x1xf32>
    %cst_428 = arith.constant 3.200000e+01 : f32
    %1538 = vector.broadcast %cst_428 : f32 to vector<16x1xf32>
    %1539 = arith.divf %1537, %1538 : vector<16x1xf32>
    %1540 = vector.broadcast %1532 : vector<16x1xf32> to vector<16x32xf32>
    %1541 = arith.subf %1526, %1540 : vector<16x32xf32>
    %cst_429 = arith.constant 9.99999974E-6 : f32
    %1542 = vector.broadcast %cst_429 : f32 to vector<16x1xf32>
    %1543 = arith.addf %1539, %1542 : vector<16x1xf32>
    %1544 = math.rsqrt %1543 : vector<16x1xf32>
    %1545 = vector.broadcast %1544 : vector<16x1xf32> to vector<16x32xf32>
    %1546 = arith.mulf %1541, %1545 : vector<16x32xf32>
    %1547 = vector.broadcast %1527 : vector<1x32xf32> to vector<16x32xf32>
    %1548 = arith.mulf %1546, %1547 : vector<16x32xf32>
    %1549 = vector.broadcast %1528 : vector<1x32xf32> to vector<16x32xf32>
    %1550 = arith.addf %1548, %1549 : vector<16x32xf32>
    %c0_430 = arith.constant 0 : index
    %c0_431 = arith.constant 0 : index
    %1551 = vector.load %arg28[%c0_430, %c0_431] : memref<16x32xf32, #tpu.memory_space<vmem>>, vector<16x32xf32>
    tpu.vector_store %arg28[%c0_430, %c0_431], %1550 {strides = array<i32>} : memref<16x32xf32, #tpu.memory_space<vmem>>, vector<16x32xf32>,
    return
  }
}

</mosaic_0001>

<llo_original>
// kernel: tpu_custom_call.1
$region0: #{tpu_custom_call.1}
  #allocation0 [shape = 'u32[]', space=smem, size = 0x4, offset = 0x4, fixed_abs, tag = 'smem constant byte address 0x4 - core index']
  #allocation1 [shape = 'u32[72,128]{1,0:T(1,128)}', space=vmem, size = 0x9000, scoped, tag = 'internal scratch']
  %s0 = inlined_call_operand.vmem [shape: f32[16,32], index: 0, kind: input, shape index: {}]
  %s1 = inlined_call_operand.vmem [shape: f32[16,32], index: 1, kind: input, shape index: {}]
  %s2 = inlined_call_operand.vmem [shape: f32[160,32], index: 2, kind: input, shape index: {}]
  %s3 = inlined_call_operand.vmem [shape: f32[16,4], index: 3, kind: input, shape index: {}]
  %s4 = inlined_call_operand.vmem [shape: f32[1,80], index: 4, kind: input, shape index: {}]
  %s5 = inlined_call_operand.vmem [shape: f32[1,80], index: 5, kind: input, shape index: {}]
  %s6 = inlined_call_operand.vmem [shape: f32[32,64], index: 6, kind: input, shape index: {}]
  %s7 = inlined_call_operand.vmem [shape: f32[1,64], index: 7, kind: input, shape index: {}]
  %s8 = inlined_call_operand.vmem [shape: f32[32,32], index: 8, kind: input, shape index: {}]
  %s9 = inlined_call_operand.vmem [shape: f32[1,32], index: 9, kind: input, shape index: {}]
  %s10 = inlined_call_operand.vmem [shape: f32[32,32], index: 10, kind: input, shape index: {}]
  %s11 = inlined_call_operand.vmem [shape: f32[1,32], index: 11, kind: input, shape index: {}]
  %s12 = inlined_call_operand.vmem [shape: f32[1,32], index: 12, kind: input, shape index: {}]
  %s13 = inlined_call_operand.vmem [shape: f32[1,32], index: 13, kind: input, shape index: {}]
  %s14 = inlined_call_operand.vmem [shape: f32[32,32], index: 14, kind: input, shape index: {}]
  %s15 = inlined_call_operand.vmem [shape: f32[1,32], index: 15, kind: input, shape index: {}]
  %s16 = inlined_call_operand.vmem [shape: f32[32,48], index: 16, kind: input, shape index: {}]
  %s17 = inlined_call_operand.vmem [shape: f32[1,48], index: 17, kind: input, shape index: {}]
  %s18 = inlined_call_operand.vmem [shape: f32[32,32], index: 18, kind: input, shape index: {}]
  %s19 = inlined_call_operand.vmem [shape: f32[1,32], index: 19, kind: input, shape index: {}]
  %s20 = inlined_call_operand.vmem [shape: f32[1,32], index: 20, kind: input, shape index: {}]
  %s21 = inlined_call_operand.hbm [shape: f32[1,32], index: 21, kind: input, shape index: {}]
  %s22 = inlined_call_operand.vmem [shape: f32[32,64], index: 22, kind: input, shape index: {}]
  %s23 = inlined_call_operand.hbm [shape: f32[1,64], index: 23, kind: input, shape index: {}]
  %s24 = inlined_call_operand.vmem [shape: f32[64,32], index: 24, kind: input, shape index: {}]
  %s25 = inlined_call_operand.hbm [shape: f32[1,32], index: 25, kind: input, shape index: {}]
  %s26 = inlined_call_operand.hbm [shape: f32[1,32], index: 26, kind: input, shape index: {}]
  %s27 = inlined_call_operand.hbm [shape: f32[1,32], index: 27, kind: input, shape index: {}]
  %s28 = inlined_call_operand.hbm [shape: f32[16,32], index: 28, kind: output, shape index: {}]
  %s29 = sld [smem:[#allocation0]]
  $region142: #{tpu_custom_call.1} parent=0
    _
  %s31 = ssub.s32 1, %s29
  %s32 = scalar_select 0, %s31, %s29
  $region1: #{tpu_custom_call.1} parent=0
    #allocation2 [shape = 'u8[512]{0}', space=vmem, size = 0x400, scoped, tag = 'input window, operand 21, single buffered']
    #allocation3 [shape = 's32[1]{0}', space=sflag, size = 0x4, scoped, tag = 'scoped memory for tpu_custom_call.1']
    #allocation4 [shape = 's32[1]{0}', space=sflag, size = 0x4, scoped, tag = 'scoped memory for tpu_custom_call.1']
    #allocation5 [shape = 'u8[512]{0}', space=vmem, size = 0x400, scoped, tag = 'input window, operand 23, single buffered']
    #allocation6 [shape = 's32[1]{0}', space=sflag, size = 0x4, scoped, tag = 'scoped memory for tpu_custom_call.1']
    #allocation7 [shape = 'u8[512]{0}', space=vmem, size = 0x400, scoped, tag = 'input window, operand 25, single buffered']
    #allocation8 [shape = 'u8[512]{0}', space=vmem, size = 0x400, scoped, tag = 'input window, operand 26, single buffered']
    #allocation9 [shape = 's32[1]{0}', space=sflag, size = 0x4, scoped, tag = 'scoped memory for tpu_custom_call.1']
    #allocation10 [shape = 'u8[512]{0}', space=vmem, size = 0x400, scoped, tag = 'input window, operand 27, single buffered']
    #allocation11 [shape = 'u8[8192]{0}', space=vmem, size = 0x2000, scoped, tag = 'output window, operand 0, single buffered']
    %33 = vsyncpa [#allocation3], 0
    %34 = vsyncpa [#allocation6], 0
    %35 = vsyncpa [#allocation9], 0
    %36 = vsyncpa [#allocation4], 0
    // Predicated region
    $region2: #{tpu_custom_call.1} parent=1 // pred_check
      _
    $region3: #{tpu_custom_call.1} parent=1 // pred_check_branch
      %38 = sbr.rel (0) target = $region5
    $region4: #{tpu_custom_call.1} parent=1 // pred_region
      _
    $region5: #{tpu_custom_call.1} parent=1 // pred_fallthru
      _
    // Predicated region
    $region6: #{tpu_custom_call.1} parent=1 // pred_check
      _
    $region7: #{tpu_custom_call.1} parent=1 // pred_check_branch
      %40 = sbr.rel (0) target = $region9
    $region8: #{tpu_custom_call.1} parent=1 // pred_region
      _
    $region9: #{tpu_custom_call.1} parent=1 // pred_fallthru
      _
    // Predicated region
    $region10: #{tpu_custom_call.1} parent=1 // pred_check
      _
    $region11: #{tpu_custom_call.1} parent=1 // pred_check_branch
      %42 = sbr.rel (0) target = $region13
    $region12: #{tpu_custom_call.1} parent=1 // pred_region
      _
    $region13: #{tpu_custom_call.1} parent=1 // pred_fallthru
      _
    // Predicated region
    $region14: #{tpu_custom_call.1} parent=1 // pred_check
      _
    $region15: #{tpu_custom_call.1} parent=1 // pred_check_branch
      %44 = sbr.rel (0) target = $region17
    $region16: #{tpu_custom_call.1} parent=1 // pred_region
      _
    $region17: #{tpu_custom_call.1} parent=1 // pred_fallthru
      _
    // Predicated region
    $region18: #{tpu_custom_call.1} parent=1 // pred_check
      _
    $region19: #{tpu_custom_call.1} parent=1 // pred_check_branch
      %46 = sbr.rel (0) target = $region21
    $region20: #{tpu_custom_call.1} parent=1 // pred_region
      _
    $region21: #{tpu_custom_call.1} parent=1 // pred_fallthru
      _
    // Predicated region
    $region22: #{tpu_custom_call.1} parent=1 // pred_check
      _
    $region23: #{tpu_custom_call.1} parent=1 // pred_check_branch
      %48 = sbr.rel (0) target = $region25
    $region24: #{tpu_custom_call.1} parent=1 // pred_region
      _
    $region25: #{tpu_custom_call.1} parent=1 // pred_fallthru
      _
    // Predicated region
    $region26: #{tpu_custom_call.1} parent=1 // pred_check
      _
    $region27: #{tpu_custom_call.1} parent=1 // pred_check_branch
      %50 = sbr.rel (0) target = $region29
    $region28: #{tpu_custom_call.1} parent=1 // pred_region
      _
    $region29: #{tpu_custom_call.1} parent=1 // pred_fallthru
      _
    // Predicated region
    $region30: #{tpu_custom_call.1} parent=1 // pred_check
      _
    $region31: #{tpu_custom_call.1} parent=1 // pred_check_branch
      %52 = sbr.rel (0) target = $region33
    $region32: #{tpu_custom_call.1} parent=1 // pred_region
      _
    $region33: #{tpu_custom_call.1} parent=1 // pred_fallthru
      _
    // Predicated region
    $region34: #{tpu_custom_call.1} parent=1 // pred_check
      _
    $region35: #{tpu_custom_call.1} parent=1 // pred_check_branch
      %54 = sbr.rel (0) target = $region37
    $region36: #{tpu_custom_call.1} parent=1 // pred_region
      _
    $region37: #{tpu_custom_call.1} parent=1 // pred_fallthru
      _
    // Predicated region
    $region38: #{tpu_custom_call.1} parent=1 // pred_check
      _
    $region39: #{tpu_custom_call.1} parent=1 // pred_check_branch
      %56 = sbr.rel (0) target = $region41
    $region40: #{tpu_custom_call.1} parent=1 // pred_region
      _
    $region41: #{tpu_custom_call.1} parent=1 // pred_fallthru
      _
    // Predicated region
    $region42: #{tpu_custom_call.1} parent=1 // pred_check
      _
    $region43: #{tpu_custom_call.1} parent=1 // pred_check_branch
      %58 = sbr.rel (0) target = $region45
    $region44: #{tpu_custom_call.1} parent=1 // pred_region
      _
    $region45: #{tpu_custom_call.1} parent=1 // pred_fallthru
      _
    // Predicated region
    $region46: #{tpu_custom_call.1} parent=1 // pred_check
      _
    $region47: #{tpu_custom_call.1} parent=1 // pred_check_branch
      %60 = sbr.rel (0) target = $region49
    $region48: #{tpu_custom_call.1} parent=1 // pred_region
      _
    $region49: #{tpu_custom_call.1} parent=1 // pred_fallthru
      _
    // Predicated region
    $region50: #{tpu_custom_call.1} parent=1 // pred_check
      _
    $region51: #{tpu_custom_call.1} parent=1 // pred_check_branch
      %62 = sbr.rel (0) target = $region53
    $region52: #{tpu_custom_call.1} parent=1 // pred_region
      _
    $region53: #{tpu_custom_call.1} parent=1 // pred_fallthru
      _
    // Predicated region
    $region54: #{tpu_custom_call.1} parent=1 // pred_check
      _
    $region55: #{tpu_custom_call.1} parent=1 // pred_check_branch
      %64 = sbr.rel (0) target = $region57
    $region56: #{tpu_custom_call.1} parent=1 // pred_region
      _
    $region57: #{tpu_custom_call.1} parent=1 // pred_fallthru
      _
    // Predicated region
    $region58: #{tpu_custom_call.1} parent=1 // pred_check
      _
    $region59: #{tpu_custom_call.1} parent=1 // pred_check_branch
      %66 = sbr.rel (0) target = $region61
    $region60: #{tpu_custom_call.1} parent=1 // pred_region
      _
    $region61: #{tpu_custom_call.1} parent=1 // pred_fallthru
      _
    // Predicated region
    $region62: #{tpu_custom_call.1} parent=1 // pred_check
      _
    $region63: #{tpu_custom_call.1} parent=1 // pred_check_branch
      %68 = sbr.rel (0) target = $region65
    $region64: #{tpu_custom_call.1} parent=1 // pred_region
      _
    $region65: #{tpu_custom_call.1} parent=1 // pred_fallthru
      _
    // Predicated region
    $region66: #{tpu_custom_call.1} parent=1 // pred_check
      _
    $region67: #{tpu_custom_call.1} parent=1 // pred_check_branch
      %70 = sbr.rel (0) target = $region69
    $region68: #{tpu_custom_call.1} parent=1 // pred_region
      _
    $region69: #{tpu_custom_call.1} parent=1 // pred_fallthru
      _
    // Predicated region
    $region70: #{tpu_custom_call.1} parent=1 // pred_check
      _
    $region71: #{tpu_custom_call.1} parent=1 // pred_check_branch
      %72 = sbr.rel (0) target = $region73
    $region72: #{tpu_custom_call.1} parent=1 // pred_region
      _
    $region73: #{tpu_custom_call.1} parent=1 // pred_fallthru
      _
    // Predicated region
    $region74: #{tpu_custom_call.1} parent=1 // pred_check
      _
    $region75: #{tpu_custom_call.1} parent=1 // pred_check_branch
      %74 = sbr.rel (0) target = $region77
    $region76: #{tpu_custom_call.1} parent=1 // pred_region
      _
    $region77: #{tpu_custom_call.1} parent=1 // pred_fallthru
      _
    // Predicated region
    $region78: #{tpu_custom_call.1} parent=1 // pred_check
      _
    $region79: #{tpu_custom_call.1} parent=1 // pred_check_branch
      %76 = sbr.rel (0) target = $region81
    $region80: #{tpu_custom_call.1} parent=1 // pred_region
      _
    $region81: #{tpu_custom_call.1} parent=1 // pred_fallthru
      _
    // Predicated region
    $region82: #{tpu_custom_call.1} parent=1 // pred_check
      _
    $region83: #{tpu_custom_call.1} parent=1 // pred_check_branch
      %78 = sbr.rel (0) target = $region85
    $region84: #{tpu_custom_call.1} parent=1 // pred_region
      _
    $region85: #{tpu_custom_call.1} parent=1 // pred_fallthru
      _
    // Predicated region
    $region86: #{tpu_custom_call.1} parent=1 // pred_check
      _
    $region87: #{tpu_custom_call.1} parent=1 // pred_check_branch
      %80 = sbr.rel (0) target = $region89
    $region88: #{tpu_custom_call.1} parent=1 // pred_region
      %82 = vsyncadd [#allocation3], 0
      %s84 = sshll.u32 %s21, 4
      %s85 = int_to_ptr.hbm [resolvable:$true] %s84
      %s86 = sshll.u32 [#allocation2], 4
      %s87 = int_to_ptr.vmem [resolvable:$true] %s86
      %89 = dma.hbm_to_vmem [thread:$0]  %s85, 16, %s87, [#allocation3]
    $region89: #{tpu_custom_call.1} parent=1 // pred_fallthru
      _
    // Predicated region
    $region90: #{tpu_custom_call.1} parent=1 // pred_check
      _
    $region91: #{tpu_custom_call.1} parent=1 // pred_check_branch
      %91 = sbr.rel (0) target = $region93
    $region92: #{tpu_custom_call.1} parent=1 // pred_region
      _
    $region93: #{tpu_custom_call.1} parent=1 // pred_fallthru
      _
    // Predicated region
    $region94: #{tpu_custom_call.1} parent=1 // pred_check
      _
    $region95: #{tpu_custom_call.1} parent=1 // pred_check_branch
      %93 = sbr.rel (0) target = $region97
    $region96: #{tpu_custom_call.1} parent=1 // pred_region
      %95 = vsyncadd [#allocation6], 0
      %s97 = sshll.u32 %s23, 4
      %s98 = int_to_ptr.hbm [resolvable:$true] %s97
      %s99 = sshll.u32 [#allocation5], 4
      %s100 = int_to_ptr.vmem [resolvable:$true] %s99
      %102 = dma.hbm_to_vmem [thread:$0]  %s98, 16, %s100, [#allocation6]
    $region97: #{tpu_custom_call.1} parent=1 // pred_fallthru
      _
    // Predicated region
    $region98: #{tpu_custom_call.1} parent=1 // pred_check
      _
    $region99: #{tpu_custom_call.1} parent=1 // pred_check_branch
      %104 = sbr.rel (0) target = $region101
    $region100: #{tpu_custom_call.1} parent=1 // pred_region
      _
    $region101: #{tpu_custom_call.1} parent=1 // pred_fallthru
      _
    // Predicated region
    $region102: #{tpu_custom_call.1} parent=1 // pred_check
      _
    $region103: #{tpu_custom_call.1} parent=1 // pred_check_branch
      %106 = sbr.rel (0) target = $region105
    $region104: #{tpu_custom_call.1} parent=1 // pred_region
      %108 = vsyncadd [#allocation6], 0
      %s110 = sshll.u32 %s25, 4
      %s111 = int_to_ptr.hbm [resolvable:$true] %s110
      %s112 = sshll.u32 [#allocation7], 4
      %s113 = int_to_ptr.vmem [resolvable:$true] %s112
      %115 = dma.hbm_to_vmem [thread:$0]  %s111, 16, %s113, [#allocation6]
    $region105: #{tpu_custom_call.1} parent=1 // pred_fallthru
      _
    // Predicated region
    $region106: #{tpu_custom_call.1} parent=1 // pred_check
      _
    $region107: #{tpu_custom_call.1} parent=1 // pred_check_branch
      %117 = sbr.rel (0) target = $region109
    $region108: #{tpu_custom_call.1} parent=1 // pred_region
      %119 = vsyncadd [#allocation9], 0
      %s121 = sshll.u32 %s26, 4
      %s122 = int_to_ptr.hbm [resolvable:$true] %s121
      %s123 = sshll.u32 [#allocation8], 4
      %s124 = int_to_ptr.vmem [resolvable:$true] %s123
      %126 = dma.hbm_to_vmem [thread:$0]  %s122, 16, %s124, [#allocation9]
    $region109: #{tpu_custom_call.1} parent=1 // pred_fallthru
      _
    // Predicated region
    $region110: #{tpu_custom_call.1} parent=1 // pred_check
      _
    $region111: #{tpu_custom_call.1} parent=1 // pred_check_branch
      %128 = sbr.rel (0) target = $region113
    $region112: #{tpu_custom_call.1} parent=1 // pred_region
      %130 = vsyncadd [#allocation9], 0
      %s132 = sshll.u32 %s27, 4
      %s133 = int_to_ptr.hbm [resolvable:$true] %s132
      %s134 = sshll.u32 [#allocation10], 4
      %s135 = int_to_ptr.vmem [resolvable:$true] %s134
      %137 = dma.hbm_to_vmem [thread:$0]  %s133, 16, %s135, [#allocation9]
    $region113: #{tpu_custom_call.1} parent=1 // pred_fallthru
      _
    // Predicated region
    $region114: #{tpu_custom_call.1} parent=1 // pred_check
      _
    $region115: #{tpu_custom_call.1} parent=1 // pred_check_branch
      %139 = sbr.rel (0) target = $region117
    $region116: #{tpu_custom_call.1} parent=1 // pred_region
      %141 = dma.done [#allocation3], 16
    $region117: #{tpu_custom_call.1} parent=1 // pred_fallthru
      _
    // Predicated region
    $region118: #{tpu_custom_call.1} parent=1 // pred_check
      _
    $region119: #{tpu_custom_call.1} parent=1 // pred_check_branch
      %143 = sbr.rel (0) target = $region121
    $region120: #{tpu_custom_call.1} parent=1 // pred_region
      %145 = dma.done [#allocation6], 16
    $region121: #{tpu_custom_call.1} parent=1 // pred_fallthru
      _
    // Predicated region
    $region122: #{tpu_custom_call.1} parent=1 // pred_check
      _
    $region123: #{tpu_custom_call.1} parent=1 // pred_check_branch
      %147 = sbr.rel (0) target = $region125
    $region124: #{tpu_custom_call.1} parent=1 // pred_region
      %149 = dma.done [#allocation6], 16
    $region125: #{tpu_custom_call.1} parent=1 // pred_fallthru
      _
    // Predicated region
    $region126: #{tpu_custom_call.1} parent=1 // pred_check
      _
    $region127: #{tpu_custom_call.1} parent=1 // pred_check_branch
      %151 = sbr.rel (0) target = $region129
    $region128: #{tpu_custom_call.1} parent=1 // pred_region
      %153 = dma.done [#allocation9], 16
    $region129: #{tpu_custom_call.1} parent=1 // pred_fallthru
      _
    // Predicated region
    $region130: #{tpu_custom_call.1} parent=1 // pred_check
      _
    $region131: #{tpu_custom_call.1} parent=1 // pred_check_branch
      %155 = sbr.rel (0) target = $region133
    $region132: #{tpu_custom_call.1} parent=1 // pred_region
      %157 = dma.done [#allocation9], 16
    $region133: #{tpu_custom_call.1} parent=1 // pred_fallthru
      _
    %v158 = vld [vmem:[%s0] sm:$0xff]
    %v159 = vld [vmem:[%s0 + $0x8] sm:$0xff]
    %v160 = vld [vmem:[%s1] sm:$0xff]
    %v161 = vld [vmem:[%s1 + $0x8] sm:$0xff]
    %v162 = vld [vmem:[%s2] sm:$0xff]
    %v163 = vld [vmem:[%s2 + $0x8] sm:$0xff]
    %v164 = vld [vmem:[%s2 + $0x10] sm:$0xff]
    %v165 = vld [vmem:[%s2 + $0x18] sm:$0xff]
    %v166 = vld [vmem:[%s2 + $0x20] sm:$0xff]
    %v167 = vld [vmem:[%s2 + $0x28] sm:$0xff]
    %v168 = vld [vmem:[%s2 + $0x30] sm:$0xff]
    %v169 = vld [vmem:[%s2 + $0x38] sm:$0xff]
    %v170 = vld [vmem:[%s2 + $0x40] sm:$0xff]
    %v171 = vld [vmem:[%s2 + $0x48] sm:$0xff]
    %v172 = vld [vmem:[%s2 + $0x50] sm:$0xff]
    %v173 = vld [vmem:[%s2 + $0x58] sm:$0xff]
    %v174 = vld [vmem:[%s2 + $0x60] sm:$0xff]
    %v175 = vld [vmem:[%s2 + $0x68] sm:$0xff]
    %v176 = vld [vmem:[%s2 + $0x70] sm:$0xff]
    %v177 = vld [vmem:[%s2 + $0x78] sm:$0xff]
    %v178 = vld [vmem:[%s2 + $0x80] sm:$0xff]
    %v179 = vld [vmem:[%s2 + $0x88] sm:$0xff]
    %v180 = vld [vmem:[%s2 + $0x90] sm:$0xff]
    %v181 = vld [vmem:[%s2 + $0x98] sm:$0xff]
    %v182 = vld [vmem:[%s3] sm:$0xff]
    %v183 = vld [vmem:[%s3 + $0x8] sm:$0xff]
    %v184 = vld [vmem:[%s4] sm:$0x1]
    %v185 = vld [vmem:[%s5] sm:$0x1]
    %v186 = vadd.f32 %v158, %v160
    %v187 = vadd.f32 %v159, %v161
    %v188 = vld [vmem:[%s6] sm:$0xff]
    %v189 = vld [vmem:[%s6 + $0x8] sm:$0xff]
    %v190 = vld [vmem:[%s6 + $0x10] sm:$0xff]
    %v191 = vld [vmem:[%s6 + $0x18] sm:$0xff]
    %v192 = vld [vmem:[%s7] sm:$0x1]
    %v194 = vperm.slane %v192, 0
    %vm196 = vcmask 261120
    %v198 = vsel %vm196, %v186, 0
    %v201 = vsel %vm196, %v187, 0
    %203 = vmatpush.msra.mxu0 0.0
    %204 = vmatpush.msra.mxu0 0.0
    %205 = vmatpush.msra.mxu0 0.0
    %206 = vmatpush.msra.mxu0 0.0
    %207 = vmatpush.msra.mxu0 0.0
    %208 = vmatpush.msra.mxu0 0.0
    %209 = vmatpush.msra.mxu0 0.0
    %210 = vmatpush.msra.mxu0 0.0
    %211 = vmatpush.msra.mxu0 0.0
    %212 = vmatpush.msra.mxu0 0.0
    %213 = vmatpush.msra.mxu0 0.0
    %214 = vmatpush.msra.mxu0 0.0
    %215 = vmatpush.msra.mxu0 %v191
    %216 = vmatpush.msra.mxu0 %v190
    %217 = vmatpush.msra.mxu0 %v189
    %218 = vmatpush.msra.mxu0 %v188
    %219 = vmatmul.f32.gmra.mxu0 %v198
    %v220 = vpop.f32.mrf.mxu0
    %v221 = vadd.f32 %v194, %v220
    %222 = vmatmul.f32.gmra.mxu0 %v201
    %v223 = vpop.f32.mrf.mxu0
    %v224 = vadd.f32 %v194, %v223
    %225 = vdwg.mxu0
    %v226 = vld [vmem:[%s8] sm:$0xff]
    %v227 = vld [vmem:[%s8 + $0x8] sm:$0xff]
    %v228 = vld [vmem:[%s8 + $0x10] sm:$0xff]
    %v229 = vld [vmem:[%s8 + $0x18] sm:$0xff]
    %v230 = vld [vmem:[%s9] sm:$0x1]
    %v232 = vperm.slane %v230, 0
    %v235 = vsel %vm196, %v158, 0
    %v238 = vsel %vm196, %v159, 0
    %240 = vmatpush.msra.mxu0 0.0
    %241 = vmatpush.msra.mxu0 0.0
    %242 = vmatpush.msra.mxu0 0.0
    %243 = vmatpush.msra.mxu0 0.0
    %244 = vmatpush.msra.mxu0 0.0
    %245 = vmatpush.msra.mxu0 0.0
    %246 = vmatpush.msra.mxu0 0.0
    %247 = vmatpush.msra.mxu0 0.0
    %248 = vmatpush.msra.mxu0 0.0
    %249 = vmatpush.msra.mxu0 0.0
    %250 = vmatpush.msra.mxu0 0.0
    %251 = vmatpush.msra.mxu0 0.0
    %252 = vmatpush.msra.mxu0 %v229
    %253 = vmatpush.msra.mxu0 %v228
    %254 = vmatpush.msra.mxu0 %v227
    %255 = vmatpush.msra.mxu0 %v226
    %256 = vmatmul.f32.gmra.mxu0 %v235
    %v257 = vpop.f32.mrf.mxu0
    %v258 = vadd.f32 %v232, %v257
    %259 = vmatmul.f32.gmra.mxu0 %v238
    %v260 = vpop.f32.mrf.mxu0
    %v261 = vadd.f32 %v232, %v260
    %262 = vdwg.mxu0
    %264 = vrot.lane.b32.xlu0 %v221, 96
    %v265 = vpop.permute.xlu0 %264
    %vm266 = vcmask 64512
    %v267 = vsel %vm266, %v221, 0
    %v269 = vsel %vm266, %v265, 0
    %271 = vmatpush.xpose.msra.mxu0 0.0
    %272 = vmatpush.xpose.msra.mxu0 0.0
    %273 = vmatpush.xpose.msra.mxu0 0.0
    %274 = vmatpush.xpose.msra.mxu0 0.0
    %275 = vmatpush.xpose.msra.mxu0 0.0
    %276 = vmatpush.xpose.msra.mxu0 0.0
    %277 = vmatpush.xpose.msra.mxu0 0.0
    %278 = vmatpush.xpose.msra.mxu0 0.0
    %279 = vmatpush.xpose.msra.mxu0 0.0
    %280 = vmatpush.xpose.msra.mxu0 0.0
    %281 = vmatpush.xpose.msra.mxu0 0.0
    %282 = vmatpush.xpose.msra.mxu0 0.0
    %283 = vmatpush.xpose.msra.mxu0 0.0
    %284 = vmatpush.xpose.msra.mxu0 0.0
    %285 = vmatpush.xpose.msra.mxu0 0.0
    %286 = vmatpush.xpose.msra.mxu0 %v269
    %287 = vmatmul.f32.gmra.mxu0 %v267
    %v288 = vpop.f32.mrf.mxu0
    %v289 = vadd.f32 0.0, %v288
    %290 = vdwg.mxu0
    %v291 = vmul.f32 %v289, 0.35355338
    %v292 = vsel %vm266, %v291, -inf
    %293 = vmax.xlane.f32.xlu0 %v292
    %v294 = vpop.xlane.xlu0 %293
    %v295 = vsub.f32 %v291, %v294
    %v296 = vmul.f32 %v295, 1.442695
    %v297 = vpow.pop %v296
    %v298 = vsel %vm266, %v297, 0.0
    %299 = vadd.xlane.f32.xlu0 %v298
    %v300 = vpop.xlane.xlu0 %299
    %v302 = vsel %vm266, %v297, 0
    %304 = vmatpush.msra.mxu0 0.0
    %305 = vmatpush.msra.mxu0 0.0
    %306 = vmatpush.msra.mxu0 0.0
    %307 = vmatpush.msra.mxu0 0.0
    %308 = vmatpush.msra.mxu0 0.0
    %309 = vmatpush.msra.mxu0 0.0
    %310 = vmatpush.msra.mxu0 0.0
    %311 = vmatpush.msra.mxu0 0.0
    %312 = vmatpush.msra.mxu0 0.0
    %313 = vmatpush.msra.mxu0 0.0
    %314 = vmatpush.msra.mxu0 0.0
    %315 = vmatpush.msra.mxu0 0.0
    %316 = vmatpush.msra.mxu0 0.0
    %317 = vmatpush.msra.mxu0 0.0
    %318 = vmatpush.msra.mxu0 0.0
    %319 = vmatpush.msra.mxu0 %v258
    %320 = vmatmul.f32.gmra.mxu0 %v302
    %v321 = vpop.f32.mrf.mxu0
    %v322 = vadd.f32 0.0, %v321
    %323 = vdwg.mxu0
    %v324 = vrcp.pop %v300
    %v325 = vmul.f32 %v322, %v324
    %326 = vrot.lane.b32.xlu0 %v221, 120
    %v327 = vpop.permute.xlu0 %326
    %328 = vrot.lane.b32.xlu0 %v221, 88
    %v329 = vpop.permute.xlu0 %328
    %v330 = vsel %vm266, %v327, 0
    %v332 = vsel %vm266, %v329, 0
    %334 = vmatpush.xpose.msra.mxu0 0.0
    %335 = vmatpush.xpose.msra.mxu0 0.0
    %336 = vmatpush.xpose.msra.mxu0 0.0
    %337 = vmatpush.xpose.msra.mxu0 0.0
    %338 = vmatpush.xpose.msra.mxu0 0.0
    %339 = vmatpush.xpose.msra.mxu0 0.0
    %340 = vmatpush.xpose.msra.mxu0 0.0
    %341 = vmatpush.xpose.msra.mxu0 0.0
    %342 = vmatpush.xpose.msra.mxu0 0.0
    %343 = vmatpush.xpose.msra.mxu0 0.0
    %344 = vmatpush.xpose.msra.mxu0 0.0
    %345 = vmatpush.xpose.msra.mxu0 0.0
    %346 = vmatpush.xpose.msra.mxu0 0.0
    %347 = vmatpush.xpose.msra.mxu0 0.0
    %348 = vmatpush.xpose.msra.mxu0 0.0
    %349 = vmatpush.xpose.msra.mxu0 %v332
    %350 = vmatmul.f32.gmra.mxu0 %v330
    %v351 = vpop.f32.mrf.mxu0
    %v352 = vadd.f32 0.0, %v351
    %353 = vdwg.mxu0
    %v354 = vmul.f32 %v352, 0.35355338
    %v355 = vsel %vm266, %v354, -inf
    %356 = vmax.xlane.f32.xlu0 %v355
    %v357 = vpop.xlane.xlu0 %356
    %v358 = vsub.f32 %v354, %v357
    %v359 = vmul.f32 %v358, 1.442695
    %v360 = vpow.pop %v359
    %v361 = vsel %vm266, %v360, 0.0
    %362 = vadd.xlane.f32.xlu0 %v361
    %v363 = vpop.xlane.xlu0 %362
    %365 = vrot.lane.b32.xlu0 %v258, 120
    %v366 = vpop.permute.xlu0 %365
    %v369 = vsel %vm266, %v360, 0
    %371 = vmatpush.msra.mxu0 0.0
    %372 = vmatpush.msra.mxu0 0.0
    %373 = vmatpush.msra.mxu0 0.0
    %374 = vmatpush.msra.mxu0 0.0
    %375 = vmatpush.msra.mxu0 0.0
    %376 = vmatpush.msra.mxu0 0.0
    %377 = vmatpush.msra.mxu0 0.0
    %378 = vmatpush.msra.mxu0 0.0
    %379 = vmatpush.msra.mxu0 0.0
    %380 = vmatpush.msra.mxu0 0.0
    %381 = vmatpush.msra.mxu0 0.0
    %382 = vmatpush.msra.mxu0 0.0
    %383 = vmatpush.msra.mxu0 0.0
    %384 = vmatpush.msra.mxu0 0.0
    %385 = vmatpush.msra.mxu0 0.0
    %386 = vmatpush.msra.mxu0 %v366
    %387 = vmatmul.f32.gmra.mxu0 %v369
    %v388 = vpop.f32.mrf.mxu0
    %v389 = vadd.f32 0.0, %v388
    %390 = vdwg.mxu0
    %v391 = vrcp.pop %v363
    %v392 = vmul.f32 %v389, %v391
    %393 = vrot.lane.b32.xlu0 %v221, 112
    %v394 = vpop.permute.xlu0 %393
    %395 = vrot.lane.b32.xlu0 %v221, 80
    %v396 = vpop.permute.xlu0 %395
    %v397 = vsel %vm266, %v394, 0
    %v399 = vsel %vm266, %v396, 0
    %401 = vmatpush.xpose.msra.mxu0 0.0
    %402 = vmatpush.xpose.msra.mxu0 0.0
    %403 = vmatpush.xpose.msra.mxu0 0.0
    %404 = vmatpush.xpose.msra.mxu0 0.0
    %405 = vmatpush.xpose.msra.mxu0 0.0
    %406 = vmatpush.xpose.msra.mxu0 0.0
    %407 = vmatpush.xpose.msra.mxu0 0.0
    %408 = vmatpush.xpose.msra.mxu0 0.0
    %409 = vmatpush.xpose.msra.mxu0 0.0
    %410 = vmatpush.xpose.msra.mxu0 0.0
    %411 = vmatpush.xpose.msra.mxu0 0.0
    %412 = vmatpush.xpose.msra.mxu0 0.0
    %413 = vmatpush.xpose.msra.mxu0 0.0
    %414 = vmatpush.xpose.msra.mxu0 0.0
    %415 = vmatpush.xpose.msra.mxu0 0.0
    %416 = vmatpush.xpose.msra.mxu0 %v399
    %417 = vmatmul.f32.gmra.mxu0 %v397
    %v418 = vpop.f32.mrf.mxu0
    %v419 = vadd.f32 0.0, %v418
    %420 = vdwg.mxu0
    %v421 = vmul.f32 %v419, 0.35355338
    %v422 = vsel %vm266, %v421, -inf
    %423 = vmax.xlane.f32.xlu0 %v422
    %v424 = vpop.xlane.xlu0 %423
    %v425 = vsub.f32 %v421, %v424
    %v426 = vmul.f32 %v425, 1.442695
    %v427 = vpow.pop %v426
    %v428 = vsel %vm266, %v427, 0.0
    %429 = vadd.xlane.f32.xlu0 %v428
    %v430 = vpop.xlane.xlu0 %429
    %431 = vrot.lane.b32.xlu0 %v258, 112
    %v432 = vpop.permute.xlu0 %431
    %v435 = vsel %vm266, %v427, 0
    %437 = vmatpush.msra.mxu0 0.0
    %438 = vmatpush.msra.mxu0 0.0
    %439 = vmatpush.msra.mxu0 0.0
    %440 = vmatpush.msra.mxu0 0.0
    %441 = vmatpush.msra.mxu0 0.0
    %442 = vmatpush.msra.mxu0 0.0
    %443 = vmatpush.msra.mxu0 0.0
    %444 = vmatpush.msra.mxu0 0.0
    %445 = vmatpush.msra.mxu0 0.0
    %446 = vmatpush.msra.mxu0 0.0
    %447 = vmatpush.msra.mxu0 0.0
    %448 = vmatpush.msra.mxu0 0.0
    %449 = vmatpush.msra.mxu0 0.0
    %450 = vmatpush.msra.mxu0 0.0
    %451 = vmatpush.msra.mxu0 0.0
    %452 = vmatpush.msra.mxu0 %v432
    %453 = vmatmul.f32.gmra.mxu0 %v435
    %v454 = vpop.f32.mrf.mxu0
    %v455 = vadd.f32 0.0, %v454
    %456 = vdwg.mxu0
    %v457 = vrcp.pop %v430
    %v458 = vmul.f32 %v455, %v457
    %459 = vrot.lane.b32.xlu0 %v221, 104
    %v460 = vpop.permute.xlu0 %459
    %461 = vrot.lane.b32.xlu0 %v221, 72
    %v462 = vpop.permute.xlu0 %461
    %v463 = vsel %vm266, %v460, 0
    %v465 = vsel %vm266, %v462, 0
    %467 = vmatpush.xpose.msra.mxu0 0.0
    %468 = vmatpush.xpose.msra.mxu0 0.0
    %469 = vmatpush.xpose.msra.mxu0 0.0
    %470 = vmatpush.xpose.msra.mxu0 0.0
    %471 = vmatpush.xpose.msra.mxu0 0.0
    %472 = vmatpush.xpose.msra.mxu0 0.0
    %473 = vmatpush.xpose.msra.mxu0 0.0
    %474 = vmatpush.xpose.msra.mxu0 0.0
    %475 = vmatpush.xpose.msra.mxu0 0.0
    %476 = vmatpush.xpose.msra.mxu0 0.0
    %477 = vmatpush.xpose.msra.mxu0 0.0
    %478 = vmatpush.xpose.msra.mxu0 0.0
    %479 = vmatpush.xpose.msra.mxu0 0.0
    %480 = vmatpush.xpose.msra.mxu0 0.0
    %481 = vmatpush.xpose.msra.mxu0 0.0
    %482 = vmatpush.xpose.msra.mxu0 %v465
    %483 = vmatmul.f32.gmra.mxu0 %v463
    %v484 = vpop.f32.mrf.mxu0
    %v485 = vadd.f32 0.0, %v484
    %486 = vdwg.mxu0
    %v487 = vmul.f32 %v485, 0.35355338
    %v488 = vsel %vm266, %v487, -inf
    %489 = vmax.xlane.f32.xlu0 %v488
    %v490 = vpop.xlane.xlu0 %489
    %v491 = vsub.f32 %v487, %v490
    %v492 = vmul.f32 %v491, 1.442695
    %v493 = vpow.pop %v492
    %v494 = vsel %vm266, %v493, 0.0
    %495 = vadd.xlane.f32.xlu0 %v494
    %v496 = vpop.xlane.xlu0 %495
    %497 = vrot.lane.b32.xlu0 %v258, 104
    %v498 = vpop.permute.xlu0 %497
    %v501 = vsel %vm266, %v493, 0
    %503 = vmatpush.msra.mxu0 0.0
    %504 = vmatpush.msra.mxu0 0.0
    %505 = vmatpush.msra.mxu0 0.0
    %506 = vmatpush.msra.mxu0 0.0
    %507 = vmatpush.msra.mxu0 0.0
    %508 = vmatpush.msra.mxu0 0.0
    %509 = vmatpush.msra.mxu0 0.0
    %510 = vmatpush.msra.mxu0 0.0
    %511 = vmatpush.msra.mxu0 0.0
    %512 = vmatpush.msra.mxu0 0.0
    %513 = vmatpush.msra.mxu0 0.0
    %514 = vmatpush.msra.mxu0 0.0
    %515 = vmatpush.msra.mxu0 0.0
    %516 = vmatpush.msra.mxu0 0.0
    %517 = vmatpush.msra.mxu0 0.0
    %518 = vmatpush.msra.mxu0 %v498
    %519 = vmatmul.f32.gmra.mxu0 %v501
    %v520 = vpop.f32.mrf.mxu0
    %v521 = vadd.f32 0.0, %v520
    %522 = vdwg.mxu0
    %v523 = vrcp.pop %v496
    %v524 = vmul.f32 %v521, %v523
    %526 = vrot.lane.b32.xlu0 %v392, 8
    %v527 = vpop.permute.xlu0 %526
    %530 = vrot.lane.b32.xlu0 %v458, 16
    %v531 = vpop.permute.xlu0 %530
    %534 = vrot.lane.b32.xlu0 %v524, 24
    %v535 = vpop.permute.xlu0 %534
    %v537 = vsel %vm266, %v325, %v527
    %vm538 = vcmask 130048
    %v539 = vsel %vm538, %v537, %v531
    %vm540 = vcmask 195584
    %v541 = vsel %vm540, %v539, %v535
    %543 = vrot.lane.b32.xlu0 %v224, 96
    %v544 = vpop.permute.xlu0 %543
    %v545 = vsel %vm266, %v224, 0
    %v547 = vsel %vm266, %v544, 0
    %549 = vmatpush.xpose.msra.mxu0 0.0
    %550 = vmatpush.xpose.msra.mxu0 0.0
    %551 = vmatpush.xpose.msra.mxu0 0.0
    %552 = vmatpush.xpose.msra.mxu0 0.0
    %553 = vmatpush.xpose.msra.mxu0 0.0
    %554 = vmatpush.xpose.msra.mxu0 0.0
    %555 = vmatpush.xpose.msra.mxu0 0.0
    %556 = vmatpush.xpose.msra.mxu0 0.0
    %557 = vmatpush.xpose.msra.mxu0 0.0
    %558 = vmatpush.xpose.msra.mxu0 0.0
    %559 = vmatpush.xpose.msra.mxu0 0.0
    %560 = vmatpush.xpose.msra.mxu0 0.0
    %561 = vmatpush.xpose.msra.mxu0 0.0
    %562 = vmatpush.xpose.msra.mxu0 0.0
    %563 = vmatpush.xpose.msra.mxu0 0.0
    %564 = vmatpush.xpose.msra.mxu0 %v547
    %565 = vmatmul.f32.gmra.mxu0 %v545
    %v566 = vpop.f32.mrf.mxu0
    %v567 = vadd.f32 0.0, %v566
    %568 = vdwg.mxu0
    %v569 = vmul.f32 %v567, 0.35355338
    %v570 = vsel %vm266, %v569, -inf
    %571 = vmax.xlane.f32.xlu0 %v570
    %v572 = vpop.xlane.xlu0 %571
    %v573 = vsub.f32 %v569, %v572
    %v574 = vmul.f32 %v573, 1.442695
    %v575 = vpow.pop %v574
    %v576 = vsel %vm266, %v575, 0.0
    %577 = vadd.xlane.f32.xlu0 %v576
    %v578 = vpop.xlane.xlu0 %577
    %v580 = vsel %vm266, %v575, 0
    %582 = vmatpush.msra.mxu0 0.0
    %583 = vmatpush.msra.mxu0 0.0
    %584 = vmatpush.msra.mxu0 0.0
    %585 = vmatpush.msra.mxu0 0.0
    %586 = vmatpush.msra.mxu0 0.0
    %587 = vmatpush.msra.mxu0 0.0
    %588 = vmatpush.msra.mxu0 0.0
    %589 = vmatpush.msra.mxu0 0.0
    %590 = vmatpush.msra.mxu0 0.0
    %591 = vmatpush.msra.mxu0 0.0
    %592 = vmatpush.msra.mxu0 0.0
    %593 = vmatpush.msra.mxu0 0.0
    %594 = vmatpush.msra.mxu0 0.0
    %595 = vmatpush.msra.mxu0 0.0
    %596 = vmatpush.msra.mxu0 0.0
    %597 = vmatpush.msra.mxu0 %v261
    %598 = vmatmul.f32.gmra.mxu0 %v580
    %v599 = vpop.f32.mrf.mxu0
    %v600 = vadd.f32 0.0, %v599
    %601 = vdwg.mxu0
    %v602 = vrcp.pop %v578
    %v603 = vmul.f32 %v600, %v602
    %604 = vrot.lane.b32.xlu0 %v224, 120
    %v605 = vpop.permute.xlu0 %604
    %606 = vrot.lane.b32.xlu0 %v224, 88
    %v607 = vpop.permute.xlu0 %606
    %v608 = vsel %vm266, %v605, 0
    %v610 = vsel %vm266, %v607, 0
    %612 = vmatpush.xpose.msra.mxu0 0.0
    %613 = vmatpush.xpose.msra.mxu0 0.0
    %614 = vmatpush.xpose.msra.mxu0 0.0
    %615 = vmatpush.xpose.msra.mxu0 0.0
    %616 = vmatpush.xpose.msra.mxu0 0.0
    %617 = vmatpush.xpose.msra.mxu0 0.0
    %618 = vmatpush.xpose.msra.mxu0 0.0
    %619 = vmatpush.xpose.msra.mxu0 0.0
    %620 = vmatpush.xpose.msra.mxu0 0.0
    %621 = vmatpush.xpose.msra.mxu0 0.0
    %622 = vmatpush.xpose.msra.mxu0 0.0
    %623 = vmatpush.xpose.msra.mxu0 0.0
    %624 = vmatpush.xpose.msra.mxu0 0.0
    %625 = vmatpush.xpose.msra.mxu0 0.0
    %626 = vmatpush.xpose.msra.mxu0 0.0
    %627 = vmatpush.xpose.msra.mxu0 %v610
    %628 = vmatmul.f32.gmra.mxu0 %v608
    %v629 = vpop.f32.mrf.mxu0
    %v630 = vadd.f32 0.0, %v629
    %631 = vdwg.mxu0
    %v632 = vmul.f32 %v630, 0.35355338
    %v633 = vsel %vm266, %v632, -inf
    %634 = vmax.xlane.f32.xlu0 %v633
    %v635 = vpop.xlane.xlu0 %634
    %v636 = vsub.f32 %v632, %v635
    %v637 = vmul.f32 %v636, 1.442695
    %v638 = vpow.pop %v637
    %v639 = vsel %vm266, %v638, 0.0
    %640 = vadd.xlane.f32.xlu0 %v639
    %v641 = vpop.xlane.xlu0 %640
    %643 = vrot.lane.b32.xlu0 %v261, 120
    %v644 = vpop.permute.xlu0 %643
    %v647 = vsel %vm266, %v638, 0
    %649 = vmatpush.msra.mxu0 0.0
    %650 = vmatpush.msra.mxu0 0.0
    %651 = vmatpush.msra.mxu0 0.0
    %652 = vmatpush.msra.mxu0 0.0
    %653 = vmatpush.msra.mxu0 0.0
    %654 = vmatpush.msra.mxu0 0.0
    %655 = vmatpush.msra.mxu0 0.0
    %656 = vmatpush.msra.mxu0 0.0
    %657 = vmatpush.msra.mxu0 0.0
    %658 = vmatpush.msra.mxu0 0.0
    %659 = vmatpush.msra.mxu0 0.0
    %660 = vmatpush.msra.mxu0 0.0
    %661 = vmatpush.msra.mxu0 0.0
    %662 = vmatpush.msra.mxu0 0.0
    %663 = vmatpush.msra.mxu0 0.0
    %664 = vmatpush.msra.mxu0 %v644
    %665 = vmatmul.f32.gmra.mxu0 %v647
    %v666 = vpop.f32.mrf.mxu0
    %v667 = vadd.f32 0.0, %v666
    %668 = vdwg.mxu0
    %v669 = vrcp.pop %v641
    %v670 = vmul.f32 %v667, %v669
    %671 = vrot.lane.b32.xlu0 %v224, 112
    %v672 = vpop.permute.xlu0 %671
    %673 = vrot.lane.b32.xlu0 %v224, 80
    %v674 = vpop.permute.xlu0 %673
    %v675 = vsel %vm266, %v672, 0
    %v677 = vsel %vm266, %v674, 0
    %679 = vmatpush.xpose.msra.mxu0 0.0
    %680 = vmatpush.xpose.msra.mxu0 0.0
    %681 = vmatpush.xpose.msra.mxu0 0.0
    %682 = vmatpush.xpose.msra.mxu0 0.0
    %683 = vmatpush.xpose.msra.mxu0 0.0
    %684 = vmatpush.xpose.msra.mxu0 0.0
    %685 = vmatpush.xpose.msra.mxu0 0.0
    %686 = vmatpush.xpose.msra.mxu0 0.0
    %687 = vmatpush.xpose.msra.mxu0 0.0
    %688 = vmatpush.xpose.msra.mxu0 0.0
    %689 = vmatpush.xpose.msra.mxu0 0.0
    %690 = vmatpush.xpose.msra.mxu0 0.0
    %691 = vmatpush.xpose.msra.mxu0 0.0
    %692 = vmatpush.xpose.msra.mxu0 0.0
    %693 = vmatpush.xpose.msra.mxu0 0.0
    %694 = vmatpush.xpose.msra.mxu0 %v677
    %695 = vmatmul.f32.gmra.mxu0 %v675
    %v696 = vpop.f32.mrf.mxu0
    %v697 = vadd.f32 0.0, %v696
    %698 = vdwg.mxu0
    %v699 = vmul.f32 %v697, 0.35355338
    %v700 = vsel %vm266, %v699, -inf
    %701 = vmax.xlane.f32.xlu0 %v700
    %v702 = vpop.xlane.xlu0 %701
    %v703 = vsub.f32 %v699, %v702
    %v704 = vmul.f32 %v703, 1.442695
    %v705 = vpow.pop %v704
    %v706 = vsel %vm266, %v705, 0.0
    %707 = vadd.xlane.f32.xlu0 %v706
    %v708 = vpop.xlane.xlu0 %707
    %709 = vrot.lane.b32.xlu0 %v261, 112
    %v710 = vpop.permute.xlu0 %709
    %v713 = vsel %vm266, %v705, 0
    %715 = vmatpush.msra.mxu0 0.0
    %716 = vmatpush.msra.mxu0 0.0
    %717 = vmatpush.msra.mxu0 0.0
    %718 = vmatpush.msra.mxu0 0.0
    %719 = vmatpush.msra.mxu0 0.0
    %720 = vmatpush.msra.mxu0 0.0
    %721 = vmatpush.msra.mxu0 0.0
    %722 = vmatpush.msra.mxu0 0.0
    %723 = vmatpush.msra.mxu0 0.0
    %724 = vmatpush.msra.mxu0 0.0
    %725 = vmatpush.msra.mxu0 0.0
    %726 = vmatpush.msra.mxu0 0.0
    %727 = vmatpush.msra.mxu0 0.0
    %728 = vmatpush.msra.mxu0 0.0
    %729 = vmatpush.msra.mxu0 0.0
    %730 = vmatpush.msra.mxu0 %v710
    %731 = vmatmul.f32.gmra.mxu0 %v713
    %v732 = vpop.f32.mrf.mxu0
    %v733 = vadd.f32 0.0, %v732
    %734 = vdwg.mxu0
    %v735 = vrcp.pop %v708
    %v736 = vmul.f32 %v733, %v735
    %737 = vrot.lane.b32.xlu0 %v224, 104
    %v738 = vpop.permute.xlu0 %737
    %739 = vrot.lane.b32.xlu0 %v224, 72
    %v740 = vpop.permute.xlu0 %739
    %v741 = vsel %vm266, %v738, 0
    %v743 = vsel %vm266, %v740, 0
    %745 = vmatpush.xpose.msra.mxu0 0.0
    %746 = vmatpush.xpose.msra.mxu0 0.0
    %747 = vmatpush.xpose.msra.mxu0 0.0
    %748 = vmatpush.xpose.msra.mxu0 0.0
    %749 = vmatpush.xpose.msra.mxu0 0.0
    %750 = vmatpush.xpose.msra.mxu0 0.0
    %751 = vmatpush.xpose.msra.mxu0 0.0
    %752 = vmatpush.xpose.msra.mxu0 0.0
    %753 = vmatpush.xpose.msra.mxu0 0.0
    %754 = vmatpush.xpose.msra.mxu0 0.0
    %755 = vmatpush.xpose.msra.mxu0 0.0
    %756 = vmatpush.xpose.msra.mxu0 0.0
    %757 = vmatpush.xpose.msra.mxu0 0.0
    %758 = vmatpush.xpose.msra.mxu0 0.0
    %759 = vmatpush.xpose.msra.mxu0 0.0
    %760 = vmatpush.xpose.msra.mxu0 %v743
    %761 = vmatmul.f32.gmra.mxu0 %v741
    %v762 = vpop.f32.mrf.mxu0
    %v763 = vadd.f32 0.0, %v762
    %764 = vdwg.mxu0
    %v765 = vmul.f32 %v763, 0.35355338
    %v766 = vsel %vm266, %v765, -inf
    %767 = vmax.xlane.f32.xlu0 %v766
    %v768 = vpop.xlane.xlu0 %767
    %v769 = vsub.f32 %v765, %v768
    %v770 = vmul.f32 %v769, 1.442695
    %v771 = vpow.pop %v770
    %v772 = vsel %vm266, %v771, 0.0
    %773 = vadd.xlane.f32.xlu0 %v772
    %v774 = vpop.xlane.xlu0 %773
    %775 = vrot.lane.b32.xlu0 %v261, 104
    %v776 = vpop.permute.xlu0 %775
    %v779 = vsel %vm266, %v771, 0
    %781 = vmatpush.msra.mxu0 0.0
    %782 = vmatpush.msra.mxu0 0.0
    %783 = vmatpush.msra.mxu0 0.0
    %784 = vmatpush.msra.mxu0 0.0
    %785 = vmatpush.msra.mxu0 0.0
    %786 = vmatpush.msra.mxu0 0.0
    %787 = vmatpush.msra.mxu0 0.0
    %788 = vmatpush.msra.mxu0 0.0
    %789 = vmatpush.msra.mxu0 0.0
    %790 = vmatpush.msra.mxu0 0.0
    %791 = vmatpush.msra.mxu0 0.0
    %792 = vmatpush.msra.mxu0 0.0
    %793 = vmatpush.msra.mxu0 0.0
    %794 = vmatpush.msra.mxu0 0.0
    %795 = vmatpush.msra.mxu0 0.0
    %796 = vmatpush.msra.mxu0 %v776
    %797 = vmatmul.f32.gmra.mxu0 %v779
    %v798 = vpop.f32.mrf.mxu0
    %v799 = vadd.f32 0.0, %v798
    %800 = vdwg.mxu0
    %v801 = vrcp.pop %v774
    %v802 = vmul.f32 %v799, %v801
    %804 = vrot.lane.b32.xlu0 %v670, 8
    %v805 = vpop.permute.xlu0 %804
    %808 = vrot.lane.b32.xlu0 %v736, 16
    %v809 = vpop.permute.xlu0 %808
    %812 = vrot.lane.b32.xlu0 %v802, 24
    %v813 = vpop.permute.xlu0 %812
    %v815 = vsel %vm266, %v603, %v805
    %v816 = vsel %vm538, %v815, %v809
    %v817 = vsel %vm540, %v816, %v813
    %v818 = vld [vmem:[%s10] sm:$0xff]
    %v819 = vld [vmem:[%s10 + $0x8] sm:$0xff]
    %v820 = vld [vmem:[%s10 + $0x10] sm:$0xff]
    %v821 = vld [vmem:[%s10 + $0x18] sm:$0xff]
    %v823 = vsel %vm196, %v541, 0
    %v826 = vsel %vm196, %v817, 0
    %828 = vmatpush.msra.mxu0 0.0
    %829 = vmatpush.msra.mxu0 0.0
    %830 = vmatpush.msra.mxu0 0.0
    %831 = vmatpush.msra.mxu0 0.0
    %832 = vmatpush.msra.mxu0 0.0
    %833 = vmatpush.msra.mxu0 0.0
    %834 = vmatpush.msra.mxu0 0.0
    %835 = vmatpush.msra.mxu0 0.0
    %836 = vmatpush.msra.mxu0 0.0
    %837 = vmatpush.msra.mxu0 0.0
    %838 = vmatpush.msra.mxu0 0.0
    %839 = vmatpush.msra.mxu0 0.0
    %840 = vmatpush.msra.mxu0 %v821
    %841 = vmatpush.msra.mxu0 %v820
    %842 = vmatpush.msra.mxu0 %v819
    %843 = vmatpush.msra.mxu0 %v818
    %844 = vmatmul.f32.gmra.mxu0 %v823
    %v845 = vpop.f32.mrf.mxu0
    %v846 = vadd.f32 0.0, %v845
    %847 = vmatmul.f32.gmra.mxu0 %v826
    %v848 = vpop.f32.mrf.mxu0
    %v849 = vadd.f32 0.0, %v848
    %850 = vdwg.mxu0
    %v851 = vadd.f32 %v158, %v846
    %v852 = vadd.f32 %v159, %v849
    %v853 = vld [vmem:[%s11] sm:$0x1]
    %v855 = vperm.slane %v853, 0
    %v857 = vadd.f32 %v851, %v855
    %v858 = vadd.f32 %v852, %v855
    %v859 = vld [vmem:[%s12] sm:$0x1]
    %v860 = vld [vmem:[%s13] sm:$0x1]
    %v861 = vsel %vm196, %v857, 0.0
    %862 = vadd.xlane.f32.xlu0 %v861
    %v863 = vpop.xlane.xlu0 %862
    %v864 = vsel %vm196, %v858, 0.0
    %865 = vadd.xlane.f32.xlu0 %v864
    %v866 = vpop.xlane.xlu0 %865
    %v867 = vrcp.pop 32.0
    %v868 = vmul.f32 32.0, %v867
    %v869 = vsub.f32 1.0, %v868
    %v870 = vmul.f32 %v867, %v869
    %v871 = vadd.f32 %v867, %v870
    %vm872 = vweird.f32 %v867
    %v873 = vsel %vm872, %v867, %v871
    %v874 = vmul.f32 %v863, %v873
    %v875 = vmul.f32 %v866, %v873
    %v876 = vsub.f32 %v857, %v874
    %v877 = vsub.f32 %v858, %v875
    %v878 = vmul.f32 %v876, %v876
    %v879 = vmul.f32 %v877, %v877
    %v880 = vsel %vm196, %v878, 0.0
    %881 = vadd.xlane.f32.xlu0 %v880
    %v882 = vpop.xlane.xlu0 %881
    %v883 = vsel %vm196, %v879, 0.0
    %884 = vadd.xlane.f32.xlu0 %v883
    %v885 = vpop.xlane.xlu0 %884
    %v886 = vmul.f32 %v882, %v873
    %v887 = vmul.f32 %v885, %v873
    %v888 = vadd.f32 %v886, 1e-05
    %v889 = vadd.f32 %v887, 1e-05
    %v890 = vrsqrt.pop %v888
    %v891 = vmul.f32 %v890, %v888
    %v892 = vmul.f32 %v891, %v890
    %v893 = vmul.f32 0.5, %v892
    %v894 = vsub.f32 1.5, %v893
    %v895 = vmul.f32 %v890, %v894
    %vm896 = vweird.f32 %v888
    %vm897 = vweird.f32 %v890
    %vm898 = vmor %vm896, %vm897
    %v899 = vsel %vm898, %v890, %v895
    %v900 = vrsqrt.pop %v889
    %v901 = vmul.f32 %v900, %v889
    %v902 = vmul.f32 %v901, %v900
    %v903 = vmul.f32 0.5, %v902
    %v904 = vsub.f32 1.5, %v903
    %v905 = vmul.f32 %v900, %v904
    %vm906 = vweird.f32 %v889
    %vm907 = vweird.f32 %v900
    %vm908 = vmor %vm906, %vm907
    %v909 = vsel %vm908, %v900, %v905
    %v910 = vmul.f32 %v876, %v899
    %v911 = vmul.f32 %v877, %v909
    %v913 = vperm.slane %v859, 0
    %v915 = vmul.f32 %v910, %v913
    %v916 = vmul.f32 %v911, %v913
    %v918 = vperm.slane %v860, 0
    %v920 = vadd.f32 %v915, %v918
    %v921 = vadd.f32 %v916, %v918
    %v922 = vadd.f32 %v920, %v160
    %v923 = vadd.f32 %v921, %v161
    %v924 = vld [vmem:[%s14] sm:$0xff]
    %v925 = vld [vmem:[%s14 + $0x8] sm:$0xff]
    %v926 = vld [vmem:[%s14 + $0x10] sm:$0xff]
    %v927 = vld [vmem:[%s14 + $0x18] sm:$0xff]
    %v928 = vld [vmem:[%s15] sm:$0x1]
    %v930 = vperm.slane %v928, 0
    %v933 = vsel %vm196, %v162, 0
    %v936 = vsel %vm196, %v163, 0
    %v939 = vsel %vm196, %v164, 0
    %v942 = vsel %vm196, %v165, 0
    %v945 = vsel %vm196, %v166, 0
    %v948 = vsel %vm196, %v167, 0
    %v951 = vsel %vm196, %v168, 0
    %v954 = vsel %vm196, %v169, 0
    %v957 = vsel %vm196, %v170, 0
    %v960 = vsel %vm196, %v171, 0
    %v963 = vsel %vm196, %v172, 0
    %v966 = vsel %vm196, %v173, 0
    %v969 = vsel %vm196, %v174, 0
    %v972 = vsel %vm196, %v175, 0
    %v975 = vsel %vm196, %v176, 0
    %v978 = vsel %vm196, %v177, 0
    %v981 = vsel %vm196, %v178, 0
    %v984 = vsel %vm196, %v179, 0
    %v987 = vsel %vm196, %v180, 0
    %v990 = vsel %vm196, %v181, 0
    %992 = vmatpush.msra.mxu0 0.0
    %993 = vmatpush.msra.mxu0 0.0
    %994 = vmatpush.msra.mxu0 0.0
    %995 = vmatpush.msra.mxu0 0.0
    %996 = vmatpush.msra.mxu0 0.0
    %997 = vmatpush.msra.mxu0 0.0
    %998 = vmatpush.msra.mxu0 0.0
    %999 = vmatpush.msra.mxu0 0.0
    %1000 = vmatpush.msra.mxu0 0.0
    %1001 = vmatpush.msra.mxu0 0.0
    %1002 = vmatpush.msra.mxu0 0.0
    %1003 = vmatpush.msra.mxu0 0.0
    %1004 = vmatpush.msra.mxu0 %v927
    %1005 = vmatpush.msra.mxu0 %v926
    %1006 = vmatpush.msra.mxu0 %v925
    %1007 = vmatpush.msra.mxu0 %v924
    %1008 = vmatmul.f32.gmra.mxu0 %v933
    %v1009 = vpop.f32.mrf.mxu0
    %v1010 = vadd.f32 %v930, %v1009
    %1011 = vmatmul.f32.gmra.mxu0 %v936
    %v1012 = vpop.f32.mrf.mxu0
    %v1013 = vadd.f32 %v930, %v1012
    %1014 = vmatmul.f32.gmra.mxu0 %v939
    %v1015 = vpop.f32.mrf.mxu0
    %v1016 = vadd.f32 %v930, %v1015
    %1017 = vmatmul.f32.gmra.mxu0 %v942
    %v1018 = vpop.f32.mrf.mxu0
    %v1019 = vadd.f32 %v930, %v1018
    %1020 = vmatmul.f32.gmra.mxu0 %v945
    %v1021 = vpop.f32.mrf.mxu0
    %v1022 = vadd.f32 %v930, %v1021
    %1023 = vmatmul.f32.gmra.mxu0 %v948
    %v1024 = vpop.f32.mrf.mxu0
    %v1025 = vadd.f32 %v930, %v1024
    %1026 = vmatmul.f32.gmra.mxu0 %v951
    %v1027 = vpop.f32.mrf.mxu0
    %v1028 = vadd.f32 %v930, %v1027
    %1029 = vmatmul.f32.gmra.mxu0 %v954
    %v1030 = vpop.f32.mrf.mxu0
    %v1031 = vadd.f32 %v930, %v1030
    %1032 = vmatmul.f32.gmra.mxu0 %v957
    %v1033 = vpop.f32.mrf.mxu0
    %v1034 = vadd.f32 %v930, %v1033
    %1035 = vmatmul.f32.gmra.mxu0 %v960
    %v1036 = vpop.f32.mrf.mxu0
    %v1037 = vadd.f32 %v930, %v1036
    %1038 = vmatmul.f32.gmra.mxu0 %v963
    %v1039 = vpop.f32.mrf.mxu0
    %v1040 = vadd.f32 %v930, %v1039
    %1041 = vmatmul.f32.gmra.mxu0 %v966
    %v1042 = vpop.f32.mrf.mxu0
    %v1043 = vadd.f32 %v930, %v1042
    %1044 = vmatmul.f32.gmra.mxu0 %v969
    %v1045 = vpop.f32.mrf.mxu0
    %v1046 = vadd.f32 %v930, %v1045
    %1047 = vmatmul.f32.gmra.mxu0 %v972
    %v1048 = vpop.f32.mrf.mxu0
    %v1049 = vadd.f32 %v930, %v1048
    %1050 = vmatmul.f32.gmra.mxu0 %v975
    %v1051 = vpop.f32.mrf.mxu0
    %v1052 = vadd.f32 %v930, %v1051
    %1053 = vmatmul.f32.gmra.mxu0 %v978
    %v1054 = vpop.f32.mrf.mxu0
    %v1055 = vadd.f32 %v930, %v1054
    %1056 = vmatmul.f32.gmra.mxu0 %v981
    %v1057 = vpop.f32.mrf.mxu0
    %v1058 = vadd.f32 %v930, %v1057
    %1059 = vmatmul.f32.gmra.mxu0 %v984
    %v1060 = vpop.f32.mrf.mxu0
    %v1061 = vadd.f32 %v930, %v1060
    %1062 = vmatmul.f32.gmra.mxu0 %v987
    %v1063 = vpop.f32.mrf.mxu0
    %v1064 = vadd.f32 %v930, %v1063
    %1065 = vmatmul.f32.gmra.mxu0 %v990
    %v1066 = vpop.f32.mrf.mxu0
    %v1067 = vadd.f32 %v930, %v1066
    %1068 = vdwg.mxu0
    %v1069 = vld [vmem:[%s16] sm:$0xff]
    %v1070 = vld [vmem:[%s16 + $0x8] sm:$0xff]
    %v1071 = vld [vmem:[%s16 + $0x10] sm:$0xff]
    %v1072 = vld [vmem:[%s16 + $0x18] sm:$0xff]
    %v1073 = vld [vmem:[%s17] sm:$0x1]
    %v1075 = vperm.slane %v1073, 0
    %v1078 = vsel %vm196, %v922, 0
    %v1081 = vsel %vm196, %v923, 0
    %1083 = vmatpush.msra.mxu0 0.0
    %1084 = vmatpush.msra.mxu0 0.0
    %1085 = vmatpush.msra.mxu0 0.0
    %1086 = vmatpush.msra.mxu0 0.0
    %1087 = vmatpush.msra.mxu0 0.0
    %1088 = vmatpush.msra.mxu0 0.0
    %1089 = vmatpush.msra.mxu0 0.0
    %1090 = vmatpush.msra.mxu0 0.0
    %1091 = vmatpush.msra.mxu0 0.0
    %1092 = vmatpush.msra.mxu0 0.0
    %1093 = vmatpush.msra.mxu0 0.0
    %1094 = vmatpush.msra.mxu0 0.0
    %1095 = vmatpush.msra.mxu0 %v1072
    %1096 = vmatpush.msra.mxu0 %v1071
    %1097 = vmatpush.msra.mxu0 %v1070
    %1098 = vmatpush.msra.mxu0 %v1069
    %1099 = vmatmul.f32.gmra.mxu0 %v1078
    %v1100 = vpop.f32.mrf.mxu0
    %v1101 = vadd.f32 %v1075, %v1100
    %1102 = vmatmul.f32.gmra.mxu0 %v1081
    %v1103 = vpop.f32.mrf.mxu0
    %v1104 = vadd.f32 %v1075, %v1103
    %1105 = vdwg.mxu0
    %vm1106 = vcmask 294144
    %v1107 = vsel %vm1106, %v1101, -inf
    %1108 = vmax.xlane.f32.xlu0 %v1107
    %v1109 = vpop.xlane.xlu0 %1108
    %v1110 = vsub.f32 %v1101, %v1109
    %v1111 = vmul.f32 %v1110, 1.442695
    %v1112 = vpow.pop %v1111
    %1114 = vrot.lane.b32.xlu0 %v1112, 96
    %v1115 = vpop.permute.xlu0 %1114
    %vm1117 = vcmask 31744
    %v1118 = vsel %vm1117, %v1115, 0.0
    %1119 = vadd.xlane.f32.xlu0 %v1118
    %v1120 = vpop.xlane.xlu0 %1119
    %v1121 = vrcp.pop %v1120
    %v1122 = vmul.f32 %v1112, %v1121
    %v1123 = vmul.f32 %v182, 8.0
    %v1124 = vadd.f32 %v1123, %v1101
    %v1125 = vsub.f32 %v1124, 0.5
    %1127 = vset.pattern.permute.xlu0 0
    %1128 = vperm.xlu0 %1127, %v1125
    %v1129 = vpop.permute.xlu0 %1128
    %v1132 = vperm.slane %v184, 0
    %v1134 = vsub.f32 %v1129, %v1132
    %v1135 = vand.u32 2147483647, %v1134
    %v1136 = vsub.f32 1.0, %v1135
    %v1137 = vmax.f32 %v1136, 0.0
    %1138 = vset.pattern.permute.xlu0 1
    %1139 = vperm.xlu0 %1138, %v1125
    %v1140 = vpop.permute.xlu0 %1139
    %v1143 = vperm.slane %v185, 0
    %v1145 = vsub.f32 %v1140, %v1143
    %v1146 = vand.u32 2147483647, %v1145
    %v1147 = vsub.f32 1.0, %v1146
    %v1148 = vmax.f32 %v1147, 0.0
    %v1149 = vmul.f32 %v1137, %v1148
    %1151 = vset.pattern.permute.xlu0 32
    %1152 = vperm.xlu0 %1151, %v1122
    %v1153 = vpop.permute.xlu0 %1152
    %v1155 = vmul.f32 %v1149, %v1153
    %v1156 = vadd.f32 %v1155, 0.0
    %1158 = vrot.lane.b32.xlu0 %v1101, 126
    %v1159 = vpop.permute.xlu0 %1158
    %v1161 = vadd.f32 %v1123, %v1159
    %v1162 = vsub.f32 %v1161, 0.5
    %1164 = vset.pattern.permute.xlu0 0
    %1165 = vperm.xlu0 %1164, %v1162
    %v1166 = vpop.permute.xlu0 %1165
    %v1168 = vsub.f32 %v1166, %v1132
    %v1169 = vand.u32 2147483647, %v1168
    %v1170 = vsub.f32 1.0, %v1169
    %v1171 = vmax.f32 %v1170, 0.0
    %1172 = vset.pattern.permute.xlu0 1
    %1173 = vperm.xlu0 %1172, %v1162
    %v1174 = vpop.permute.xlu0 %1173
    %v1176 = vsub.f32 %v1174, %v1143
    %v1177 = vand.u32 2147483647, %v1176
    %v1178 = vsub.f32 1.0, %v1177
    %v1179 = vmax.f32 %v1178, 0.0
    %v1180 = vmul.f32 %v1171, %v1179
    %1181 = vset.pattern.permute.xlu0 33
    %1182 = vperm.xlu0 %1181, %v1122
    %v1183 = vpop.permute.xlu0 %1182
    %v1185 = vmul.f32 %v1180, %v1183
    %v1186 = vadd.f32 %v1156, %v1185
    %v1187 = vmul.f32 %v182, 4.0
    %v1188 = vadd.f32 %v1187, %v1159
    %v1189 = vsub.f32 %v1188, 0.5
    %1191 = vset.pattern.permute.xlu0 2
    %1192 = vperm.xlu0 %1191, %v1189
    %v1193 = vpop.permute.xlu0 %1192
    %v1195 = vsub.f32 %v1193, %v1132
    %v1196 = vand.u32 2147483647, %v1195
    %v1197 = vsub.f32 1.0, %v1196
    %v1198 = vmax.f32 %v1197, 0.0
    %1199 = vset.pattern.permute.xlu0 3
    %1200 = vperm.xlu0 %1199, %v1189
    %v1201 = vpop.permute.xlu0 %1200
    %v1203 = vsub.f32 %v1201, %v1143
    %v1204 = vand.u32 2147483647, %v1203
    %v1205 = vsub.f32 1.0, %v1204
    %v1206 = vmax.f32 %v1205, 0.0
    %v1207 = vmul.f32 %v1198, %v1206
    %1208 = vset.pattern.permute.xlu0 34
    %1209 = vperm.xlu0 %1208, %v1122
    %v1210 = vpop.permute.xlu0 %1209
    %v1212 = vmul.f32 %v1207, %v1210
    %v1213 = vadd.f32 %v1212, 0.0
    %1214 = vrot.lane.b32.xlu0 %v1101, 124
    %v1215 = vpop.permute.xlu0 %1214
    %v1217 = vadd.f32 %v1187, %v1215
    %v1218 = vsub.f32 %v1217, 0.5
    %1220 = vset.pattern.permute.xlu0 2
    %1221 = vperm.xlu0 %1220, %v1218
    %v1222 = vpop.permute.xlu0 %1221
    %v1224 = vsub.f32 %v1222, %v1132
    %v1225 = vand.u32 2147483647, %v1224
    %v1226 = vsub.f32 1.0, %v1225
    %v1227 = vmax.f32 %v1226, 0.0
    %1228 = vset.pattern.permute.xlu0 3
    %1229 = vperm.xlu0 %1228, %v1218
    %v1230 = vpop.permute.xlu0 %1229
    %v1232 = vsub.f32 %v1230, %v1143
    %v1233 = vand.u32 2147483647, %v1232
    %v1234 = vsub.f32 1.0, %v1233
    %v1235 = vmax.f32 %v1234, 0.0
    %v1236 = vmul.f32 %v1227, %v1235
    %1237 = vset.pattern.permute.xlu0 35
    %1238 = vperm.xlu0 %1237, %v1122
    %v1239 = vpop.permute.xlu0 %1238
    %v1241 = vmul.f32 %v1236, %v1239
    %v1242 = vadd.f32 %v1213, %v1241
    %1244 = vrot.lane.b32.xlu0 %v1242, 64
    %v1245 = vpop.permute.xlu0 %1244
    %v1246 = vsel %vm538, %v1245, 0
    %1248 = vmatpush.msra.mxu0 0.0
    %1249 = vmatpush.msra.mxu0 0.0
    %1250 = vmatpush.msra.mxu0 0.0
    %1251 = vmatpush.msra.mxu0 0.0
    %1252 = vmatpush.msra.mxu0 0.0
    %1253 = vmatpush.msra.mxu0 0.0
    %1254 = vmatpush.msra.mxu0 0.0
    %1255 = vmatpush.msra.mxu0 0.0
    %1256 = vmatpush.msra.mxu0 0.0
    %1257 = vmatpush.msra.mxu0 0.0
    %1258 = vmatpush.msra.mxu0 0.0
    %1259 = vmatpush.msra.mxu0 0.0
    %1260 = vmatpush.msra.mxu0 0.0
    %1261 = vmatpush.msra.mxu0 0.0
    %1262 = vmatpush.msra.mxu0 %v1037
    %1263 = vmatpush.msra.mxu0 %v1034
    %1264 = vmatmul.f32.gmra.mxu0 %v1246
    %v1265 = vpop.f32.mrf.mxu0
    %v1266 = vadd.f32 0.0, %v1265
    %1267 = vdwg.mxu0
    %vm1268 = vcmask 523264
    %v1270 = vsel %vm1268, %v1186, 0
    %1272 = vmatpush.msra.mxu0 0.0
    %1273 = vmatpush.msra.mxu0 0.0
    %1274 = vmatpush.msra.mxu0 0.0
    %1275 = vmatpush.msra.mxu0 0.0
    %1276 = vmatpush.msra.mxu0 0.0
    %1277 = vmatpush.msra.mxu0 0.0
    %1278 = vmatpush.msra.mxu0 0.0
    %1279 = vmatpush.msra.mxu0 0.0
    %1280 = vmatpush.msra.mxu0 %v1031
    %1281 = vmatpush.msra.mxu0 %v1028
    %1282 = vmatpush.msra.mxu0 %v1025
    %1283 = vmatpush.msra.mxu0 %v1022
    %1284 = vmatpush.msra.mxu0 %v1019
    %1285 = vmatpush.msra.mxu0 %v1016
    %1286 = vmatpush.msra.mxu0 %v1013
    %1287 = vmatpush.msra.mxu0 %v1010
    %1288 = vmatmul.f32.gmra.mxu0 %v1270
    %v1289 = vpop.f32.mrf.mxu0
    %v1290 = vadd.f32 %v1266, %v1289
    %1291 = vdwg.mxu0
    %vm1292 = vcmask 326944
    %v1293 = vsel %vm1292, %v1101, -inf
    %1294 = vmax.xlane.f32.xlu0 %v1293
    %v1295 = vpop.xlane.xlu0 %1294
    %v1296 = vsub.f32 %v1101, %v1295
    %v1297 = vmul.f32 %v1296, 1.442695
    %v1298 = vpow.pop %v1297
    %1300 = vrot.lane.b32.xlu0 %v1298, 92
    %v1301 = vpop.permute.xlu0 %1300
    %v1303 = vsel %vm1117, %v1301, 0.0
    %1304 = vadd.xlane.f32.xlu0 %v1303
    %v1305 = vpop.xlane.xlu0 %1304
    %v1306 = vrcp.pop %v1305
    %v1307 = vmul.f32 %v1298, %v1306
    %1308 = vrot.lane.b32.xlu0 %v1101, 120
    %v1309 = vpop.permute.xlu0 %1308
    %v1311 = vadd.f32 %v1123, %v1309
    %v1312 = vsub.f32 %v1311, 0.5
    %1314 = vset.pattern.permute.xlu0 0
    %1315 = vperm.xlu0 %1314, %v1312
    %v1316 = vpop.permute.xlu0 %1315
    %v1318 = vsub.f32 %v1316, %v1132
    %v1319 = vand.u32 2147483647, %v1318
    %v1320 = vsub.f32 1.0, %v1319
    %v1321 = vmax.f32 %v1320, 0.0
    %1322 = vset.pattern.permute.xlu0 1
    %1323 = vperm.xlu0 %1322, %v1312
    %v1324 = vpop.permute.xlu0 %1323
    %v1326 = vsub.f32 %v1324, %v1143
    %v1327 = vand.u32 2147483647, %v1326
    %v1328 = vsub.f32 1.0, %v1327
    %v1329 = vmax.f32 %v1328, 0.0
    %v1330 = vmul.f32 %v1321, %v1329
    %1332 = vset.pattern.permute.xlu0 36
    %1333 = vperm.xlu0 %1332, %v1307
    %v1334 = vpop.permute.xlu0 %1333
    %v1336 = vmul.f32 %v1330, %v1334
    %v1337 = vadd.f32 %v1336, 0.0
    %1338 = vrot.lane.b32.xlu0 %v1101, 118
    %v1339 = vpop.permute.xlu0 %1338
    %v1341 = vadd.f32 %v1123, %v1339
    %v1342 = vsub.f32 %v1341, 0.5
    %1344 = vset.pattern.permute.xlu0 0
    %1345 = vperm.xlu0 %1344, %v1342
    %v1346 = vpop.permute.xlu0 %1345
    %v1348 = vsub.f32 %v1346, %v1132
    %v1349 = vand.u32 2147483647, %v1348
    %v1350 = vsub.f32 1.0, %v1349
    %v1351 = vmax.f32 %v1350, 0.0
    %1352 = vset.pattern.permute.xlu0 1
    %1353 = vperm.xlu0 %1352, %v1342
    %v1354 = vpop.permute.xlu0 %1353
    %v1356 = vsub.f32 %v1354, %v1143
    %v1357 = vand.u32 2147483647, %v1356
    %v1358 = vsub.f32 1.0, %v1357
    %v1359 = vmax.f32 %v1358, 0.0
    %v1360 = vmul.f32 %v1351, %v1359
    %1361 = vset.pattern.permute.xlu0 37
    %1362 = vperm.xlu0 %1361, %v1307
    %v1363 = vpop.permute.xlu0 %1362
    %v1365 = vmul.f32 %v1360, %v1363
    %v1366 = vadd.f32 %v1337, %v1365
    %v1367 = vadd.f32 %v1187, %v1339
    %v1368 = vsub.f32 %v1367, 0.5
    %1370 = vset.pattern.permute.xlu0 2
    %1371 = vperm.xlu0 %1370, %v1368
    %v1372 = vpop.permute.xlu0 %1371
    %v1374 = vsub.f32 %v1372, %v1132
    %v1375 = vand.u32 2147483647, %v1374
    %v1376 = vsub.f32 1.0, %v1375
    %v1377 = vmax.f32 %v1376, 0.0
    %1378 = vset.pattern.permute.xlu0 3
    %1379 = vperm.xlu0 %1378, %v1368
    %v1380 = vpop.permute.xlu0 %1379
    %v1382 = vsub.f32 %v1380, %v1143
    %v1383 = vand.u32 2147483647, %v1382
    %v1384 = vsub.f32 1.0, %v1383
    %v1385 = vmax.f32 %v1384, 0.0
    %v1386 = vmul.f32 %v1377, %v1385
    %1387 = vset.pattern.permute.xlu0 38
    %1388 = vperm.xlu0 %1387, %v1307
    %v1389 = vpop.permute.xlu0 %1388
    %v1391 = vmul.f32 %v1386, %v1389
    %v1392 = vadd.f32 %v1391, 0.0
    %1393 = vrot.lane.b32.xlu0 %v1101, 116
    %v1394 = vpop.permute.xlu0 %1393
    %v1396 = vadd.f32 %v1187, %v1394
    %v1397 = vsub.f32 %v1396, 0.5
    %1399 = vset.pattern.permute.xlu0 2
    %1400 = vperm.xlu0 %1399, %v1397
    %v1401 = vpop.permute.xlu0 %1400
    %v1403 = vsub.f32 %v1401, %v1132
    %v1404 = vand.u32 2147483647, %v1403
    %v1405 = vsub.f32 1.0, %v1404
    %v1406 = vmax.f32 %v1405, 0.0
    %1407 = vset.pattern.permute.xlu0 3
    %1408 = vperm.xlu0 %1407, %v1397
    %v1409 = vpop.permute.xlu0 %1408
    %v1411 = vsub.f32 %v1409, %v1143
    %v1412 = vand.u32 2147483647, %v1411
    %v1413 = vsub.f32 1.0, %v1412
    %v1414 = vmax.f32 %v1413, 0.0
    %v1415 = vmul.f32 %v1406, %v1414
    %1416 = vset.pattern.permute.xlu0 39
    %1417 = vperm.xlu0 %1416, %v1307
    %v1418 = vpop.permute.xlu0 %1417
    %v1420 = vmul.f32 %v1415, %v1418
    %v1421 = vadd.f32 %v1392, %v1420
    %1423 = vrot.lane.b32.xlu0 %v1421, 64
    %v1424 = vpop.permute.xlu0 %1423
    %1427 = vrot.lane.b32.xlu0 %v1034, 120
    %v1428 = vpop.permute.xlu0 %1427
    %1429 = vrot.lane.b32.xlu0 %v1037, 120
    %v1430 = vpop.permute.xlu0 %1429
    %v1433 = vsel %vm538, %v1424, 0
    %1435 = vmatpush.msra.mxu0 0.0
    %1436 = vmatpush.msra.mxu0 0.0
    %1437 = vmatpush.msra.mxu0 0.0
    %1438 = vmatpush.msra.mxu0 0.0
    %1439 = vmatpush.msra.mxu0 0.0
    %1440 = vmatpush.msra.mxu0 0.0
    %1441 = vmatpush.msra.mxu0 0.0
    %1442 = vmatpush.msra.mxu0 0.0
    %1443 = vmatpush.msra.mxu0 0.0
    %1444 = vmatpush.msra.mxu0 0.0
    %1445 = vmatpush.msra.mxu0 0.0
    %1446 = vmatpush.msra.mxu0 0.0
    %1447 = vmatpush.msra.mxu0 0.0
    %1448 = vmatpush.msra.mxu0 0.0
    %1449 = vmatpush.msra.mxu0 %v1430
    %1450 = vmatpush.msra.mxu0 %v1428
    %1451 = vmatmul.f32.gmra.mxu0 %v1433
    %v1452 = vpop.f32.mrf.mxu0
    %v1453 = vadd.f32 0.0, %v1452
    %1454 = vdwg.mxu0
    %1463 = vrot.lane.b32.xlu0 %v1010, 120
    %v1464 = vpop.permute.xlu0 %1463
    %1465 = vrot.lane.b32.xlu0 %v1013, 120
    %v1466 = vpop.permute.xlu0 %1465
    %1467 = vrot.lane.b32.xlu0 %v1016, 120
    %v1468 = vpop.permute.xlu0 %1467
    %1469 = vrot.lane.b32.xlu0 %v1019, 120
    %v1470 = vpop.permute.xlu0 %1469
    %1471 = vrot.lane.b32.xlu0 %v1022, 120
    %v1472 = vpop.permute.xlu0 %1471
    %1473 = vrot.lane.b32.xlu0 %v1025, 120
    %v1474 = vpop.permute.xlu0 %1473
    %1475 = vrot.lane.b32.xlu0 %v1028, 120
    %v1476 = vpop.permute.xlu0 %1475
    %1477 = vrot.lane.b32.xlu0 %v1031, 120
    %v1478 = vpop.permute.xlu0 %1477
    %v1488 = vsel %vm1268, %v1366, 0
    %1490 = vmatpush.msra.mxu0 0.0
    %1491 = vmatpush.msra.mxu0 0.0
    %1492 = vmatpush.msra.mxu0 0.0
    %1493 = vmatpush.msra.mxu0 0.0
    %1494 = vmatpush.msra.mxu0 0.0
    %1495 = vmatpush.msra.mxu0 0.0
    %1496 = vmatpush.msra.mxu0 0.0
    %1497 = vmatpush.msra.mxu0 0.0
    %1498 = vmatpush.msra.mxu0 %v1478
    %1499 = vmatpush.msra.mxu0 %v1476
    %1500 = vmatpush.msra.mxu0 %v1474
    %1501 = vmatpush.msra.mxu0 %v1472
    %1502 = vmatpush.msra.mxu0 %v1470
    %1503 = vmatpush.msra.mxu0 %v1468
    %1504 = vmatpush.msra.mxu0 %v1466
    %1505 = vmatpush.msra.mxu0 %v1464
    %1506 = vmatmul.f32.gmra.mxu0 %v1488
    %v1507 = vpop.f32.mrf.mxu0
    %v1508 = vadd.f32 %v1453, %v1507
    %1509 = vdwg.mxu0
    %vm1510 = vcmask 359744
    %v1511 = vsel %vm1510, %v1101, -inf
    %1512 = vmax.xlane.f32.xlu0 %v1511
    %v1513 = vpop.xlane.xlu0 %1512
    %v1514 = vsub.f32 %v1101, %v1513
    %v1515 = vmul.f32 %v1514, 1.442695
    %v1516 = vpow.pop %v1515
    %1518 = vrot.lane.b32.xlu0 %v1516, 88
    %v1519 = vpop.permute.xlu0 %1518
    %v1521 = vsel %vm1117, %v1519, 0.0
    %1522 = vadd.xlane.f32.xlu0 %v1521
    %v1523 = vpop.xlane.xlu0 %1522
    %v1524 = vrcp.pop %v1523
    %v1525 = vmul.f32 %v1516, %v1524
    %1526 = vrot.lane.b32.xlu0 %v1101, 112
    %v1527 = vpop.permute.xlu0 %1526
    %v1529 = vadd.f32 %v1123, %v1527
    %v1530 = vsub.f32 %v1529, 0.5
    %1532 = vset.pattern.permute.xlu0 0
    %1533 = vperm.xlu0 %1532, %v1530
    %v1534 = vpop.permute.xlu0 %1533
    %v1536 = vsub.f32 %v1534, %v1132
    %v1537 = vand.u32 2147483647, %v1536
    %v1538 = vsub.f32 1.0, %v1537
    %v1539 = vmax.f32 %v1538, 0.0
    %1540 = vset.pattern.permute.xlu0 1
    %1541 = vperm.xlu0 %1540, %v1530
    %v1542 = vpop.permute.xlu0 %1541
    %v1544 = vsub.f32 %v1542, %v1143
    %v1545 = vand.u32 2147483647, %v1544
    %v1546 = vsub.f32 1.0, %v1545
    %v1547 = vmax.f32 %v1546, 0.0
    %v1548 = vmul.f32 %v1539, %v1547
    %1550 = vset.pattern.permute.xlu0 40
    %1551 = vperm.xlu0 %1550, %v1525
    %v1552 = vpop.permute.xlu0 %1551
    %v1554 = vmul.f32 %v1548, %v1552
    %v1555 = vadd.f32 %v1554, 0.0
    %1556 = vrot.lane.b32.xlu0 %v1101, 110
    %v1557 = vpop.permute.xlu0 %1556
    %v1559 = vadd.f32 %v1123, %v1557
    %v1560 = vsub.f32 %v1559, 0.5
    %1562 = vset.pattern.permute.xlu0 0
    %1563 = vperm.xlu0 %1562, %v1560
    %v1564 = vpop.permute.xlu0 %1563
    %v1566 = vsub.f32 %v1564, %v1132
    %v1567 = vand.u32 2147483647, %v1566
    %v1568 = vsub.f32 1.0, %v1567
    %v1569 = vmax.f32 %v1568, 0.0
    %1570 = vset.pattern.permute.xlu0 1
    %1571 = vperm.xlu0 %1570, %v1560
    %v1572 = vpop.permute.xlu0 %1571
    %v1574 = vsub.f32 %v1572, %v1143
    %v1575 = vand.u32 2147483647, %v1574
    %v1576 = vsub.f32 1.0, %v1575
    %v1577 = vmax.f32 %v1576, 0.0
    %v1578 = vmul.f32 %v1569, %v1577
    %1579 = vset.pattern.permute.xlu0 41
    %1580 = vperm.xlu0 %1579, %v1525
    %v1581 = vpop.permute.xlu0 %1580
    %v1583 = vmul.f32 %v1578, %v1581
    %v1584 = vadd.f32 %v1555, %v1583
    %v1585 = vadd.f32 %v1187, %v1557
    %v1586 = vsub.f32 %v1585, 0.5
    %1588 = vset.pattern.permute.xlu0 2
    %1589 = vperm.xlu0 %1588, %v1586
    %v1590 = vpop.permute.xlu0 %1589
    %v1592 = vsub.f32 %v1590, %v1132
    %v1593 = vand.u32 2147483647, %v1592
    %v1594 = vsub.f32 1.0, %v1593
    %v1595 = vmax.f32 %v1594, 0.0
    %1596 = vset.pattern.permute.xlu0 3
    %1597 = vperm.xlu0 %1596, %v1586
    %v1598 = vpop.permute.xlu0 %1597
    %v1600 = vsub.f32 %v1598, %v1143
    %v1601 = vand.u32 2147483647, %v1600
    %v1602 = vsub.f32 1.0, %v1601
    %v1603 = vmax.f32 %v1602, 0.0
    %v1604 = vmul.f32 %v1595, %v1603
    %1605 = vset.pattern.permute.xlu0 42
    %1606 = vperm.xlu0 %1605, %v1525
    %v1607 = vpop.permute.xlu0 %1606
    %v1609 = vmul.f32 %v1604, %v1607
    %v1610 = vadd.f32 %v1609, 0.0
    %1611 = vrot.lane.b32.xlu0 %v1101, 108
    %v1612 = vpop.permute.xlu0 %1611
    %v1614 = vadd.f32 %v1187, %v1612
    %v1615 = vsub.f32 %v1614, 0.5
    %1617 = vset.pattern.permute.xlu0 2
    %1618 = vperm.xlu0 %1617, %v1615
    %v1619 = vpop.permute.xlu0 %1618
    %v1621 = vsub.f32 %v1619, %v1132
    %v1622 = vand.u32 2147483647, %v1621
    %v1623 = vsub.f32 1.0, %v1622
    %v1624 = vmax.f32 %v1623, 0.0
    %1625 = vset.pattern.permute.xlu0 3
    %1626 = vperm.xlu0 %1625, %v1615
    %v1627 = vpop.permute.xlu0 %1626
    %v1629 = vsub.f32 %v1627, %v1143
    %v1630 = vand.u32 2147483647, %v1629
    %v1631 = vsub.f32 1.0, %v1630
    %v1632 = vmax.f32 %v1631, 0.0
    %v1633 = vmul.f32 %v1624, %v1632
    %1634 = vset.pattern.permute.xlu0 43
    %1635 = vperm.xlu0 %1634, %v1525
    %v1636 = vpop.permute.xlu0 %1635
    %v1638 = vmul.f32 %v1633, %v1636
    %v1639 = vadd.f32 %v1610, %v1638
    %1641 = vrot.lane.b32.xlu0 %v1639, 64
    %v1642 = vpop.permute.xlu0 %1641
    %1643 = vrot.lane.b32.xlu0 %v1034, 112
    %v1644 = vpop.permute.xlu0 %1643
    %1645 = vrot.lane.b32.xlu0 %v1037, 112
    %v1646 = vpop.permute.xlu0 %1645
    %v1649 = vsel %vm538, %v1642, 0
    %1651 = vmatpush.msra.mxu0 0.0
    %1652 = vmatpush.msra.mxu0 0.0
    %1653 = vmatpush.msra.mxu0 0.0
    %1654 = vmatpush.msra.mxu0 0.0
    %1655 = vmatpush.msra.mxu0 0.0
    %1656 = vmatpush.msra.mxu0 0.0
    %1657 = vmatpush.msra.mxu0 0.0
    %1658 = vmatpush.msra.mxu0 0.0
    %1659 = vmatpush.msra.mxu0 0.0
    %1660 = vmatpush.msra.mxu0 0.0
    %1661 = vmatpush.msra.mxu0 0.0
    %1662 = vmatpush.msra.mxu0 0.0
    %1663 = vmatpush.msra.mxu0 0.0
    %1664 = vmatpush.msra.mxu0 0.0
    %1665 = vmatpush.msra.mxu0 %v1646
    %1666 = vmatpush.msra.mxu0 %v1644
    %1667 = vmatmul.f32.gmra.mxu0 %v1649
    %v1668 = vpop.f32.mrf.mxu0
    %v1669 = vadd.f32 0.0, %v1668
    %1670 = vdwg.mxu0
    %1671 = vrot.lane.b32.xlu0 %v1010, 112
    %v1672 = vpop.permute.xlu0 %1671
    %1673 = vrot.lane.b32.xlu0 %v1013, 112
    %v1674 = vpop.permute.xlu0 %1673
    %1675 = vrot.lane.b32.xlu0 %v1016, 112
    %v1676 = vpop.permute.xlu0 %1675
    %1677 = vrot.lane.b32.xlu0 %v1019, 112
    %v1678 = vpop.permute.xlu0 %1677
    %1679 = vrot.lane.b32.xlu0 %v1022, 112
    %v1680 = vpop.permute.xlu0 %1679
    %1681 = vrot.lane.b32.xlu0 %v1025, 112
    %v1682 = vpop.permute.xlu0 %1681
    %1683 = vrot.lane.b32.xlu0 %v1028, 112
    %v1684 = vpop.permute.xlu0 %1683
    %1685 = vrot.lane.b32.xlu0 %v1031, 112
    %v1686 = vpop.permute.xlu0 %1685
    %v1696 = vsel %vm1268, %v1584, 0
    %1698 = vmatpush.msra.mxu0 0.0
    %1699 = vmatpush.msra.mxu0 0.0
    %1700 = vmatpush.msra.mxu0 0.0
    %1701 = vmatpush.msra.mxu0 0.0
    %1702 = vmatpush.msra.mxu0 0.0
    %1703 = vmatpush.msra.mxu0 0.0
    %1704 = vmatpush.msra.mxu0 0.0
    %1705 = vmatpush.msra.mxu0 0.0
    %1706 = vmatpush.msra.mxu0 %v1686
    %1707 = vmatpush.msra.mxu0 %v1684
    %1708 = vmatpush.msra.mxu0 %v1682
    %1709 = vmatpush.msra.mxu0 %v1680
    %1710 = vmatpush.msra.mxu0 %v1678
    %1711 = vmatpush.msra.mxu0 %v1676
    %1712 = vmatpush.msra.mxu0 %v1674
    %1713 = vmatpush.msra.mxu0 %v1672
    %1714 = vmatmul.f32.gmra.mxu0 %v1696
    %v1715 = vpop.f32.mrf.mxu0
    %v1716 = vadd.f32 %v1669, %v1715
    %1717 = vdwg.mxu0
    %vm1718 = vcmask 392544
    %v1719 = vsel %vm1718, %v1101, -inf
    %1720 = vmax.xlane.f32.xlu0 %v1719
    %v1721 = vpop.xlane.xlu0 %1720
    %v1722 = vsub.f32 %v1101, %v1721
    %v1723 = vmul.f32 %v1722, 1.442695
    %v1724 = vpow.pop %v1723
    %1726 = vrot.lane.b32.xlu0 %v1724, 84
    %v1727 = vpop.permute.xlu0 %1726
    %v1729 = vsel %vm1117, %v1727, 0.0
    %1730 = vadd.xlane.f32.xlu0 %v1729
    %v1731 = vpop.xlane.xlu0 %1730
    %v1732 = vrcp.pop %v1731
    %v1733 = vmul.f32 %v1724, %v1732
    %1734 = vrot.lane.b32.xlu0 %v1101, 104
    %v1735 = vpop.permute.xlu0 %1734
    %v1737 = vadd.f32 %v1123, %v1735
    %v1738 = vsub.f32 %v1737, 0.5
    %1740 = vset.pattern.permute.xlu0 0
    %1741 = vperm.xlu0 %1740, %v1738
    %v1742 = vpop.permute.xlu0 %1741
    %v1744 = vsub.f32 %v1742, %v1132
    %v1745 = vand.u32 2147483647, %v1744
    %v1746 = vsub.f32 1.0, %v1745
    %v1747 = vmax.f32 %v1746, 0.0
    %1748 = vset.pattern.permute.xlu0 1
    %1749 = vperm.xlu0 %1748, %v1738
    %v1750 = vpop.permute.xlu0 %1749
    %v1752 = vsub.f32 %v1750, %v1143
    %v1753 = vand.u32 2147483647, %v1752
    %v1754 = vsub.f32 1.0, %v1753
    %v1755 = vmax.f32 %v1754, 0.0
    %v1756 = vmul.f32 %v1747, %v1755
    %1758 = vset.pattern.permute.xlu0 44
    %1759 = vperm.xlu0 %1758, %v1733
    %v1760 = vpop.permute.xlu0 %1759
    %v1762 = vmul.f32 %v1756, %v1760
    %v1763 = vadd.f32 %v1762, 0.0
    %1764 = vrot.lane.b32.xlu0 %v1101, 102
    %v1765 = vpop.permute.xlu0 %1764
    %v1767 = vadd.f32 %v1123, %v1765
    %v1768 = vsub.f32 %v1767, 0.5
    %1770 = vset.pattern.permute.xlu0 0
    %1771 = vperm.xlu0 %1770, %v1768
    %v1772 = vpop.permute.xlu0 %1771
    %v1774 = vsub.f32 %v1772, %v1132
    %v1775 = vand.u32 2147483647, %v1774
    %v1776 = vsub.f32 1.0, %v1775
    %v1777 = vmax.f32 %v1776, 0.0
    %1778 = vset.pattern.permute.xlu0 1
    %1779 = vperm.xlu0 %1778, %v1768
    %v1780 = vpop.permute.xlu0 %1779
    %v1782 = vsub.f32 %v1780, %v1143
    %v1783 = vand.u32 2147483647, %v1782
    %v1784 = vsub.f32 1.0, %v1783
    %v1785 = vmax.f32 %v1784, 0.0
    %v1786 = vmul.f32 %v1777, %v1785
    %1787 = vset.pattern.permute.xlu0 45
    %1788 = vperm.xlu0 %1787, %v1733
    %v1789 = vpop.permute.xlu0 %1788
    %v1791 = vmul.f32 %v1786, %v1789
    %v1792 = vadd.f32 %v1763, %v1791
    %v1793 = vadd.f32 %v1187, %v1765
    %v1794 = vsub.f32 %v1793, 0.5
    %1796 = vset.pattern.permute.xlu0 2
    %1797 = vperm.xlu0 %1796, %v1794
    %v1798 = vpop.permute.xlu0 %1797
    %v1800 = vsub.f32 %v1798, %v1132
    %v1801 = vand.u32 2147483647, %v1800
    %v1802 = vsub.f32 1.0, %v1801
    %v1803 = vmax.f32 %v1802, 0.0
    %1804 = vset.pattern.permute.xlu0 3
    %1805 = vperm.xlu0 %1804, %v1794
    %v1806 = vpop.permute.xlu0 %1805
    %v1808 = vsub.f32 %v1806, %v1143
    %v1809 = vand.u32 2147483647, %v1808
    %v1810 = vsub.f32 1.0, %v1809
    %v1811 = vmax.f32 %v1810, 0.0
    %v1812 = vmul.f32 %v1803, %v1811
    %1813 = vset.pattern.permute.xlu0 46
    %1814 = vperm.xlu0 %1813, %v1733
    %v1815 = vpop.permute.xlu0 %1814
    %v1817 = vmul.f32 %v1812, %v1815
    %v1818 = vadd.f32 %v1817, 0.0
    %1819 = vrot.lane.b32.xlu0 %v1101, 100
    %v1820 = vpop.permute.xlu0 %1819
    %v1822 = vadd.f32 %v1187, %v1820
    %v1823 = vsub.f32 %v1822, 0.5
    %1825 = vset.pattern.permute.xlu0 2
    %1826 = vperm.xlu0 %1825, %v1823
    %v1827 = vpop.permute.xlu0 %1826
    %v1829 = vsub.f32 %v1827, %v1132
    %v1830 = vand.u32 2147483647, %v1829
    %v1831 = vsub.f32 1.0, %v1830
    %v1832 = vmax.f32 %v1831, 0.0
    %1833 = vset.pattern.permute.xlu0 3
    %1834 = vperm.xlu0 %1833, %v1823
    %v1835 = vpop.permute.xlu0 %1834
    %v1837 = vsub.f32 %v1835, %v1143
    %v1838 = vand.u32 2147483647, %v1837
    %v1839 = vsub.f32 1.0, %v1838
    %v1840 = vmax.f32 %v1839, 0.0
    %v1841 = vmul.f32 %v1832, %v1840
    %1842 = vset.pattern.permute.xlu0 47
    %1843 = vperm.xlu0 %1842, %v1733
    %v1844 = vpop.permute.xlu0 %1843
    %v1846 = vmul.f32 %v1841, %v1844
    %v1847 = vadd.f32 %v1818, %v1846
    %1849 = vrot.lane.b32.xlu0 %v1847, 64
    %v1850 = vpop.permute.xlu0 %1849
    %1851 = vrot.lane.b32.xlu0 %v1034, 104
    %v1852 = vpop.permute.xlu0 %1851
    %1853 = vrot.lane.b32.xlu0 %v1037, 104
    %v1854 = vpop.permute.xlu0 %1853
    %v1857 = vsel %vm538, %v1850, 0
    %1859 = vmatpush.msra.mxu0 0.0
    %1860 = vmatpush.msra.mxu0 0.0
    %1861 = vmatpush.msra.mxu0 0.0
    %1862 = vmatpush.msra.mxu0 0.0
    %1863 = vmatpush.msra.mxu0 0.0
    %1864 = vmatpush.msra.mxu0 0.0
    %1865 = vmatpush.msra.mxu0 0.0
    %1866 = vmatpush.msra.mxu0 0.0
    %1867 = vmatpush.msra.mxu0 0.0
    %1868 = vmatpush.msra.mxu0 0.0
    %1869 = vmatpush.msra.mxu0 0.0
    %1870 = vmatpush.msra.mxu0 0.0
    %1871 = vmatpush.msra.mxu0 0.0
    %1872 = vmatpush.msra.mxu0 0.0
    %1873 = vmatpush.msra.mxu0 %v1854
    %1874 = vmatpush.msra.mxu0 %v1852
    %1875 = vmatmul.f32.gmra.mxu0 %v1857
    %v1876 = vpop.f32.mrf.mxu0
    %v1877 = vadd.f32 0.0, %v1876
    %1878 = vdwg.mxu0
    %1879 = vrot.lane.b32.xlu0 %v1010, 104
    %v1880 = vpop.permute.xlu0 %1879
    %1881 = vrot.lane.b32.xlu0 %v1013, 104
    %v1882 = vpop.permute.xlu0 %1881
    %1883 = vrot.lane.b32.xlu0 %v1016, 104
    %v1884 = vpop.permute.xlu0 %1883
    %1885 = vrot.lane.b32.xlu0 %v1019, 104
    %v1886 = vpop.permute.xlu0 %1885
    %1887 = vrot.lane.b32.xlu0 %v1022, 104
    %v1888 = vpop.permute.xlu0 %1887
    %1889 = vrot.lane.b32.xlu0 %v1025, 104
    %v1890 = vpop.permute.xlu0 %1889
    %1891 = vrot.lane.b32.xlu0 %v1028, 104
    %v1892 = vpop.permute.xlu0 %1891
    %1893 = vrot.lane.b32.xlu0 %v1031, 104
    %v1894 = vpop.permute.xlu0 %1893
    %v1904 = vsel %vm1268, %v1792, 0
    %1906 = vmatpush.msra.mxu0 0.0
    %1907 = vmatpush.msra.mxu0 0.0
    %1908 = vmatpush.msra.mxu0 0.0
    %1909 = vmatpush.msra.mxu0 0.0
    %1910 = vmatpush.msra.mxu0 0.0
    %1911 = vmatpush.msra.mxu0 0.0
    %1912 = vmatpush.msra.mxu0 0.0
    %1913 = vmatpush.msra.mxu0 0.0
    %1914 = vmatpush.msra.mxu0 %v1894
    %1915 = vmatpush.msra.mxu0 %v1892
    %1916 = vmatpush.msra.mxu0 %v1890
    %1917 = vmatpush.msra.mxu0 %v1888
    %1918 = vmatpush.msra.mxu0 %v1886
    %1919 = vmatpush.msra.mxu0 %v1884
    %1920 = vmatpush.msra.mxu0 %v1882
    %1921 = vmatpush.msra.mxu0 %v1880
    %1922 = vmatmul.f32.gmra.mxu0 %v1904
    %v1923 = vpop.f32.mrf.mxu0
    %v1924 = vadd.f32 %v1877, %v1923
    %1925 = vdwg.mxu0
    %1927 = vrot.lane.b32.xlu0 %v1508, 8
    %v1928 = vpop.permute.xlu0 %1927
    %1931 = vrot.lane.b32.xlu0 %v1716, 16
    %v1932 = vpop.permute.xlu0 %1931
    %1935 = vrot.lane.b32.xlu0 %v1924, 24
    %v1936 = vpop.permute.xlu0 %1935
    %v1938 = vsel %vm266, %v1290, %v1928
    %v1939 = vsel %vm538, %v1938, %v1932
    %v1940 = vsel %vm540, %v1939, %v1936
    %v1941 = vsel %vm1106, %v1104, -inf
    %1942 = vmax.xlane.f32.xlu0 %v1941
    %v1943 = vpop.xlane.xlu0 %1942
    %v1944 = vsub.f32 %v1104, %v1943
    %v1945 = vmul.f32 %v1944, 1.442695
    %v1946 = vpow.pop %v1945
    %1948 = vrot.lane.b32.xlu0 %v1946, 96
    %v1949 = vpop.permute.xlu0 %1948
    %v1951 = vsel %vm1117, %v1949, 0.0
    %1952 = vadd.xlane.f32.xlu0 %v1951
    %v1953 = vpop.xlane.xlu0 %1952
    %v1954 = vrcp.pop %v1953
    %v1955 = vmul.f32 %v1946, %v1954
    %v1956 = vmul.f32 %v183, 8.0
    %v1957 = vadd.f32 %v1956, %v1104
    %v1958 = vsub.f32 %v1957, 0.5
    %1960 = vset.pattern.permute.xlu0 0
    %1961 = vperm.xlu0 %1960, %v1958
    %v1962 = vpop.permute.xlu0 %1961
    %v1964 = vsub.f32 %v1962, %v1132
    %v1965 = vand.u32 2147483647, %v1964
    %v1966 = vsub.f32 1.0, %v1965
    %v1967 = vmax.f32 %v1966, 0.0
    %1968 = vset.pattern.permute.xlu0 1
    %1969 = vperm.xlu0 %1968, %v1958
    %v1970 = vpop.permute.xlu0 %1969
    %v1972 = vsub.f32 %v1970, %v1143
    %v1973 = vand.u32 2147483647, %v1972
    %v1974 = vsub.f32 1.0, %v1973
    %v1975 = vmax.f32 %v1974, 0.0
    %v1976 = vmul.f32 %v1967, %v1975
    %1978 = vset.pattern.permute.xlu0 32
    %1979 = vperm.xlu0 %1978, %v1955
    %v1980 = vpop.permute.xlu0 %1979
    %v1982 = vmul.f32 %v1976, %v1980
    %v1983 = vadd.f32 %v1982, 0.0
    %1985 = vrot.lane.b32.xlu0 %v1104, 126
    %v1986 = vpop.permute.xlu0 %1985
    %v1988 = vadd.f32 %v1956, %v1986
    %v1989 = vsub.f32 %v1988, 0.5
    %1991 = vset.pattern.permute.xlu0 0
    %1992 = vperm.xlu0 %1991, %v1989
    %v1993 = vpop.permute.xlu0 %1992
    %v1995 = vsub.f32 %v1993, %v1132
    %v1996 = vand.u32 2147483647, %v1995
    %v1997 = vsub.f32 1.0, %v1996
    %v1998 = vmax.f32 %v1997, 0.0
    %1999 = vset.pattern.permute.xlu0 1
    %2000 = vperm.xlu0 %1999, %v1989
    %v2001 = vpop.permute.xlu0 %2000
    %v2003 = vsub.f32 %v2001, %v1143
    %v2004 = vand.u32 2147483647, %v2003
    %v2005 = vsub.f32 1.0, %v2004
    %v2006 = vmax.f32 %v2005, 0.0
    %v2007 = vmul.f32 %v1998, %v2006
    %2008 = vset.pattern.permute.xlu0 33
    %2009 = vperm.xlu0 %2008, %v1955
    %v2010 = vpop.permute.xlu0 %2009
    %v2012 = vmul.f32 %v2007, %v2010
    %v2013 = vadd.f32 %v1983, %v2012
    %v2014 = vmul.f32 %v183, 4.0
    %v2015 = vadd.f32 %v2014, %v1986
    %v2016 = vsub.f32 %v2015, 0.5
    %2018 = vset.pattern.permute.xlu0 2
    %2019 = vperm.xlu0 %2018, %v2016
    %v2020 = vpop.permute.xlu0 %2019
    %v2022 = vsub.f32 %v2020, %v1132
    %v2023 = vand.u32 2147483647, %v2022
    %v2024 = vsub.f32 1.0, %v2023
    %v2025 = vmax.f32 %v2024, 0.0
    %2026 = vset.pattern.permute.xlu0 3
    %2027 = vperm.xlu0 %2026, %v2016
    %v2028 = vpop.permute.xlu0 %2027
    %v2030 = vsub.f32 %v2028, %v1143
    %v2031 = vand.u32 2147483647, %v2030
    %v2032 = vsub.f32 1.0, %v2031
    %v2033 = vmax.f32 %v2032, 0.0
    %v2034 = vmul.f32 %v2025, %v2033
    %2035 = vset.pattern.permute.xlu0 34
    %2036 = vperm.xlu0 %2035, %v1955
    %v2037 = vpop.permute.xlu0 %2036
    %v2039 = vmul.f32 %v2034, %v2037
    %v2040 = vadd.f32 %v2039, 0.0
    %2041 = vrot.lane.b32.xlu0 %v1104, 124
    %v2042 = vpop.permute.xlu0 %2041
    %v2044 = vadd.f32 %v2014, %v2042
    %v2045 = vsub.f32 %v2044, 0.5
    %2047 = vset.pattern.permute.xlu0 2
    %2048 = vperm.xlu0 %2047, %v2045
    %v2049 = vpop.permute.xlu0 %2048
    %v2051 = vsub.f32 %v2049, %v1132
    %v2052 = vand.u32 2147483647, %v2051
    %v2053 = vsub.f32 1.0, %v2052
    %v2054 = vmax.f32 %v2053, 0.0
    %2055 = vset.pattern.permute.xlu0 3
    %2056 = vperm.xlu0 %2055, %v2045
    %v2057 = vpop.permute.xlu0 %2056
    %v2059 = vsub.f32 %v2057, %v1143
    %v2060 = vand.u32 2147483647, %v2059
    %v2061 = vsub.f32 1.0, %v2060
    %v2062 = vmax.f32 %v2061, 0.0
    %v2063 = vmul.f32 %v2054, %v2062
    %2064 = vset.pattern.permute.xlu0 35
    %2065 = vperm.xlu0 %2064, %v1955
    %v2066 = vpop.permute.xlu0 %2065
    %v2068 = vmul.f32 %v2063, %v2066
    %v2069 = vadd.f32 %v2040, %v2068
    %2071 = vrot.lane.b32.xlu0 %v2069, 64
    %v2072 = vpop.permute.xlu0 %2071
    %v2073 = vsel %vm538, %v2072, 0
    %2075 = vmatpush.msra.mxu0 0.0
    %2076 = vmatpush.msra.mxu0 0.0
    %2077 = vmatpush.msra.mxu0 0.0
    %2078 = vmatpush.msra.mxu0 0.0
    %2079 = vmatpush.msra.mxu0 0.0
    %2080 = vmatpush.msra.mxu0 0.0
    %2081 = vmatpush.msra.mxu0 0.0
    %2082 = vmatpush.msra.mxu0 0.0
    %2083 = vmatpush.msra.mxu0 0.0
    %2084 = vmatpush.msra.mxu0 0.0
    %2085 = vmatpush.msra.mxu0 0.0
    %2086 = vmatpush.msra.mxu0 0.0
    %2087 = vmatpush.msra.mxu0 0.0
    %2088 = vmatpush.msra.mxu0 0.0
    %2089 = vmatpush.msra.mxu0 %v1067
    %2090 = vmatpush.msra.mxu0 %v1064
    %2091 = vmatmul.f32.gmra.mxu0 %v2073
    %v2092 = vpop.f32.mrf.mxu0
    %v2093 = vadd.f32 0.0, %v2092
    %2094 = vdwg.mxu0
    %v2096 = vsel %vm1268, %v2013, 0
    %2098 = vmatpush.msra.mxu0 0.0
    %2099 = vmatpush.msra.mxu0 0.0
    %2100 = vmatpush.msra.mxu0 0.0
    %2101 = vmatpush.msra.mxu0 0.0
    %2102 = vmatpush.msra.mxu0 0.0
    %2103 = vmatpush.msra.mxu0 0.0
    %2104 = vmatpush.msra.mxu0 0.0
    %2105 = vmatpush.msra.mxu0 0.0
    %2106 = vmatpush.msra.mxu0 %v1061
    %2107 = vmatpush.msra.mxu0 %v1058
    %2108 = vmatpush.msra.mxu0 %v1055
    %2109 = vmatpush.msra.mxu0 %v1052
    %2110 = vmatpush.msra.mxu0 %v1049
    %2111 = vmatpush.msra.mxu0 %v1046
    %2112 = vmatpush.msra.mxu0 %v1043
    %2113 = vmatpush.msra.mxu0 %v1040
    %2114 = vmatmul.f32.gmra.mxu0 %v2096
    %v2115 = vpop.f32.mrf.mxu0
    %v2116 = vadd.f32 %v2093, %v2115
    %2117 = vdwg.mxu0
    %v2118 = vsel %vm1292, %v1104, -inf
    %2119 = vmax.xlane.f32.xlu0 %v2118
    %v2120 = vpop.xlane.xlu0 %2119
    %v2121 = vsub.f32 %v1104, %v2120
    %v2122 = vmul.f32 %v2121, 1.442695
    %v2123 = vpow.pop %v2122
    %2125 = vrot.lane.b32.xlu0 %v2123, 92
    %v2126 = vpop.permute.xlu0 %2125
    %v2128 = vsel %vm1117, %v2126, 0.0
    %2129 = vadd.xlane.f32.xlu0 %v2128
    %v2130 = vpop.xlane.xlu0 %2129
    %v2131 = vrcp.pop %v2130
    %v2132 = vmul.f32 %v2123, %v2131
    %2133 = vrot.lane.b32.xlu0 %v1104, 120
    %v2134 = vpop.permute.xlu0 %2133
    %v2136 = vadd.f32 %v1956, %v2134
    %v2137 = vsub.f32 %v2136, 0.5
    %2139 = vset.pattern.permute.xlu0 0
    %2140 = vperm.xlu0 %2139, %v2137
    %v2141 = vpop.permute.xlu0 %2140
    %v2143 = vsub.f32 %v2141, %v1132
    %v2144 = vand.u32 2147483647, %v2143
    %v2145 = vsub.f32 1.0, %v2144
    %v2146 = vmax.f32 %v2145, 0.0
    %2147 = vset.pattern.permute.xlu0 1
    %2148 = vperm.xlu0 %2147, %v2137
    %v2149 = vpop.permute.xlu0 %2148
    %v2151 = vsub.f32 %v2149, %v1143
    %v2152 = vand.u32 2147483647, %v2151
    %v2153 = vsub.f32 1.0, %v2152
    %v2154 = vmax.f32 %v2153, 0.0
    %v2155 = vmul.f32 %v2146, %v2154
    %2157 = vset.pattern.permute.xlu0 36
    %2158 = vperm.xlu0 %2157, %v2132
    %v2159 = vpop.permute.xlu0 %2158
    %v2161 = vmul.f32 %v2155, %v2159
    %v2162 = vadd.f32 %v2161, 0.0
    %2163 = vrot.lane.b32.xlu0 %v1104, 118
    %v2164 = vpop.permute.xlu0 %2163
    %v2166 = vadd.f32 %v1956, %v2164
    %v2167 = vsub.f32 %v2166, 0.5
    %2169 = vset.pattern.permute.xlu0 0
    %2170 = vperm.xlu0 %2169, %v2167
    %v2171 = vpop.permute.xlu0 %2170
    %v2173 = vsub.f32 %v2171, %v1132
    %v2174 = vand.u32 2147483647, %v2173
    %v2175 = vsub.f32 1.0, %v2174
    %v2176 = vmax.f32 %v2175, 0.0
    %2177 = vset.pattern.permute.xlu0 1
    %2178 = vperm.xlu0 %2177, %v2167
    %v2179 = vpop.permute.xlu0 %2178
    %v2181 = vsub.f32 %v2179, %v1143
    %v2182 = vand.u32 2147483647, %v2181
    %v2183 = vsub.f32 1.0, %v2182
    %v2184 = vmax.f32 %v2183, 0.0
    %v2185 = vmul.f32 %v2176, %v2184
    %2186 = vset.pattern.permute.xlu0 37
    %2187 = vperm.xlu0 %2186, %v2132
    %v2188 = vpop.permute.xlu0 %2187
    %v2190 = vmul.f32 %v2185, %v2188
    %v2191 = vadd.f32 %v2162, %v2190
    %v2192 = vadd.f32 %v2014, %v2164
    %v2193 = vsub.f32 %v2192, 0.5
    %2195 = vset.pattern.permute.xlu0 2
    %2196 = vperm.xlu0 %2195, %v2193
    %v2197 = vpop.permute.xlu0 %2196
    %v2199 = vsub.f32 %v2197, %v1132
    %v2200 = vand.u32 2147483647, %v2199
    %v2201 = vsub.f32 1.0, %v2200
    %v2202 = vmax.f32 %v2201, 0.0
    %2203 = vset.pattern.permute.xlu0 3
    %2204 = vperm.xlu0 %2203, %v2193
    %v2205 = vpop.permute.xlu0 %2204
    %v2207 = vsub.f32 %v2205, %v1143
    %v2208 = vand.u32 2147483647, %v2207
    %v2209 = vsub.f32 1.0, %v2208
    %v2210 = vmax.f32 %v2209, 0.0
    %v2211 = vmul.f32 %v2202, %v2210
    %2212 = vset.pattern.permute.xlu0 38
    %2213 = vperm.xlu0 %2212, %v2132
    %v2214 = vpop.permute.xlu0 %2213
    %v2216 = vmul.f32 %v2211, %v2214
    %v2217 = vadd.f32 %v2216, 0.0
    %2218 = vrot.lane.b32.xlu0 %v1104, 116
    %v2219 = vpop.permute.xlu0 %2218
    %v2221 = vadd.f32 %v2014, %v2219
    %v2222 = vsub.f32 %v2221, 0.5
    %2224 = vset.pattern.permute.xlu0 2
    %2225 = vperm.xlu0 %2224, %v2222
    %v2226 = vpop.permute.xlu0 %2225
    %v2228 = vsub.f32 %v2226, %v1132
    %v2229 = vand.u32 2147483647, %v2228
    %v2230 = vsub.f32 1.0, %v2229
    %v2231 = vmax.f32 %v2230, 0.0
    %2232 = vset.pattern.permute.xlu0 3
    %2233 = vperm.xlu0 %2232, %v2222
    %v2234 = vpop.permute.xlu0 %2233
    %v2236 = vsub.f32 %v2234, %v1143
    %v2237 = vand.u32 2147483647, %v2236
    %v2238 = vsub.f32 1.0, %v2237
    %v2239 = vmax.f32 %v2238, 0.0
    %v2240 = vmul.f32 %v2231, %v2239
    %2241 = vset.pattern.permute.xlu0 39
    %2242 = vperm.xlu0 %2241, %v2132
    %v2243 = vpop.permute.xlu0 %2242
    %v2245 = vmul.f32 %v2240, %v2243
    %v2246 = vadd.f32 %v2217, %v2245
    %2248 = vrot.lane.b32.xlu0 %v2246, 64
    %v2249 = vpop.permute.xlu0 %2248
    %2252 = vrot.lane.b32.xlu0 %v1064, 120
    %v2253 = vpop.permute.xlu0 %2252
    %2254 = vrot.lane.b32.xlu0 %v1067, 120
    %v2255 = vpop.permute.xlu0 %2254
    %v2258 = vsel %vm538, %v2249, 0
    %2260 = vmatpush.msra.mxu0 0.0
    %2261 = vmatpush.msra.mxu0 0.0
    %2262 = vmatpush.msra.mxu0 0.0
    %2263 = vmatpush.msra.mxu0 0.0
    %2264 = vmatpush.msra.mxu0 0.0
    %2265 = vmatpush.msra.mxu0 0.0
    %2266 = vmatpush.msra.mxu0 0.0
    %2267 = vmatpush.msra.mxu0 0.0
    %2268 = vmatpush.msra.mxu0 0.0
    %2269 = vmatpush.msra.mxu0 0.0
    %2270 = vmatpush.msra.mxu0 0.0
    %2271 = vmatpush.msra.mxu0 0.0
    %2272 = vmatpush.msra.mxu0 0.0
    %2273 = vmatpush.msra.mxu0 0.0
    %2274 = vmatpush.msra.mxu0 %v2255
    %2275 = vmatpush.msra.mxu0 %v2253
    %2276 = vmatmul.f32.gmra.mxu0 %v2258
    %v2277 = vpop.f32.mrf.mxu0
    %v2278 = vadd.f32 0.0, %v2277
    %2279 = vdwg.mxu0
    %2288 = vrot.lane.b32.xlu0 %v1040, 120
    %v2289 = vpop.permute.xlu0 %2288
    %2290 = vrot.lane.b32.xlu0 %v1043, 120
    %v2291 = vpop.permute.xlu0 %2290
    %2292 = vrot.lane.b32.xlu0 %v1046, 120
    %v2293 = vpop.permute.xlu0 %2292
    %2294 = vrot.lane.b32.xlu0 %v1049, 120
    %v2295 = vpop.permute.xlu0 %2294
    %2296 = vrot.lane.b32.xlu0 %v1052, 120
    %v2297 = vpop.permute.xlu0 %2296
    %2298 = vrot.lane.b32.xlu0 %v1055, 120
    %v2299 = vpop.permute.xlu0 %2298
    %2300 = vrot.lane.b32.xlu0 %v1058, 120
    %v2301 = vpop.permute.xlu0 %2300
    %2302 = vrot.lane.b32.xlu0 %v1061, 120
    %v2303 = vpop.permute.xlu0 %2302
    %v2313 = vsel %vm1268, %v2191, 0
    %2315 = vmatpush.msra.mxu0 0.0
    %2316 = vmatpush.msra.mxu0 0.0
    %2317 = vmatpush.msra.mxu0 0.0
    %2318 = vmatpush.msra.mxu0 0.0
    %2319 = vmatpush.msra.mxu0 0.0
    %2320 = vmatpush.msra.mxu0 0.0
    %2321 = vmatpush.msra.mxu0 0.0
    %2322 = vmatpush.msra.mxu0 0.0
    %2323 = vmatpush.msra.mxu0 %v2303
    %2324 = vmatpush.msra.mxu0 %v2301
    %2325 = vmatpush.msra.mxu0 %v2299
    %2326 = vmatpush.msra.mxu0 %v2297
    %2327 = vmatpush.msra.mxu0 %v2295
    %2328 = vmatpush.msra.mxu0 %v2293
    %2329 = vmatpush.msra.mxu0 %v2291
    %2330 = vmatpush.msra.mxu0 %v2289
    %2331 = vmatmul.f32.gmra.mxu0 %v2313
    %v2332 = vpop.f32.mrf.mxu0
    %v2333 = vadd.f32 %v2278, %v2332
    %2334 = vdwg.mxu0
    %v2335 = vsel %vm1510, %v1104, -inf
    %2336 = vmax.xlane.f32.xlu0 %v2335
    %v2337 = vpop.xlane.xlu0 %2336
    %v2338 = vsub.f32 %v1104, %v2337
    %v2339 = vmul.f32 %v2338, 1.442695
    %v2340 = vpow.pop %v2339
    %2342 = vrot.lane.b32.xlu0 %v2340, 88
    %v2343 = vpop.permute.xlu0 %2342
    %v2345 = vsel %vm1117, %v2343, 0.0
    %2346 = vadd.xlane.f32.xlu0 %v2345
    %v2347 = vpop.xlane.xlu0 %2346
    %v2348 = vrcp.pop %v2347
    %v2349 = vmul.f32 %v2340, %v2348
    %2350 = vrot.lane.b32.xlu0 %v1104, 112
    %v2351 = vpop.permute.xlu0 %2350
    %v2353 = vadd.f32 %v1956, %v2351
    %v2354 = vsub.f32 %v2353, 0.5
    %2356 = vset.pattern.permute.xlu0 0
    %2357 = vperm.xlu0 %2356, %v2354
    %v2358 = vpop.permute.xlu0 %2357
    %v2360 = vsub.f32 %v2358, %v1132
    %v2361 = vand.u32 2147483647, %v2360
    %v2362 = vsub.f32 1.0, %v2361
    %v2363 = vmax.f32 %v2362, 0.0
    %2364 = vset.pattern.permute.xlu0 1
    %2365 = vperm.xlu0 %2364, %v2354
    %v2366 = vpop.permute.xlu0 %2365
    %v2368 = vsub.f32 %v2366, %v1143
    %v2369 = vand.u32 2147483647, %v2368
    %v2370 = vsub.f32 1.0, %v2369
    %v2371 = vmax.f32 %v2370, 0.0
    %v2372 = vmul.f32 %v2363, %v2371
    %2374 = vset.pattern.permute.xlu0 40
    %2375 = vperm.xlu0 %2374, %v2349
    %v2376 = vpop.permute.xlu0 %2375
    %v2378 = vmul.f32 %v2372, %v2376
    %v2379 = vadd.f32 %v2378, 0.0
    %2380 = vrot.lane.b32.xlu0 %v1104, 110
    %v2381 = vpop.permute.xlu0 %2380
    %v2383 = vadd.f32 %v1956, %v2381
    %v2384 = vsub.f32 %v2383, 0.5
    %2386 = vset.pattern.permute.xlu0 0
    %2387 = vperm.xlu0 %2386, %v2384
    %v2388 = vpop.permute.xlu0 %2387
    %v2390 = vsub.f32 %v2388, %v1132
    %v2391 = vand.u32 2147483647, %v2390
    %v2392 = vsub.f32 1.0, %v2391
    %v2393 = vmax.f32 %v2392, 0.0
    %2394 = vset.pattern.permute.xlu0 1
    %2395 = vperm.xlu0 %2394, %v2384
    %v2396 = vpop.permute.xlu0 %2395
    %v2398 = vsub.f32 %v2396, %v1143
    %v2399 = vand.u32 2147483647, %v2398
    %v2400 = vsub.f32 1.0, %v2399
    %v2401 = vmax.f32 %v2400, 0.0
    %v2402 = vmul.f32 %v2393, %v2401
    %2403 = vset.pattern.permute.xlu0 41
    %2404 = vperm.xlu0 %2403, %v2349
    %v2405 = vpop.permute.xlu0 %2404
    %v2407 = vmul.f32 %v2402, %v2405
    %v2408 = vadd.f32 %v2379, %v2407
    %v2409 = vadd.f32 %v2014, %v2381
    %v2410 = vsub.f32 %v2409, 0.5
    %2412 = vset.pattern.permute.xlu0 2
    %2413 = vperm.xlu0 %2412, %v2410
    %v2414 = vpop.permute.xlu0 %2413
    %v2416 = vsub.f32 %v2414, %v1132
    %v2417 = vand.u32 2147483647, %v2416
    %v2418 = vsub.f32 1.0, %v2417
    %v2419 = vmax.f32 %v2418, 0.0
    %2420 = vset.pattern.permute.xlu0 3
    %2421 = vperm.xlu0 %2420, %v2410
    %v2422 = vpop.permute.xlu0 %2421
    %v2424 = vsub.f32 %v2422, %v1143
    %v2425 = vand.u32 2147483647, %v2424
    %v2426 = vsub.f32 1.0, %v2425
    %v2427 = vmax.f32 %v2426, 0.0
    %v2428 = vmul.f32 %v2419, %v2427
    %2429 = vset.pattern.permute.xlu0 42
    %2430 = vperm.xlu0 %2429, %v2349
    %v2431 = vpop.permute.xlu0 %2430
    %v2433 = vmul.f32 %v2428, %v2431
    %v2434 = vadd.f32 %v2433, 0.0
    %2435 = vrot.lane.b32.xlu0 %v1104, 108
    %v2436 = vpop.permute.xlu0 %2435
    %v2438 = vadd.f32 %v2014, %v2436
    %v2439 = vsub.f32 %v2438, 0.5
    %2441 = vset.pattern.permute.xlu0 2
    %2442 = vperm.xlu0 %2441, %v2439
    %v2443 = vpop.permute.xlu0 %2442
    %v2445 = vsub.f32 %v2443, %v1132
    %v2446 = vand.u32 2147483647, %v2445
    %v2447 = vsub.f32 1.0, %v2446
    %v2448 = vmax.f32 %v2447, 0.0
    %2449 = vset.pattern.permute.xlu0 3
    %2450 = vperm.xlu0 %2449, %v2439
    %v2451 = vpop.permute.xlu0 %2450
    %v2453 = vsub.f32 %v2451, %v1143
    %v2454 = vand.u32 2147483647, %v2453
    %v2455 = vsub.f32 1.0, %v2454
    %v2456 = vmax.f32 %v2455, 0.0
    %v2457 = vmul.f32 %v2448, %v2456
    %2458 = vset.pattern.permute.xlu0 43
    %2459 = vperm.xlu0 %2458, %v2349
    %v2460 = vpop.permute.xlu0 %2459
    %v2462 = vmul.f32 %v2457, %v2460
    %v2463 = vadd.f32 %v2434, %v2462
    %2465 = vrot.lane.b32.xlu0 %v2463, 64
    %v2466 = vpop.permute.xlu0 %2465
    %2467 = vrot.lane.b32.xlu0 %v1064, 112
    %v2468 = vpop.permute.xlu0 %2467
    %2469 = vrot.lane.b32.xlu0 %v1067, 112
    %v2470 = vpop.permute.xlu0 %2469
    %v2473 = vsel %vm538, %v2466, 0
    %2475 = vmatpush.msra.mxu0 0.0
    %2476 = vmatpush.msra.mxu0 0.0
    %2477 = vmatpush.msra.mxu0 0.0
    %2478 = vmatpush.msra.mxu0 0.0
    %2479 = vmatpush.msra.mxu0 0.0
    %2480 = vmatpush.msra.mxu0 0.0
    %2481 = vmatpush.msra.mxu0 0.0
    %2482 = vmatpush.msra.mxu0 0.0
    %2483 = vmatpush.msra.mxu0 0.0
    %2484 = vmatpush.msra.mxu0 0.0
    %2485 = vmatpush.msra.mxu0 0.0
    %2486 = vmatpush.msra.mxu0 0.0
    %2487 = vmatpush.msra.mxu0 0.0
    %2488 = vmatpush.msra.mxu0 0.0
    %2489 = vmatpush.msra.mxu0 %v2470
    %2490 = vmatpush.msra.mxu0 %v2468
    %2491 = vmatmul.f32.gmra.mxu0 %v2473
    %v2492 = vpop.f32.mrf.mxu0
    %v2493 = vadd.f32 0.0, %v2492
    %2494 = vdwg.mxu0
    %2495 = vrot.lane.b32.xlu0 %v1040, 112
    %v2496 = vpop.permute.xlu0 %2495
    %2497 = vrot.lane.b32.xlu0 %v1043, 112
    %v2498 = vpop.permute.xlu0 %2497
    %2499 = vrot.lane.b32.xlu0 %v1046, 112
    %v2500 = vpop.permute.xlu0 %2499
    %2501 = vrot.lane.b32.xlu0 %v1049, 112
    %v2502 = vpop.permute.xlu0 %2501
    %2503 = vrot.lane.b32.xlu0 %v1052, 112
    %v2504 = vpop.permute.xlu0 %2503
    %2505 = vrot.lane.b32.xlu0 %v1055, 112
    %v2506 = vpop.permute.xlu0 %2505
    %2507 = vrot.lane.b32.xlu0 %v1058, 112
    %v2508 = vpop.permute.xlu0 %2507
    %2509 = vrot.lane.b32.xlu0 %v1061, 112
    %v2510 = vpop.permute.xlu0 %2509
    %v2520 = vsel %vm1268, %v2408, 0
    %2522 = vmatpush.msra.mxu0 0.0
    %2523 = vmatpush.msra.mxu0 0.0
    %2524 = vmatpush.msra.mxu0 0.0
    %2525 = vmatpush.msra.mxu0 0.0
    %2526 = vmatpush.msra.mxu0 0.0
    %2527 = vmatpush.msra.mxu0 0.0
    %2528 = vmatpush.msra.mxu0 0.0
    %2529 = vmatpush.msra.mxu0 0.0
    %2530 = vmatpush.msra.mxu0 %v2510
    %2531 = vmatpush.msra.mxu0 %v2508
    %2532 = vmatpush.msra.mxu0 %v2506
    %2533 = vmatpush.msra.mxu0 %v2504
    %2534 = vmatpush.msra.mxu0 %v2502
    %2535 = vmatpush.msra.mxu0 %v2500
    %2536 = vmatpush.msra.mxu0 %v2498
    %2537 = vmatpush.msra.mxu0 %v2496
    %2538 = vmatmul.f32.gmra.mxu0 %v2520
    %v2539 = vpop.f32.mrf.mxu0
    %v2540 = vadd.f32 %v2493, %v2539
    %2541 = vdwg.mxu0
    %v2542 = vsel %vm1718, %v1104, -inf
    %2543 = vmax.xlane.f32.xlu0 %v2542
    %v2544 = vpop.xlane.xlu0 %2543
    %v2545 = vsub.f32 %v1104, %v2544
    %v2546 = vmul.f32 %v2545, 1.442695
    %v2547 = vpow.pop %v2546
    %2549 = vrot.lane.b32.xlu0 %v2547, 84
    %v2550 = vpop.permute.xlu0 %2549
    %v2552 = vsel %vm1117, %v2550, 0.0
    %2553 = vadd.xlane.f32.xlu0 %v2552
    %v2554 = vpop.xlane.xlu0 %2553
    %v2555 = vrcp.pop %v2554
    %v2556 = vmul.f32 %v2547, %v2555
    %2557 = vrot.lane.b32.xlu0 %v1104, 104
    %v2558 = vpop.permute.xlu0 %2557
    %v2560 = vadd.f32 %v1956, %v2558
    %v2561 = vsub.f32 %v2560, 0.5
    %2563 = vset.pattern.permute.xlu0 0
    %2564 = vperm.xlu0 %2563, %v2561
    %v2565 = vpop.permute.xlu0 %2564
    %v2567 = vsub.f32 %v2565, %v1132
    %v2568 = vand.u32 2147483647, %v2567
    %v2569 = vsub.f32 1.0, %v2568
    %v2570 = vmax.f32 %v2569, 0.0
    %2571 = vset.pattern.permute.xlu0 1
    %2572 = vperm.xlu0 %2571, %v2561
    %v2573 = vpop.permute.xlu0 %2572
    %v2575 = vsub.f32 %v2573, %v1143
    %v2576 = vand.u32 2147483647, %v2575
    %v2577 = vsub.f32 1.0, %v2576
    %v2578 = vmax.f32 %v2577, 0.0
    %v2579 = vmul.f32 %v2570, %v2578
    %2581 = vset.pattern.permute.xlu0 44
    %2582 = vperm.xlu0 %2581, %v2556
    %v2583 = vpop.permute.xlu0 %2582
    %v2585 = vmul.f32 %v2579, %v2583
    %v2586 = vadd.f32 %v2585, 0.0
    %2587 = vrot.lane.b32.xlu0 %v1104, 102
    %v2588 = vpop.permute.xlu0 %2587
    %v2590 = vadd.f32 %v1956, %v2588
    %v2591 = vsub.f32 %v2590, 0.5
    %2593 = vset.pattern.permute.xlu0 0
    %2594 = vperm.xlu0 %2593, %v2591
    %v2595 = vpop.permute.xlu0 %2594
    %v2597 = vsub.f32 %v2595, %v1132
    %v2598 = vand.u32 2147483647, %v2597
    %v2599 = vsub.f32 1.0, %v2598
    %v2600 = vmax.f32 %v2599, 0.0
    %2601 = vset.pattern.permute.xlu0 1
    %2602 = vperm.xlu0 %2601, %v2591
    %v2603 = vpop.permute.xlu0 %2602
    %v2605 = vsub.f32 %v2603, %v1143
    %v2606 = vand.u32 2147483647, %v2605
    %v2607 = vsub.f32 1.0, %v2606
    %v2608 = vmax.f32 %v2607, 0.0
    %v2609 = vmul.f32 %v2600, %v2608
    %2610 = vset.pattern.permute.xlu0 45
    %2611 = vperm.xlu0 %2610, %v2556
    %v2612 = vpop.permute.xlu0 %2611
    %v2614 = vmul.f32 %v2609, %v2612
    %v2615 = vadd.f32 %v2586, %v2614
    %v2616 = vadd.f32 %v2014, %v2588
    %v2617 = vsub.f32 %v2616, 0.5
    %2619 = vset.pattern.permute.xlu0 2
    %2620 = vperm.xlu0 %2619, %v2617
    %v2621 = vpop.permute.xlu0 %2620
    %v2623 = vsub.f32 %v2621, %v1132
    %v2624 = vand.u32 2147483647, %v2623
    %v2625 = vsub.f32 1.0, %v2624
    %v2626 = vmax.f32 %v2625, 0.0
    %2627 = vset.pattern.permute.xlu0 3
    %2628 = vperm.xlu0 %2627, %v2617
    %v2629 = vpop.permute.xlu0 %2628
    %v2631 = vsub.f32 %v2629, %v1143
    %v2632 = vand.u32 2147483647, %v2631
    %v2633 = vsub.f32 1.0, %v2632
    %v2634 = vmax.f32 %v2633, 0.0
    %v2635 = vmul.f32 %v2626, %v2634
    %2636 = vset.pattern.permute.xlu0 46
    %2637 = vperm.xlu0 %2636, %v2556
    %v2638 = vpop.permute.xlu0 %2637
    %v2640 = vmul.f32 %v2635, %v2638
    %v2641 = vadd.f32 %v2640, 0.0
    %2642 = vrot.lane.b32.xlu0 %v1104, 100
    %v2643 = vpop.permute.xlu0 %2642
    %v2645 = vadd.f32 %v2014, %v2643
    %v2646 = vsub.f32 %v2645, 0.5
    %2648 = vset.pattern.permute.xlu0 2
    %2649 = vperm.xlu0 %2648, %v2646
    %v2650 = vpop.permute.xlu0 %2649
    %v2652 = vsub.f32 %v2650, %v1132
    %v2653 = vand.u32 2147483647, %v2652
    %v2654 = vsub.f32 1.0, %v2653
    %v2655 = vmax.f32 %v2654, 0.0
    %2656 = vset.pattern.permute.xlu0 3
    %2657 = vperm.xlu0 %2656, %v2646
    %v2658 = vpop.permute.xlu0 %2657
    %v2660 = vsub.f32 %v2658, %v1143
    %v2661 = vand.u32 2147483647, %v2660
    %v2662 = vsub.f32 1.0, %v2661
    %v2663 = vmax.f32 %v2662, 0.0
    %v2664 = vmul.f32 %v2655, %v2663
    %2665 = vset.pattern.permute.xlu0 47
    %2666 = vperm.xlu0 %2665, %v2556
    %v2667 = vpop.permute.xlu0 %2666
    %v2669 = vmul.f32 %v2664, %v2667
    %v2670 = vadd.f32 %v2641, %v2669
    %2672 = vrot.lane.b32.xlu0 %v2670, 64
    %v2673 = vpop.permute.xlu0 %2672
    %2674 = vrot.lane.b32.xlu0 %v1064, 104
    %v2675 = vpop.permute.xlu0 %2674
    %2676 = vrot.lane.b32.xlu0 %v1067, 104
    %v2677 = vpop.permute.xlu0 %2676
    %v2680 = vsel %vm538, %v2673, 0
    %2682 = vmatpush.msra.mxu0 0.0
    %2683 = vmatpush.msra.mxu0 0.0
    %2684 = vmatpush.msra.mxu0 0.0
    %2685 = vmatpush.msra.mxu0 0.0
    %2686 = vmatpush.msra.mxu0 0.0
    %2687 = vmatpush.msra.mxu0 0.0
    %2688 = vmatpush.msra.mxu0 0.0
    %2689 = vmatpush.msra.mxu0 0.0
    %2690 = vmatpush.msra.mxu0 0.0
    %2691 = vmatpush.msra.mxu0 0.0
    %2692 = vmatpush.msra.mxu0 0.0
    %2693 = vmatpush.msra.mxu0 0.0
    %2694 = vmatpush.msra.mxu0 0.0
    %2695 = vmatpush.msra.mxu0 0.0
    %2696 = vmatpush.msra.mxu0 %v2677
    %2697 = vmatpush.msra.mxu0 %v2675
    %2698 = vmatmul.f32.gmra.mxu0 %v2680
    %v2699 = vpop.f32.mrf.mxu0
    %v2700 = vadd.f32 0.0, %v2699
    %2701 = vdwg.mxu0
    %2702 = vrot.lane.b32.xlu0 %v1040, 104
    %v2703 = vpop.permute.xlu0 %2702
    %2704 = vrot.lane.b32.xlu0 %v1043, 104
    %v2705 = vpop.permute.xlu0 %2704
    %2706 = vrot.lane.b32.xlu0 %v1046, 104
    %v2707 = vpop.permute.xlu0 %2706
    %2708 = vrot.lane.b32.xlu0 %v1049, 104
    %v2709 = vpop.permute.xlu0 %2708
    %2710 = vrot.lane.b32.xlu0 %v1052, 104
    %v2711 = vpop.permute.xlu0 %2710
    %2712 = vrot.lane.b32.xlu0 %v1055, 104
    %v2713 = vpop.permute.xlu0 %2712
    %2714 = vrot.lane.b32.xlu0 %v1058, 104
    %v2715 = vpop.permute.xlu0 %2714
    %2716 = vrot.lane.b32.xlu0 %v1061, 104
    %v2717 = vpop.permute.xlu0 %2716
    %v2727 = vsel %vm1268, %v2615, 0
    %2729 = vmatpush.msra.mxu0 0.0
    %2730 = vmatpush.msra.mxu0 0.0
    %2731 = vmatpush.msra.mxu0 0.0
    %2732 = vmatpush.msra.mxu0 0.0
    %2733 = vmatpush.msra.mxu0 0.0
    %2734 = vmatpush.msra.mxu0 0.0
    %2735 = vmatpush.msra.mxu0 0.0
    %2736 = vmatpush.msra.mxu0 0.0
    %2737 = vmatpush.msra.mxu0 %v2717
    %2738 = vmatpush.msra.mxu0 %v2715
    %2739 = vmatpush.msra.mxu0 %v2713
    %2740 = vmatpush.msra.mxu0 %v2711
    %2741 = vmatpush.msra.mxu0 %v2709
    %2742 = vmatpush.msra.mxu0 %v2707
    %2743 = vmatpush.msra.mxu0 %v2705
    %2744 = vmatpush.msra.mxu0 %v2703
    %2745 = vmatmul.f32.gmra.mxu0 %v2727
    %v2746 = vpop.f32.mrf.mxu0
    %v2747 = vadd.f32 %v2700, %v2746
    %2748 = vdwg.mxu0
    %2750 = vrot.lane.b32.xlu0 %v2333, 8
    %v2751 = vpop.permute.xlu0 %2750
    %2754 = vrot.lane.b32.xlu0 %v2540, 16
    %v2755 = vpop.permute.xlu0 %2754
    %2758 = vrot.lane.b32.xlu0 %v2747, 24
    %v2759 = vpop.permute.xlu0 %2758
    %v2761 = vsel %vm266, %v2116, %v2751
    %v2762 = vsel %vm538, %v2761, %v2755
    %v2763 = vsel %vm540, %v2762, %v2759
    %v2764 = vld [vmem:[%s18] sm:$0xff]
    %v2765 = vld [vmem:[%s18 + $0x8] sm:$0xff]
    %v2766 = vld [vmem:[%s18 + $0x10] sm:$0xff]
    %v2767 = vld [vmem:[%s18 + $0x18] sm:$0xff]
    %v2769 = vsel %vm196, %v1940, 0
    %v2772 = vsel %vm196, %v2763, 0
    %2774 = vmatpush.msra.mxu0 0.0
    %2775 = vmatpush.msra.mxu0 0.0
    %2776 = vmatpush.msra.mxu0 0.0
    %2777 = vmatpush.msra.mxu0 0.0
    %2778 = vmatpush.msra.mxu0 0.0
    %2779 = vmatpush.msra.mxu0 0.0
    %2780 = vmatpush.msra.mxu0 0.0
    %2781 = vmatpush.msra.mxu0 0.0
    %2782 = vmatpush.msra.mxu0 0.0
    %2783 = vmatpush.msra.mxu0 0.0
    %2784 = vmatpush.msra.mxu0 0.0
    %2785 = vmatpush.msra.mxu0 0.0
    %2786 = vmatpush.msra.mxu0 %v2767
    %2787 = vmatpush.msra.mxu0 %v2766
    %2788 = vmatpush.msra.mxu0 %v2765
    %2789 = vmatpush.msra.mxu0 %v2764
    %2790 = vmatmul.f32.gmra.mxu0 %v2769
    %v2791 = vpop.f32.mrf.mxu0
    %v2792 = vadd.f32 0.0, %v2791
    %2793 = vmatmul.f32.gmra.mxu0 %v2772
    %v2794 = vpop.f32.mrf.mxu0
    %v2795 = vadd.f32 0.0, %v2794
    %2796 = vdwg.mxu0
    %v2797 = vadd.f32 %v920, %v2792
    %v2798 = vadd.f32 %v921, %v2795
    %v2799 = vld [vmem:[%s19] sm:$0x1]
    %v2801 = vperm.slane %v2799, 0
    %v2803 = vadd.f32 %v2797, %v2801
    %v2804 = vadd.f32 %v2798, %v2801
    %v2805 = vld [vmem:[%s20] sm:$0x1]
    %v2806 = vld [vmem:[#allocation2] sm:$0x1]
    %v2807 = vsel %vm196, %v2803, 0.0
    %2808 = vadd.xlane.f32.xlu0 %v2807
    %v2809 = vpop.xlane.xlu0 %2808
    %v2810 = vsel %vm196, %v2804, 0.0
    %2811 = vadd.xlane.f32.xlu0 %v2810
    %v2812 = vpop.xlane.xlu0 %2811
    %v2813 = vmul.f32 %v2809, %v873
    %v2814 = vmul.f32 %v2812, %v873
    %v2815 = vsub.f32 %v2803, %v2813
    %v2816 = vsub.f32 %v2804, %v2814
    %v2817 = vmul.f32 %v2815, %v2815
    %v2818 = vmul.f32 %v2816, %v2816
    %v2819 = vsel %vm196, %v2817, 0.0
    %2820 = vadd.xlane.f32.xlu0 %v2819
    %v2821 = vpop.xlane.xlu0 %2820
    %v2822 = vsel %vm196, %v2818, 0.0
    %2823 = vadd.xlane.f32.xlu0 %v2822
    %v2824 = vpop.xlane.xlu0 %2823
    %v2825 = vmul.f32 %v2821, %v873
    %v2826 = vmul.f32 %v2824, %v873
    %v2827 = vadd.f32 %v2825, 1e-05
    %v2828 = vadd.f32 %v2826, 1e-05
    %v2829 = vrsqrt.pop %v2827
    %v2830 = vmul.f32 %v2829, %v2827
    %v2831 = vmul.f32 %v2830, %v2829
    %v2832 = vmul.f32 0.5, %v2831
    %v2833 = vsub.f32 1.5, %v2832
    %v2834 = vmul.f32 %v2829, %v2833
    %vm2835 = vweird.f32 %v2827
    %vm2836 = vweird.f32 %v2829
    %vm2837 = vmor %vm2835, %vm2836
    %v2838 = vsel %vm2837, %v2829, %v2834
    %v2839 = vrsqrt.pop %v2828
    %v2840 = vmul.f32 %v2839, %v2828
    %v2841 = vmul.f32 %v2840, %v2839
    %v2842 = vmul.f32 0.5, %v2841
    %v2843 = vsub.f32 1.5, %v2842
    %v2844 = vmul.f32 %v2839, %v2843
    %vm2845 = vweird.f32 %v2828
    %vm2846 = vweird.f32 %v2839
    %vm2847 = vmor %vm2845, %vm2846
    %v2848 = vsel %vm2847, %v2839, %v2844
    %v2849 = vmul.f32 %v2815, %v2838
    %v2850 = vmul.f32 %v2816, %v2848
    %v2852 = vperm.slane %v2805, 0
    %v2854 = vmul.f32 %v2849, %v2852
    %v2855 = vmul.f32 %v2850, %v2852
    %v2857 = vperm.slane %v2806, 0
    %v2859 = vadd.f32 %v2854, %v2857
    %v2860 = vadd.f32 %v2855, %v2857
    %v2861 = vld [vmem:[%s22] sm:$0xff]
    %v2862 = vld [vmem:[%s22 + $0x8] sm:$0xff]
    %v2863 = vld [vmem:[%s22 + $0x10] sm:$0xff]
    %v2864 = vld [vmem:[%s22 + $0x18] sm:$0xff]
    %v2865 = vld [vmem:[#allocation5] sm:$0x1]
    %v2867 = vperm.slane %v2865, 0
    %v2870 = vsel %vm196, %v2859, 0
    %v2873 = vsel %vm196, %v2860, 0
    %2875 = vmatpush.msra.mxu0 0.0
    %2876 = vmatpush.msra.mxu0 0.0
    %2877 = vmatpush.msra.mxu0 0.0
    %2878 = vmatpush.msra.mxu0 0.0
    %2879 = vmatpush.msra.mxu0 0.0
    %2880 = vmatpush.msra.mxu0 0.0
    %2881 = vmatpush.msra.mxu0 0.0
    %2882 = vmatpush.msra.mxu0 0.0
    %2883 = vmatpush.msra.mxu0 0.0
    %2884 = vmatpush.msra.mxu0 0.0
    %2885 = vmatpush.msra.mxu0 0.0
    %2886 = vmatpush.msra.mxu0 0.0
    %2887 = vmatpush.msra.mxu0 %v2864
    %2888 = vmatpush.msra.mxu0 %v2863
    %2889 = vmatpush.msra.mxu0 %v2862
    %2890 = vmatpush.msra.mxu0 %v2861
    %2891 = vmatmul.f32.gmra.mxu0 %v2870
    %v2892 = vpop.f32.mrf.mxu0
    %v2893 = vadd.f32 %v2867, %v2892
    %2894 = vmatmul.f32.gmra.mxu0 %v2873
    %v2895 = vpop.f32.mrf.mxu0
    %v2896 = vadd.f32 %v2867, %v2895
    %2897 = vdwg.mxu0
    %v2898 = vmax.f32 %v2893, 0.0
    %v2899 = vmax.f32 %v2896, 0.0
    %v2900 = vld [vmem:[%s24] sm:$0xff]
    %v2901 = vld [vmem:[%s24 + $0x8] sm:$0xff]
    %v2902 = vld [vmem:[%s24 + $0x10] sm:$0xff]
    %v2903 = vld [vmem:[%s24 + $0x18] sm:$0xff]
    %v2904 = vld [vmem:[%s24 + $0x20] sm:$0xff]
    %v2905 = vld [vmem:[%s24 + $0x28] sm:$0xff]
    %v2906 = vld [vmem:[%s24 + $0x30] sm:$0xff]
    %v2907 = vld [vmem:[%s24 + $0x38] sm:$0xff]
    %v2909 = vsel %vm1268, %v2898, 0
    %v2912 = vsel %vm1268, %v2899, 0
    %2914 = vmatpush.msra.mxu0 0.0
    %2915 = vmatpush.msra.mxu0 0.0
    %2916 = vmatpush.msra.mxu0 0.0
    %2917 = vmatpush.msra.mxu0 0.0
    %2918 = vmatpush.msra.mxu0 0.0
    %2919 = vmatpush.msra.mxu0 0.0
    %2920 = vmatpush.msra.mxu0 0.0
    %2921 = vmatpush.msra.mxu0 0.0
    %2922 = vmatpush.msra.mxu0 %v2907
    %2923 = vmatpush.msra.mxu0 %v2906
    %2924 = vmatpush.msra.mxu0 %v2905
    %2925 = vmatpush.msra.mxu0 %v2904
    %2926 = vmatpush.msra.mxu0 %v2903
    %2927 = vmatpush.msra.mxu0 %v2902
    %2928 = vmatpush.msra.mxu0 %v2901
    %2929 = vmatpush.msra.mxu0 %v2900
    %2930 = vmatmul.f32.gmra.mxu0 %v2909
    %v2931 = vpop.f32.mrf.mxu0
    %v2932 = vadd.f32 0.0, %v2931
    %2933 = vmatmul.f32.gmra.mxu0 %v2912
    %v2934 = vpop.f32.mrf.mxu0
    %v2935 = vadd.f32 0.0, %v2934
    %2936 = vdwg.mxu0
    %v2937 = vadd.f32 %v2859, %v2932
    %v2938 = vadd.f32 %v2860, %v2935
    %v2939 = vld [vmem:[#allocation7] sm:$0x1]
    %v2941 = vperm.slane %v2939, 0
    %v2943 = vadd.f32 %v2937, %v2941
    %v2944 = vadd.f32 %v2938, %v2941
    %v2945 = vld [vmem:[#allocation8] sm:$0x1]
    %v2946 = vld [vmem:[#allocation10] sm:$0x1]
    %v2947 = vsel %vm196, %v2943, 0.0
    %2948 = vadd.xlane.f32.xlu0 %v2947
    %v2949 = vpop.xlane.xlu0 %2948
    %v2950 = vsel %vm196, %v2944, 0.0
    %2951 = vadd.xlane.f32.xlu0 %v2950
    %v2952 = vpop.xlane.xlu0 %2951
    %v2953 = vmul.f32 %v2949, %v873
    %v2954 = vmul.f32 %v2952, %v873
    %v2955 = vsub.f32 %v2943, %v2953
    %v2956 = vsub.f32 %v2944, %v2954
    %v2957 = vmul.f32 %v2955, %v2955
    %v2958 = vmul.f32 %v2956, %v2956
    %v2959 = vsel %vm196, %v2957, 0.0
    %2960 = vadd.xlane.f32.xlu0 %v2959
    %v2961 = vpop.xlane.xlu0 %2960
    %v2962 = vsel %vm196, %v2958, 0.0
    %2963 = vadd.xlane.f32.xlu0 %v2962
    %v2964 = vpop.xlane.xlu0 %2963
    %v2965 = vmul.f32 %v2961, %v873
    %v2966 = vmul.f32 %v2964, %v873
    %v2967 = vadd.f32 %v2965, 1e-05
    %v2968 = vadd.f32 %v2966, 1e-05
    %v2969 = vrsqrt.pop %v2967
    %v2970 = vmul.f32 %v2969, %v2967
    %v2971 = vmul.f32 %v2970, %v2969
    %v2972 = vmul.f32 0.5, %v2971
    %v2973 = vsub.f32 1.5, %v2972
    %v2974 = vmul.f32 %v2969, %v2973
    %vm2975 = vweird.f32 %v2967
    %vm2976 = vweird.f32 %v2969
    %vm2977 = vmor %vm2975, %vm2976
    %v2978 = vsel %vm2977, %v2969, %v2974
    %v2979 = vrsqrt.pop %v2968
    %v2980 = vmul.f32 %v2979, %v2968
    %v2981 = vmul.f32 %v2980, %v2979
    %v2982 = vmul.f32 0.5, %v2981
    %v2983 = vsub.f32 1.5, %v2982
    %v2984 = vmul.f32 %v2979, %v2983
    %vm2985 = vweird.f32 %v2968
    %vm2986 = vweird.f32 %v2979
    %vm2987 = vmor %vm2985, %vm2986
    %v2988 = vsel %vm2987, %v2979, %v2984
    %v2989 = vmul.f32 %v2955, %v2978
    %v2990 = vmul.f32 %v2956, %v2988
    %v2992 = vperm.slane %v2945, 0
    %v2994 = vmul.f32 %v2989, %v2992
    %v2995 = vmul.f32 %v2990, %v2992
    %v2997 = vperm.slane %v2946, 0
    %v2999 = vadd.f32 %v2994, %v2997
    %v3000 = vadd.f32 %v2995, %v2997
    %3001 = vst.msk [vmem:[#allocation11] sm:$0xff] %vm196, %v2999
    %3002 = vst.msk [vmem:[#allocation11 + $0x8] sm:$0xff] %vm196, %v3000
    // Predicated region
    $region134: #{tpu_custom_call.1} parent=1 // pred_check
      _
    $region135: #{tpu_custom_call.1} parent=1 // pred_check_branch
      %3004 = sbr.rel (0) target = $region137
    $region136: #{tpu_custom_call.1} parent=1 // pred_region
      %3006 = vsyncadd [#allocation4], 0
      %s3007 = sshll.u32 [#allocation11], 4
      %s3008 = int_to_ptr.vmem [resolvable:$true] %s3007
      %s3009 = sshll.u32 %s28, 4
      %s3010 = int_to_ptr.hbm [resolvable:$true] %s3009
      %3015 = dma.vmem_to_hbm [thread:$0]  %s3008, 256, %s3010, [#allocation4], 128, 128, 8
    $region137: #{tpu_custom_call.1} parent=1 // pred_fallthru
      _
    // Predicated region
    $region138: #{tpu_custom_call.1} parent=1 // pred_check
      _
    $region139: #{tpu_custom_call.1} parent=1 // pred_check_branch
      %3017 = sbr.rel (0) target = $region141
    $region140: #{tpu_custom_call.1} parent=1 // pred_region
      %3019 = dma.done [#allocation4], 256
    $region141: #{tpu_custom_call.1} parent=1 // pred_fallthru
      _
    %3020 = vsyncpa [#allocation3], 1
    %3021 = vsyncpa [#allocation6], 1
    %3022 = vsyncpa [#allocation9], 1
    %3023 = vsyncpa [#allocation4], 1

</llo_original>
